<compile_context>
chip_gen: v6e
topology: v6e:2x2x1
jax: 0.10.0
libtpu: 0.0.40
codegen_flags: <defaults>
</compile_context>

<pallas_src>
import functools
import math

import jax
import jax.numpy as jnp
from jax import lax
from jax.experimental import pallas as pl
from jax.experimental.pallas import tpu as pltpu


def _mha_flash_kernel(seed_ref, xq_ref, xkv_ref, wq_ref, wk_ref, wv_ref,
                      wp_ref, bp_ref, o_ref,
                      q_sc, m_sc, l_sc, acc_sc, *,
                      num_heads, head_dim, tq, tk, scale,
                      dropout_p, training, approx_recip):
    b = pl.program_id(0)
    qi = pl.program_id(1)
    ki = pl.program_id(2)
    nk = pl.num_programs(2)
    dtype = xq_ref.dtype
    C = wp_ref.shape[-1]

    use_dropout = bool(training) and dropout_p > 0.0
    if use_dropout:
        # integer-threshold inverted dropout on the on-chip PRNG
        keep_thresh = jnp.uint32(int(dropout_p * (1 << 23)))
        inv_keep = jnp.float32(1.0 / (1.0 - dropout_p))

        def _dropout(a):
            bits = pltpu.bitcast(pltpu.prng_random_bits(a.shape), jnp.uint32)
            keep = (bits & jnp.uint32(0x7FFFFF)) >= keep_thresh
            return jnp.where(keep, a * inv_keep, 0.0)

    # ---- init once per (batch, q-tile): project Q (scale folded in), reset state
    @pl.when(ki == 0)
    def _init():
        q = jnp.dot(xq_ref[0], wq_ref[...], preferred_element_type=jnp.float32)
        q_sc[...] = (q * scale).astype(q_sc.dtype)
        m_sc[...] = jnp.full(m_sc.shape, -1e30, jnp.float32)
        l_sc[...] = jnp.zeros(l_sc.shape, jnp.float32)
        acc_sc[...] = jnp.zeros(acc_sc.shape, jnp.float32)

    # ---- causal tile skip: only kv tiles intersecting the lower triangle
    q_last_row = (qi + 1) * tq - 1
    kv_first_col = ki * tk

    @pl.when(kv_first_col <= q_last_row)
    def _compute():
        if use_dropout:
            pltpu.prng_seed(seed_ref[0], b, qi, ki)

        xkv = xkv_ref[0]                                           # (tk, C)
        # K/V projections for this kv tile; keep MXU operands in input dtype.
        k = jnp.dot(xkv, wk_ref[...],
                    preferred_element_type=jnp.float32).astype(dtype)
        v = jnp.dot(xkv, wv_ref[...],
                    preferred_element_type=jnp.float32).astype(dtype)
        q = q_sc[...]                                              # (tq, H*D)

        # additive causal bias, built once and shared by all heads
        rows = qi * tq + lax.broadcasted_iota(jnp.int32, (tq, tk), 0)
        cols = ki * tk + lax.broadcasted_iota(jnp.int32, (tq, tk), 1)
        bias = jnp.where(cols <= rows, 0.0, -1e30).astype(jnp.float32)

        for h in range(num_heads):          # per-head state lives in VMEM refs
            sl = slice(h * head_dim, (h + 1) * head_dim)
            qh, kh, vh = q[:, sl], k[:, sl], v[:, sl]
            s = jnp.dot(qh, kh.T, preferred_element_type=jnp.float32) + bias
            m_prev = m_sc[h]
            m_new = jnp.maximum(m_prev, jnp.max(s, axis=-1, keepdims=True))
            alpha = jnp.exp(m_prev - m_new)
            p = jnp.exp(s - m_new)
            l_sc[h] = alpha * l_sc[h] + jnp.sum(p, axis=-1, keepdims=True)
            if use_dropout:
                # dropout on unnormalized probs + undropped l == dropout(softmax)
                p = _dropout(p)
            acc_sc[h] = alpha * acc_sc[h] + jnp.dot(
                p.astype(dtype), vh, preferred_element_type=jnp.float32)
            m_sc[h] = m_new

    # ---- finalize: normalize (deferred 1/l), output projection, store
    @pl.when(ki == nk - 1)
    def _finalize():
        y = jnp.zeros((tq, C), jnp.float32)
        for h in range(num_heads):
            inv_l = pl.reciprocal(l_sc[h], approx=approx_recip)    # (tq, 1)
            out_h = (acc_sc[h] * inv_l).astype(dtype)              # (tq, D)
            # concat @ Wp^T == sum_h out_h @ Wp^T[h*D:(h+1)*D, :]  (no concat)
            y = y + jnp.dot(out_h, wp_ref[h * head_dim:(h + 1) * head_dim, :],
                            preferred_element_type=jnp.float32)
        y = y + bp_ref[...].astype(jnp.float32)
        if use_dropout:
            pltpu.prng_seed(seed_ref[0] + 1, b, qi)
            y = _dropout(y)
        o_ref[0] = y.astype(o_ref.dtype)


def _pick_tile(n, target=256):
    """Largest MXU-friendly tile (multiple of 8/128) that divides n, <= target."""
    if n <= target:
        return n
    for cand in (target, 128, 64, 32, 16, 8):
        if cand <= target and n % cand == 0:
            return cand
    return n


def multi_head_attention(x, wqs, wks, wvs, wp, bp, *, dropout_p=0.0,
                         training=False, seed=0):
    """x: (B, T, C).  wqs/wks/wvs: (H, head_size, C) PyTorch-layout per-head
    weights.  wp: (C, C), bp: (C,) output projection."""
    B, T, C = x.shape
    H, D, _ = wqs.shape
    assert H * D == C, "num_heads * head_size must equal num_embed"
    HD = H * D

    # Stack per-head weights into MXU-friendly (C, H*D): column block h equals
    # Wq_h^T, so x @ WQ == concat_h(x @ Wq_h^T).
    def stack(w):
        return jnp.transpose(jnp.asarray(w), (2, 0, 1)).reshape(C, HD)

    wq, wk, wv = stack(wqs), stack(wks), stack(wvs)
    wpT = jnp.asarray(wp).T                        # (H*D, C)
    bpr = jnp.asarray(bp).reshape(1, C)
    seed_arr = jnp.array([seed], dtype=jnp.int32)

    # flash tiles (256-aligned: native for v6e/v7x MXU, 128-multiple for v5e)
    tq = _pick_tile(T)
    tk = _pick_tile(T)
    nq, nk = T // tq, T // tk

    # ---- per-generation VMEM budget (<= ~3/4 of capacity), explicit limit
    itemsize = jnp.dtype(x.dtype).itemsize
    f32 = 4

    def _pad(n, m):
        return -(-n // m) * m

    weights_b = (3 * C * HD + HD * C + _pad(1, 8) * _pad(C, 128)) * itemsize
    io_b = (2 * tq * C + 2 * tk * C + 2 * tq * C) * itemsize       # dbl-buffered tiles
    scratch_b = (tq * HD * itemsize
                 + 2 * H * _pad(tq, 8) * 128 * f32                 # m, l (lane-padded)
                 + H * _pad(tq, 8) * _pad(D, 128) * f32)           # acc
    live_b = (2 * tk * HD + 3 * tq * tk + tq * HD + tq * C) * f32  # f32 temporaries
    est = 2 * weights_b + io_b + scratch_b + live_b
    try:
        cap = int(pltpu.get_tpu_info().vmem_capacity_bytes)
    except Exception:
        cap = 128 << 20
    clamp = min(cap * 3 // 4, 100 << 20)            # ~48 MiB v7x, ~96 MiB v5e/v6e
    vmem_limit = int(min(max(2 * est, 16 << 20), clamp))

    kernel = functools.partial(
        _mha_flash_kernel, num_heads=H, head_dim=D, tq=tq, tk=tk,
        scale=float(C) ** -0.5, dropout_p=float(dropout_p),
        training=bool(training),
        approx_recip=(jnp.dtype(x.dtype) != jnp.float32))

    def build_and_run(single_buffer_weights):
        def resident(shape):
            kw = ({"pipeline_mode": pl.Buffered(1)}
                  if single_buffer_weights else {})
            nd = len(shape)
            return pl.BlockSpec(shape, lambda b, qi, ki, _nd=nd: (0,) * _nd, **kw)

        call = pl.pallas_call(
            kernel,
            out_shape=jax.ShapeDtypeStruct((B, T, C), x.dtype),
            grid=(B, nq, nk),
            in_specs=[
                pl.BlockSpec(memory_space=pltpu.MemorySpace.SMEM),        # seed
                pl.BlockSpec((1, tq, C), lambda b, qi, ki: (b, qi, 0)),   # x (Q rows)
                pl.BlockSpec((1, tk, C), lambda b, qi, ki: (b, ki, 0)),   # x (K/V rows)
                resident((C, HD)),                                        # WQ
                resident((C, HD)),                                        # WK
                resident((C, HD)),                                        # WV
                resident((HD, C)),                                        # Wp^T
                resident((1, C)),                                         # proj bias
            ],
            out_specs=pl.BlockSpec((1, tq, C), lambda b, qi, ki: (b, qi, 0)),
            scratch_shapes=[
                pltpu.VMEM((tq, HD), x.dtype),           # scaled Q for this q-tile
                pltpu.VMEM((H, tq, 1), jnp.float32),     # running max m
                pltpu.VMEM((H, tq, 1), jnp.float32),     # running sum l
                pltpu.VMEM((H, tq, D), jnp.float32),     # output accumulator
            ],
            compiler_params=pltpu.CompilerParams(
                dimension_semantics=("parallel", "parallel", "arbitrary"),
                vmem_limit_bytes=vmem_limit),
        )
        return jax.block_until_ready(call(seed_arr, x, x, wq, wk, wv, wpT, bpr))

    try:
        return build_and_run(True)
    except Exception:
        # pl.Buffered(1) single-buffering not supported on this jax version:
        # fall back to default double-buffered resident weights.
        return build_and_run(False)


def init_mha_params(key, num_heads, head_size, num_embed, dtype=jnp.float32):
    """Mimic nn.Linear default init (uniform +/- 1/sqrt(fan_in))."""
    kq, kk, kv, kwp, kbp = jax.random.split(key, 5)
    bound = 1.0 / math.sqrt(num_embed)
    shape_h = (num_heads, head_size, num_embed)
    wqs = jax.random.uniform(kq, shape_h, dtype, -bound, bound)
    wks = jax.random.uniform(kk, shape_h, dtype, -bound, bound)
    wvs = jax.random.uniform(kv, shape_h, dtype, -bound, bound)
    wp = jax.random.uniform(kwp, (num_embed, num_embed), dtype, -bound, bound)
    bp = jax.random.uniform(kbp, (num_embed,), dtype, -bound, bound)
    return wqs, wks, wvs, wp, bp


def mha_reference(x, wqs, wks, wvs, wp, bp):
    """Pure-JAX replica of the PyTorch forward in eval mode."""
    B, T, C = x.shape
    mask = jnp.tril(jnp.ones((T, T), dtype=bool))
    outs = []
    for h in range(wqs.shape[0]):
        q = x @ wqs[h].T
        k = x @ wks[h].T
        v = x @ wvs[h].T
        wei = (q @ jnp.swapaxes(k, -1, -2)) * (C ** -0.5)
        wei = jnp.where(mask, wei, -jnp.inf)
        wei = jax.nn.softmax(wei, axis=-1)
        outs.append(wei @ v)
    cat = jnp.concatenate(outs, axis=-1)
    return cat @ wp.T + bp


if __name__ == "__main__":
    batch, block_size, num_embed, num_heads = 2, 8, 32, 4
    head_size = num_embed // num_heads

    key = jax.random.PRNGKey(0)
    kx, kp = jax.random.split(key)
    x = jax.random.normal(kx, (batch, block_size, num_embed), dtype=jnp.float32)
    wqs, wks, wvs, wp, bp = init_mha_params(kp, num_heads, head_size, num_embed)

    # eval mode (dropout is identity), matching module.eval() semantics
    out = multi_head_attention(x, wqs, wks, wvs, wp, bp,
                               dropout_p=0.1, training=False)
    out = jax.block_until_ready(out)

    ref = mha_reference(x, wqs, wks, wvs, wp, bp)
    assert out.shape == x.shape
    assert jnp.allclose(out, ref, atol=2e-4, rtol=2e-4), "mismatch vs reference"

    print("KERNEL_OK")
</pallas_src>

<mosaic_0001>
module attributes {stable_mosaic.version = 11 : i64} {
  func.func @_mha_flash_kernel(%arg0: i32, %arg1: i32, %arg2: i32, %arg3: memref<1xi32, #tpu.memory_space<smem>>, %arg4: memref<1x8x32xf32, #tpu.memory_space<vmem>>, %arg5: memref<1x8x32xf32, #tpu.memory_space<vmem>>, %arg6: memref<32x32xf32, #tpu.memory_space<vmem>>, %arg7: memref<32x32xf32, #tpu.memory_space<vmem>>, %arg8: memref<32x32xf32, #tpu.memory_space<vmem>>, %arg9: memref<32x32xf32, #tpu.memory_space<vmem>>, %arg10: memref<1x32xf32, #tpu.memory_space<vmem>>, %arg11: memref<1x8x32xf32, #tpu.memory_space<vmem>>, %arg12: memref<8x32xf32, #tpu.memory_space<vmem>>, %arg13: memref<4x8x1xf32, #tpu.memory_space<vmem>>, %arg14: memref<4x8x1xf32, #tpu.memory_space<vmem>>, %arg15: memref<4x8x8xf32, #tpu.memory_space<vmem>>) attributes {dimension_semantics = [#tpu.dimension_semantics<parallel>, #tpu.dimension_semantics<parallel>, #tpu.dimension_semantics<arbitrary>], iteration_bounds = array<i64: 2, 1, 1>, scalar_prefetch = 0 : i64, scratch_operands = 4 : i64, tpu.core_type = #tpu.core_type<tc>, window_params = [{transform_indices = @transform_0, window_bounds = array<i64: 1>}, {transform_indices = @transform_1, window_bounds = array<i64: 1, 8, 32>}, {transform_indices = @transform_2, window_bounds = array<i64: 1, 8, 32>}, {pipeline_mode = #tpu.pipeline_mode<synchronous>, transform_indices = @transform_3, window_bounds = array<i64: 32, 32>}, {pipeline_mode = #tpu.pipeline_mode<synchronous>, transform_indices = @transform_4, window_bounds = array<i64: 32, 32>}, {pipeline_mode = #tpu.pipeline_mode<synchronous>, transform_indices = @transform_5, window_bounds = array<i64: 32, 32>}, {pipeline_mode = #tpu.pipeline_mode<synchronous>, transform_indices = @transform_6, window_bounds = array<i64: 32, 32>}, {pipeline_mode = #tpu.pipeline_mode<synchronous>, transform_indices = @transform_7, window_bounds = array<i64: 1, 32>}, {transform_indices = @transform_8, window_bounds = array<i64: 1, 8, 32>}]} {
    %c0_i32 = arith.constant 0 : i32
    %0 = arith.cmpi eq, %arg2, %c0_i32 : i32
    %1 = arith.extui %0 : i1 to i32
    %c0_i32_0 = arith.constant 0 : i32
    %2 = arith.cmpi ne, %1, %c0_i32_0 : i32
    scf.if %2 {
      %c0 = arith.constant 0 : index
      %c0_6 = arith.constant 0 : index
      %c0_7 = arith.constant 0 : index
      %13 = vector.load %arg4[%c0, %c0_6, %c0_7] : memref<1x8x32xf32, #tpu.memory_space<vmem>>, vector<1x8x32xf32>
      %14 = vector.shape_cast %13 : vector<1x8x32xf32> to vector<8x32xf32>
      %c0_8 = arith.constant 0 : index
      %c0_9 = arith.constant 0 : index
      %15 = vector.load %arg6[%c0_8, %c0_9] : memref<32x32xf32, #tpu.memory_space<vmem>>, vector<32x32xf32>
      %cst = arith.constant dense<0.000000e+00> : vector<8x32xf32>
      %16 = tpu.matmul %14, %15, %cst {dimension_numbers = #tpu.dot_dimension_numbers<[1], [0], [0], [1], [0, 0, 1, 1], [], []>} : vector<8x32xf32>, vector<32x32xf32>, vector<8x32xf32> -> vector<8x32xf32>
      %cst_10 = arith.constant 0.176776692 : f32
      %17 = vector.broadcast %cst_10 : f32 to vector<8x32xf32>
      %18 = arith.mulf %16, %17 : vector<8x32xf32>
      %c0_11 = arith.constant 0 : index
      %c0_12 = arith.constant 0 : index
      %19 = vector.load %arg12[%c0_11, %c0_12] : memref<8x32xf32, #tpu.memory_space<vmem>>, vector<8x32xf32>
      tpu.vector_store %arg12[%c0_11, %c0_12], %18 {strides = array<i32>} : memref<8x32xf32, #tpu.memory_space<vmem>>, vector<8x32xf32>,
      %cst_13 = arith.constant -1.000000e+30 : f32
      %20 = vector.broadcast %cst_13 : f32 to vector<4x8x1xf32>
      %c0_14 = arith.constant 0 : index
      %c0_15 = arith.constant 0 : index
      %c0_16 = arith.constant 0 : index
      %21 = vector.load %arg13[%c0_14, %c0_15, %c0_16] : memref<4x8x1xf32, #tpu.memory_space<vmem>>, vector<4x8x1xf32>
      tpu.vector_store %arg13[%c0_14, %c0_15, %c0_16], %20 {strides = array<i32>} : memref<4x8x1xf32, #tpu.memory_space<vmem>>, vector<4x8x1xf32>,
      %cst_17 = arith.constant 0.000000e+00 : f32
      %22 = vector.broadcast %cst_17 : f32 to vector<4x8x1xf32>
      %c0_18 = arith.constant 0 : index
      %c0_19 = arith.constant 0 : index
      %c0_20 = arith.constant 0 : index
      %23 = vector.load %arg14[%c0_18, %c0_19, %c0_20] : memref<4x8x1xf32, #tpu.memory_space<vmem>>, vector<4x8x1xf32>
      tpu.vector_store %arg14[%c0_18, %c0_19, %c0_20], %22 {strides = array<i32>} : memref<4x8x1xf32, #tpu.memory_space<vmem>>, vector<4x8x1xf32>,
      %cst_21 = arith.constant 0.000000e+00 : f32
      %24 = vector.broadcast %cst_21 : f32 to vector<4x8x8xf32>
      %c0_22 = arith.constant 0 : index
      %c0_23 = arith.constant 0 : index
      %c0_24 = arith.constant 0 : index
      %25 = vector.load %arg15[%c0_22, %c0_23, %c0_24] : memref<4x8x8xf32, #tpu.memory_space<vmem>>, vector<4x8x8xf32>
      tpu.vector_store %arg15[%c0_22, %c0_23, %c0_24], %24 {strides = array<i32>} : memref<4x8x8xf32, #tpu.memory_space<vmem>>, vector<4x8x8xf32>,
    } else {
    }
    %c1_i32 = arith.constant 1 : i32
    %3 = arith.addi %arg1, %c1_i32 : i32
    %c8_i32 = arith.constant 8 : i32
    %4 = arith.muli %3, %c8_i32 : i32
    %c1_i32_1 = arith.constant 1 : i32
    %5 = arith.subi %4, %c1_i32_1 : i32
    %c8_i32_2 = arith.constant 8 : i32
    %6 = arith.muli %arg2, %c8_i32_2 : i32
    %7 = arith.cmpi sle, %6, %5 : i32
    %8 = arith.extui %7 : i1 to i32
    %c0_i32_3 = arith.constant 0 : i32
    %9 = arith.cmpi ne, %8, %c0_i32_3 : i32
    scf.if %9 {
      %c0 = arith.constant 0 : index
      %c0_6 = arith.constant 0 : index
      %c0_7 = arith.constant 0 : index
      %13 = vector.load %arg5[%c0, %c0_6, %c0_7] : memref<1x8x32xf32, #tpu.memory_space<vmem>>, vector<1x8x32xf32>
      %14 = vector.shape_cast %13 : vector<1x8x32xf32> to vector<8x32xf32>
      %c0_8 = arith.constant 0 : index
      %c0_9 = arith.constant 0 : index
      %15 = vector.load %arg7[%c0_8, %c0_9] : memref<32x32xf32, #tpu.memory_space<vmem>>, vector<32x32xf32>
      %cst = arith.constant dense<0.000000e+00> : vector<8x32xf32>
      %16 = tpu.matmul %14, %15, %cst {dimension_numbers = #tpu.dot_dimension_numbers<[1], [0], [0], [1], [0, 0, 1, 1], [], []>} : vector<8x32xf32>, vector<32x32xf32>, vector<8x32xf32> -> vector<8x32xf32>
      %c0_10 = arith.constant 0 : index
      %c0_11 = arith.constant 0 : index
      %17 = vector.load %arg8[%c0_10, %c0_11] : memref<32x32xf32, #tpu.memory_space<vmem>>, vector<32x32xf32>
      %cst_12 = arith.constant dense<0.000000e+00> : vector<8x32xf32>
      %18 = tpu.matmul %14, %17, %cst_12 {dimension_numbers = #tpu.dot_dimension_numbers<[1], [0], [0], [1], [0, 0, 1, 1], [], []>} : vector<8x32xf32>, vector<32x32xf32>, vector<8x32xf32> -> vector<8x32xf32>
      %c0_13 = arith.constant 0 : index
      %c0_14 = arith.constant 0 : index
      %19 = vector.load %arg12[%c0_13, %c0_14] : memref<8x32xf32, #tpu.memory_space<vmem>>, vector<8x32xf32>
      %c8_i32_15 = arith.constant 8 : i32
      %20 = arith.muli %arg1, %c8_i32_15 : i32
      %21 = tpu.iota {dimensions = array<i32: 0>} : vector<8x8xi32>
      %22 = vector.broadcast %20 : i32 to vector<8x8xi32>
      %23 = arith.addi %22, %21 : vector<8x8xi32>
      %c8_i32_16 = arith.constant 8 : i32
      %24 = arith.muli %arg2, %c8_i32_16 : i32
      %25 = tpu.iota {dimensions = array<i32: 1>} : vector<8x8xi32>
      %26 = vector.broadcast %24 : i32 to vector<8x8xi32>
      %27 = arith.addi %26, %25 : vector<8x8xi32>
      %28 = arith.cmpi sle, %27, %23 : vector<8x8xi32>
      %cst_17 = arith.constant 0.000000e+00 : f32
      %cst_18 = arith.constant -1.000000e+30 : f32
      %29 = vector.broadcast %cst_17 : f32 to vector<8x8xf32>
      %30 = vector.broadcast %cst_18 : f32 to vector<8x8xf32>
      %31 = arith.select %28, %29, %30 : vector<8x8xi1>, vector<8x8xf32>
      %32 = vector.extract_strided_slice %19 {offsets = [0, 0], sizes = [8, 8], strides = [1, 1]} : vector<8x32xf32> to vector<8x8xf32>
      %33 = vector.extract_strided_slice %16 {offsets = [0, 0], sizes = [8, 8], strides = [1, 1]} : vector<8x32xf32> to vector<8x8xf32>
      %34 = vector.extract_strided_slice %18 {offsets = [0, 0], sizes = [8, 8], strides = [1, 1]} : vector<8x32xf32> to vector<8x8xf32>
      %35 = tpu.transpose %33, [1, 0] : vector<8x8xf32> -> vector<8x8xf32>
      %cst_19 = arith.constant dense<0.000000e+00> : vector<8x8xf32>
      %36 = tpu.matmul %32, %35, %cst_19 {dimension_numbers = #tpu.dot_dimension_numbers<[1], [0], [0], [1], [0, 0, 1, 1], [], []>} : vector<8x8xf32>, vector<8x8xf32>, vector<8x8xf32> -> vector<8x8xf32>
      %37 = arith.addf %36, %31 : vector<8x8xf32>
      %c0_20 = arith.constant 0 : index
      %c0_21 = arith.constant 0 : index
      %c0_22 = arith.constant 0 : index
      %38 = vector.load %arg13[%c0_20, %c0_21, %c0_22] : memref<4x8x1xf32, #tpu.memory_space<vmem>>, vector<1x8x1xf32>
      %39 = vector.shape_cast %38 : vector<1x8x1xf32> to vector<8x1xf32>
      %cst_23 = arith.constant dense<0xFF800000> : vector<8xf32>
      %40 = vector.multi_reduction <maximumf>, %37, %cst_23 [1] : vector<8x8xf32> to vector<8xf32>
      %41 = vector.shape_cast %40 : vector<8xf32> to vector<8x1xf32>
      %42 = arith.maximumf %39, %41 : vector<8x1xf32>
      %43 = arith.subf %39, %42 : vector<8x1xf32>
      %44 = math.exp %43 : vector<8x1xf32>
      %45 = vector.broadcast %42 : vector<8x1xf32> to vector<8x8xf32>
      %46 = arith.subf %37, %45 : vector<8x8xf32>
      %47 = math.exp %46 : vector<8x8xf32>
      %c0_24 = arith.constant 0 : index
      %c0_25 = arith.constant 0 : index
      %c0_26 = arith.constant 0 : index
      %48 = vector.load %arg14[%c0_24, %c0_25, %c0_26] : memref<4x8x1xf32, #tpu.memory_space<vmem>>, vector<1x8x1xf32>
      %49 = vector.shape_cast %48 : vector<1x8x1xf32> to vector<8x1xf32>
      %50 = arith.mulf %44, %49 : vector<8x1xf32>
      %cst_27 = arith.constant dense<0.000000e+00> : vector<8xf32>
      %51 = vector.multi_reduction <add>, %47, %cst_27 [1] : vector<8x8xf32> to vector<8xf32>
      %52 = vector.shape_cast %51 : vector<8xf32> to vector<8x1xf32>
      %53 = arith.addf %50, %52 : vector<8x1xf32>
      %c0_28 = arith.constant 0 : index
      %c0_29 = arith.constant 0 : index
      %c0_30 = arith.constant 0 : index
      %54 = vector.load %arg14[%c0_28, %c0_29, %c0_30] : memref<4x8x1xf32, #tpu.memory_space<vmem>>, vector<1x8x1xf32>
      %55 = vector.shape_cast %54 : vector<1x8x1xf32> to vector<8x1xf32>
      %56 = vector.shape_cast %53 : vector<8x1xf32> to vector<1x8x1xf32>
      tpu.vector_store %arg14[%c0_28, %c0_29, %c0_30], %56 {strides = array<i32>} : memref<4x8x1xf32, #tpu.memory_space<vmem>>, vector<1x8x1xf32>,
      %c0_31 = arith.constant 0 : index
      %c0_32 = arith.constant 0 : index
      %c0_33 = arith.constant 0 : index
      %57 = vector.load %arg15[%c0_31, %c0_32, %c0_33] : memref<4x8x8xf32, #tpu.memory_space<vmem>>, vector<1x8x8xf32>
      %58 = vector.shape_cast %57 : vector<1x8x8xf32> to vector<8x8xf32>
      %59 = vector.broadcast %44 : vector<8x1xf32> to vector<8x8xf32>
      %60 = arith.mulf %59, %58 : vector<8x8xf32>
      %cst_34 = arith.constant dense<0.000000e+00> : vector<8x8xf32>
      %61 = tpu.matmul %47, %34, %cst_34 {dimension_numbers = #tpu.dot_dimension_numbers<[1], [0], [0], [1], [0, 0, 1, 1], [], []>} : vector<8x8xf32>, vector<8x8xf32>, vector<8x8xf32> -> vector<8x8xf32>
      %62 = arith.addf %60, %61 : vector<8x8xf32>
      %c0_35 = arith.constant 0 : index
      %c0_36 = arith.constant 0 : index
      %c0_37 = arith.constant 0 : index
      %63 = vector.load %arg15[%c0_35, %c0_36, %c0_37] : memref<4x8x8xf32, #tpu.memory_space<vmem>>, vector<1x8x8xf32>
      %64 = vector.shape_cast %63 : vector<1x8x8xf32> to vector<8x8xf32>
      %65 = vector.shape_cast %62 : vector<8x8xf32> to vector<1x8x8xf32>
      tpu.vector_store %arg15[%c0_35, %c0_36, %c0_37], %65 {strides = array<i32>} : memref<4x8x8xf32, #tpu.memory_space<vmem>>, vector<1x8x8xf32>,
      %c0_38 = arith.constant 0 : index
      %c0_39 = arith.constant 0 : index
      %c0_40 = arith.constant 0 : index
      %66 = vector.load %arg13[%c0_38, %c0_39, %c0_40] : memref<4x8x1xf32, #tpu.memory_space<vmem>>, vector<1x8x1xf32>
      %67 = vector.shape_cast %66 : vector<1x8x1xf32> to vector<8x1xf32>
      %68 = vector.shape_cast %42 : vector<8x1xf32> to vector<1x8x1xf32>
      tpu.vector_store %arg13[%c0_38, %c0_39, %c0_40], %68 {strides = array<i32>} : memref<4x8x1xf32, #tpu.memory_space<vmem>>, vector<1x8x1xf32>,
      %69 = vector.extract_strided_slice %19 {offsets = [0, 8], sizes = [8, 8], strides = [1, 1]} : vector<8x32xf32> to vector<8x8xf32>
      %70 = vector.extract_strided_slice %16 {offsets = [0, 8], sizes = [8, 8], strides = [1, 1]} : vector<8x32xf32> to vector<8x8xf32>
      %71 = vector.extract_strided_slice %18 {offsets = [0, 8], sizes = [8, 8], strides = [1, 1]} : vector<8x32xf32> to vector<8x8xf32>
      %72 = tpu.transpose %70, [1, 0] : vector<8x8xf32> -> vector<8x8xf32>
      %cst_41 = arith.constant dense<0.000000e+00> : vector<8x8xf32>
      %73 = tpu.matmul %69, %72, %cst_41 {dimension_numbers = #tpu.dot_dimension_numbers<[1], [0], [0], [1], [0, 0, 1, 1], [], []>} : vector<8x8xf32>, vector<8x8xf32>, vector<8x8xf32> -> vector<8x8xf32>
      %74 = arith.addf %73, %31 : vector<8x8xf32>
      %c1 = arith.constant 1 : index
      %c0_42 = arith.constant 0 : index
      %c0_43 = arith.constant 0 : index
      %75 = vector.load %arg13[%c1, %c0_42, %c0_43] : memref<4x8x1xf32, #tpu.memory_space<vmem>>, vector<1x8x1xf32>
      %76 = vector.shape_cast %75 : vector<1x8x1xf32> to vector<8x1xf32>
      %cst_44 = arith.constant dense<0xFF800000> : vector<8xf32>
      %77 = vector.multi_reduction <maximumf>, %74, %cst_44 [1] : vector<8x8xf32> to vector<8xf32>
      %78 = vector.shape_cast %77 : vector<8xf32> to vector<8x1xf32>
      %79 = arith.maximumf %76, %78 : vector<8x1xf32>
      %80 = arith.subf %76, %79 : vector<8x1xf32>
      %81 = math.exp %80 : vector<8x1xf32>
      %82 = vector.broadcast %79 : vector<8x1xf32> to vector<8x8xf32>
      %83 = arith.subf %74, %82 : vector<8x8xf32>
      %84 = math.exp %83 : vector<8x8xf32>
      %c1_45 = arith.constant 1 : index
      %c0_46 = arith.constant 0 : index
      %c0_47 = arith.constant 0 : index
      %85 = vector.load %arg14[%c1_45, %c0_46, %c0_47] : memref<4x8x1xf32, #tpu.memory_space<vmem>>, vector<1x8x1xf32>
      %86 = vector.shape_cast %85 : vector<1x8x1xf32> to vector<8x1xf32>
      %87 = arith.mulf %81, %86 : vector<8x1xf32>
      %cst_48 = arith.constant dense<0.000000e+00> : vector<8xf32>
      %88 = vector.multi_reduction <add>, %84, %cst_48 [1] : vector<8x8xf32> to vector<8xf32>
      %89 = vector.shape_cast %88 : vector<8xf32> to vector<8x1xf32>
      %90 = arith.addf %87, %89 : vector<8x1xf32>
      %c1_49 = arith.constant 1 : index
      %c0_50 = arith.constant 0 : index
      %c0_51 = arith.constant 0 : index
      %91 = vector.load %arg14[%c1_49, %c0_50, %c0_51] : memref<4x8x1xf32, #tpu.memory_space<vmem>>, vector<1x8x1xf32>
      %92 = vector.shape_cast %91 : vector<1x8x1xf32> to vector<8x1xf32>
      %93 = vector.shape_cast %90 : vector<8x1xf32> to vector<1x8x1xf32>
      tpu.vector_store %arg14[%c1_49, %c0_50, %c0_51], %93 {strides = array<i32>} : memref<4x8x1xf32, #tpu.memory_space<vmem>>, vector<1x8x1xf32>,
      %c1_52 = arith.constant 1 : index
      %c0_53 = arith.constant 0 : index
      %c0_54 = arith.constant 0 : index
      %94 = vector.load %arg15[%c1_52, %c0_53, %c0_54] : memref<4x8x8xf32, #tpu.memory_space<vmem>>, vector<1x8x8xf32>
      %95 = vector.shape_cast %94 : vector<1x8x8xf32> to vector<8x8xf32>
      %96 = vector.broadcast %81 : vector<8x1xf32> to vector<8x8xf32>
      %97 = arith.mulf %96, %95 : vector<8x8xf32>
      %cst_55 = arith.constant dense<0.000000e+00> : vector<8x8xf32>
      %98 = tpu.matmul %84, %71, %cst_55 {dimension_numbers = #tpu.dot_dimension_numbers<[1], [0], [0], [1], [0, 0, 1, 1], [], []>} : vector<8x8xf32>, vector<8x8xf32>, vector<8x8xf32> -> vector<8x8xf32>
      %99 = arith.addf %97, %98 : vector<8x8xf32>
      %c1_56 = arith.constant 1 : index
      %c0_57 = arith.constant 0 : index
      %c0_58 = arith.constant 0 : index
      %100 = vector.load %arg15[%c1_56, %c0_57, %c0_58] : memref<4x8x8xf32, #tpu.memory_space<vmem>>, vector<1x8x8xf32>
      %101 = vector.shape_cast %100 : vector<1x8x8xf32> to vector<8x8xf32>
      %102 = vector.shape_cast %99 : vector<8x8xf32> to vector<1x8x8xf32>
      tpu.vector_store %arg15[%c1_56, %c0_57, %c0_58], %102 {strides = array<i32>} : memref<4x8x8xf32, #tpu.memory_space<vmem>>, vector<1x8x8xf32>,
      %c1_59 = arith.constant 1 : index
      %c0_60 = arith.constant 0 : index
      %c0_61 = arith.constant 0 : index
      %103 = vector.load %arg13[%c1_59, %c0_60, %c0_61] : memref<4x8x1xf32, #tpu.memory_space<vmem>>, vector<1x8x1xf32>
      %104 = vector.shape_cast %103 : vector<1x8x1xf32> to vector<8x1xf32>
      %105 = vector.shape_cast %79 : vector<8x1xf32> to vector<1x8x1xf32>
      tpu.vector_store %arg13[%c1_59, %c0_60, %c0_61], %105 {strides = array<i32>} : memref<4x8x1xf32, #tpu.memory_space<vmem>>, vector<1x8x1xf32>,
      %106 = vector.extract_strided_slice %19 {offsets = [0, 16], sizes = [8, 8], strides = [1, 1]} : vector<8x32xf32> to vector<8x8xf32>
      %107 = vector.extract_strided_slice %16 {offsets = [0, 16], sizes = [8, 8], strides = [1, 1]} : vector<8x32xf32> to vector<8x8xf32>
      %108 = vector.extract_strided_slice %18 {offsets = [0, 16], sizes = [8, 8], strides = [1, 1]} : vector<8x32xf32> to vector<8x8xf32>
      %109 = tpu.transpose %107, [1, 0] : vector<8x8xf32> -> vector<8x8xf32>
      %cst_62 = arith.constant dense<0.000000e+00> : vector<8x8xf32>
      %110 = tpu.matmul %106, %109, %cst_62 {dimension_numbers = #tpu.dot_dimension_numbers<[1], [0], [0], [1], [0, 0, 1, 1], [], []>} : vector<8x8xf32>, vector<8x8xf32>, vector<8x8xf32> -> vector<8x8xf32>
      %111 = arith.addf %110, %31 : vector<8x8xf32>
      %c2 = arith.constant 2 : index
      %c0_63 = arith.constant 0 : index
      %c0_64 = arith.constant 0 : index
      %112 = vector.load %arg13[%c2, %c0_63, %c0_64] : memref<4x8x1xf32, #tpu.memory_space<vmem>>, vector<1x8x1xf32>
      %113 = vector.shape_cast %112 : vector<1x8x1xf32> to vector<8x1xf32>
      %cst_65 = arith.constant dense<0xFF800000> : vector<8xf32>
      %114 = vector.multi_reduction <maximumf>, %111, %cst_65 [1] : vector<8x8xf32> to vector<8xf32>
      %115 = vector.shape_cast %114 : vector<8xf32> to vector<8x1xf32>
      %116 = arith.maximumf %113, %115 : vector<8x1xf32>
      %117 = arith.subf %113, %116 : vector<8x1xf32>
      %118 = math.exp %117 : vector<8x1xf32>
      %119 = vector.broadcast %116 : vector<8x1xf32> to vector<8x8xf32>
      %120 = arith.subf %111, %119 : vector<8x8xf32>
      %121 = math.exp %120 : vector<8x8xf32>
      %c2_66 = arith.constant 2 : index
      %c0_67 = arith.constant 0 : index
      %c0_68 = arith.constant 0 : index
      %122 = vector.load %arg14[%c2_66, %c0_67, %c0_68] : memref<4x8x1xf32, #tpu.memory_space<vmem>>, vector<1x8x1xf32>
      %123 = vector.shape_cast %122 : vector<1x8x1xf32> to vector<8x1xf32>
      %124 = arith.mulf %118, %123 : vector<8x1xf32>
      %cst_69 = arith.constant dense<0.000000e+00> : vector<8xf32>
      %125 = vector.multi_reduction <add>, %121, %cst_69 [1] : vector<8x8xf32> to vector<8xf32>
      %126 = vector.shape_cast %125 : vector<8xf32> to vector<8x1xf32>
      %127 = arith.addf %124, %126 : vector<8x1xf32>
      %c2_70 = arith.constant 2 : index
      %c0_71 = arith.constant 0 : index
      %c0_72 = arith.constant 0 : index
      %128 = vector.load %arg14[%c2_70, %c0_71, %c0_72] : memref<4x8x1xf32, #tpu.memory_space<vmem>>, vector<1x8x1xf32>
      %129 = vector.shape_cast %128 : vector<1x8x1xf32> to vector<8x1xf32>
      %130 = vector.shape_cast %127 : vector<8x1xf32> to vector<1x8x1xf32>
      tpu.vector_store %arg14[%c2_70, %c0_71, %c0_72], %130 {strides = array<i32>} : memref<4x8x1xf32, #tpu.memory_space<vmem>>, vector<1x8x1xf32>,
      %c2_73 = arith.constant 2 : index
      %c0_74 = arith.constant 0 : index
      %c0_75 = arith.constant 0 : index
      %131 = vector.load %arg15[%c2_73, %c0_74, %c0_75] : memref<4x8x8xf32, #tpu.memory_space<vmem>>, vector<1x8x8xf32>
      %132 = vector.shape_cast %131 : vector<1x8x8xf32> to vector<8x8xf32>
      %133 = vector.broadcast %118 : vector<8x1xf32> to vector<8x8xf32>
      %134 = arith.mulf %133, %132 : vector<8x8xf32>
      %cst_76 = arith.constant dense<0.000000e+00> : vector<8x8xf32>
      %135 = tpu.matmul %121, %108, %cst_76 {dimension_numbers = #tpu.dot_dimension_numbers<[1], [0], [0], [1], [0, 0, 1, 1], [], []>} : vector<8x8xf32>, vector<8x8xf32>, vector<8x8xf32> -> vector<8x8xf32>
      %136 = arith.addf %134, %135 : vector<8x8xf32>
      %c2_77 = arith.constant 2 : index
      %c0_78 = arith.constant 0 : index
      %c0_79 = arith.constant 0 : index
      %137 = vector.load %arg15[%c2_77, %c0_78, %c0_79] : memref<4x8x8xf32, #tpu.memory_space<vmem>>, vector<1x8x8xf32>
      %138 = vector.shape_cast %137 : vector<1x8x8xf32> to vector<8x8xf32>
      %139 = vector.shape_cast %136 : vector<8x8xf32> to vector<1x8x8xf32>
      tpu.vector_store %arg15[%c2_77, %c0_78, %c0_79], %139 {strides = array<i32>} : memref<4x8x8xf32, #tpu.memory_space<vmem>>, vector<1x8x8xf32>,
      %c2_80 = arith.constant 2 : index
      %c0_81 = arith.constant 0 : index
      %c0_82 = arith.constant 0 : index
      %140 = vector.load %arg13[%c2_80, %c0_81, %c0_82] : memref<4x8x1xf32, #tpu.memory_space<vmem>>, vector<1x8x1xf32>
      %141 = vector.shape_cast %140 : vector<1x8x1xf32> to vector<8x1xf32>
      %142 = vector.shape_cast %116 : vector<8x1xf32> to vector<1x8x1xf32>
      tpu.vector_store %arg13[%c2_80, %c0_81, %c0_82], %142 {strides = array<i32>} : memref<4x8x1xf32, #tpu.memory_space<vmem>>, vector<1x8x1xf32>,
      %143 = vector.extract_strided_slice %19 {offsets = [0, 24], sizes = [8, 8], strides = [1, 1]} : vector<8x32xf32> to vector<8x8xf32>
      %144 = vector.extract_strided_slice %16 {offsets = [0, 24], sizes = [8, 8], strides = [1, 1]} : vector<8x32xf32> to vector<8x8xf32>
      %145 = vector.extract_strided_slice %18 {offsets = [0, 24], sizes = [8, 8], strides = [1, 1]} : vector<8x32xf32> to vector<8x8xf32>
      %146 = tpu.transpose %144, [1, 0] : vector<8x8xf32> -> vector<8x8xf32>
      %cst_83 = arith.constant dense<0.000000e+00> : vector<8x8xf32>
      %147 = tpu.matmul %143, %146, %cst_83 {dimension_numbers = #tpu.dot_dimension_numbers<[1], [0], [0], [1], [0, 0, 1, 1], [], []>} : vector<8x8xf32>, vector<8x8xf32>, vector<8x8xf32> -> vector<8x8xf32>
      %148 = arith.addf %147, %31 : vector<8x8xf32>
      %c3 = arith.constant 3 : index
      %c0_84 = arith.constant 0 : index
      %c0_85 = arith.constant 0 : index
      %149 = vector.load %arg13[%c3, %c0_84, %c0_85] : memref<4x8x1xf32, #tpu.memory_space<vmem>>, vector<1x8x1xf32>
      %150 = vector.shape_cast %149 : vector<1x8x1xf32> to vector<8x1xf32>
      %cst_86 = arith.constant dense<0xFF800000> : vector<8xf32>
      %151 = vector.multi_reduction <maximumf>, %148, %cst_86 [1] : vector<8x8xf32> to vector<8xf32>
      %152 = vector.shape_cast %151 : vector<8xf32> to vector<8x1xf32>
      %153 = arith.maximumf %150, %152 : vector<8x1xf32>
      %154 = arith.subf %150, %153 : vector<8x1xf32>
      %155 = math.exp %154 : vector<8x1xf32>
      %156 = vector.broadcast %153 : vector<8x1xf32> to vector<8x8xf32>
      %157 = arith.subf %148, %156 : vector<8x8xf32>
      %158 = math.exp %157 : vector<8x8xf32>
      %c3_87 = arith.constant 3 : index
      %c0_88 = arith.constant 0 : index
      %c0_89 = arith.constant 0 : index
      %159 = vector.load %arg14[%c3_87, %c0_88, %c0_89] : memref<4x8x1xf32, #tpu.memory_space<vmem>>, vector<1x8x1xf32>
      %160 = vector.shape_cast %159 : vector<1x8x1xf32> to vector<8x1xf32>
      %161 = arith.mulf %155, %160 : vector<8x1xf32>
      %cst_90 = arith.constant dense<0.000000e+00> : vector<8xf32>
      %162 = vector.multi_reduction <add>, %158, %cst_90 [1] : vector<8x8xf32> to vector<8xf32>
      %163 = vector.shape_cast %162 : vector<8xf32> to vector<8x1xf32>
      %164 = arith.addf %161, %163 : vector<8x1xf32>
      %c3_91 = arith.constant 3 : index
      %c0_92 = arith.constant 0 : index
      %c0_93 = arith.constant 0 : index
      %165 = vector.load %arg14[%c3_91, %c0_92, %c0_93] : memref<4x8x1xf32, #tpu.memory_space<vmem>>, vector<1x8x1xf32>
      %166 = vector.shape_cast %165 : vector<1x8x1xf32> to vector<8x1xf32>
      %167 = vector.shape_cast %164 : vector<8x1xf32> to vector<1x8x1xf32>
      tpu.vector_store %arg14[%c3_91, %c0_92, %c0_93], %167 {strides = array<i32>} : memref<4x8x1xf32, #tpu.memory_space<vmem>>, vector<1x8x1xf32>,
      %c3_94 = arith.constant 3 : index
      %c0_95 = arith.constant 0 : index
      %c0_96 = arith.constant 0 : index
      %168 = vector.load %arg15[%c3_94, %c0_95, %c0_96] : memref<4x8x8xf32, #tpu.memory_space<vmem>>, vector<1x8x8xf32>
      %169 = vector.shape_cast %168 : vector<1x8x8xf32> to vector<8x8xf32>
      %170 = vector.broadcast %155 : vector<8x1xf32> to vector<8x8xf32>
      %171 = arith.mulf %170, %169 : vector<8x8xf32>
      %cst_97 = arith.constant dense<0.000000e+00> : vector<8x8xf32>
      %172 = tpu.matmul %158, %145, %cst_97 {dimension_numbers = #tpu.dot_dimension_numbers<[1], [0], [0], [1], [0, 0, 1, 1], [], []>} : vector<8x8xf32>, vector<8x8xf32>, vector<8x8xf32> -> vector<8x8xf32>
      %173 = arith.addf %171, %172 : vector<8x8xf32>
      %c3_98 = arith.constant 3 : index
      %c0_99 = arith.constant 0 : index
      %c0_100 = arith.constant 0 : index
      %174 = vector.load %arg15[%c3_98, %c0_99, %c0_100] : memref<4x8x8xf32, #tpu.memory_space<vmem>>, vector<1x8x8xf32>
      %175 = vector.shape_cast %174 : vector<1x8x8xf32> to vector<8x8xf32>
      %176 = vector.shape_cast %173 : vector<8x8xf32> to vector<1x8x8xf32>
      tpu.vector_store %arg15[%c3_98, %c0_99, %c0_100], %176 {strides = array<i32>} : memref<4x8x8xf32, #tpu.memory_space<vmem>>, vector<1x8x8xf32>,
      %c3_101 = arith.constant 3 : index
      %c0_102 = arith.constant 0 : index
      %c0_103 = arith.constant 0 : index
      %177 = vector.load %arg13[%c3_101, %c0_102, %c0_103] : memref<4x8x1xf32, #tpu.memory_space<vmem>>, vector<1x8x1xf32>
      %178 = vector.shape_cast %177 : vector<1x8x1xf32> to vector<8x1xf32>
      %179 = vector.shape_cast %153 : vector<8x1xf32> to vector<1x8x1xf32>
      tpu.vector_store %arg13[%c3_101, %c0_102, %c0_103], %179 {strides = array<i32>} : memref<4x8x1xf32, #tpu.memory_space<vmem>>, vector<1x8x1xf32>,
    } else {
    }
    %c0_i32_4 = arith.constant 0 : i32
    %10 = arith.cmpi eq, %arg2, %c0_i32_4 : i32
    %11 = arith.extui %10 : i1 to i32
    %c0_i32_5 = arith.constant 0 : i32
    %12 = arith.cmpi ne, %11, %c0_i32_5 : i32
    scf.if %12 {
      %cst = arith.constant 0.000000e+00 : f32
      %13 = vector.broadcast %cst : f32 to vector<8x32xf32>
      %c0 = arith.constant 0 : index
      %c0_6 = arith.constant 0 : index
      %c0_7 = arith.constant 0 : index
      %14 = vector.load %arg14[%c0, %c0_6, %c0_7] : memref<4x8x1xf32, #tpu.memory_space<vmem>>, vector<1x8x1xf32>
      %15 = vector.shape_cast %14 : vector<1x8x1xf32> to vector<8x1xf32>
      %16 = tpu.reciprocal %15 : vector<8x1xf32> -> vector<8x1xf32>
      %c0_8 = arith.constant 0 : index
      %c0_9 = arith.constant 0 : index
      %c0_10 = arith.constant 0 : index
      %17 = vector.load %arg15[%c0_8, %c0_9, %c0_10] : memref<4x8x8xf32, #tpu.memory_space<vmem>>, vector<1x8x8xf32>
      %18 = vector.shape_cast %17 : vector<1x8x8xf32> to vector<8x8xf32>
      %19 = vector.broadcast %16 : vector<8x1xf32> to vector<8x8xf32>
      %20 = arith.mulf %18, %19 : vector<8x8xf32>
      %c0_11 = arith.constant 0 : index
      %c0_12 = arith.constant 0 : index
      %21 = vector.load %arg9[%c0_11, %c0_12] : memref<32x32xf32, #tpu.memory_space<vmem>>, vector<8x32xf32>
      %cst_13 = arith.constant dense<0.000000e+00> : vector<8x32xf32>
      %22 = tpu.matmul %20, %21, %cst_13 {dimension_numbers = #tpu.dot_dimension_numbers<[1], [0], [0], [1], [0, 0, 1, 1], [], []>} : vector<8x8xf32>, vector<8x32xf32>, vector<8x32xf32> -> vector<8x32xf32>
      %23 = arith.addf %13, %22 : vector<8x32xf32>
      %c1 = arith.constant 1 : index
      %c0_14 = arith.constant 0 : index
      %c0_15 = arith.constant 0 : index
      %24 = vector.load %arg14[%c1, %c0_14, %c0_15] : memref<4x8x1xf32, #tpu.memory_space<vmem>>, vector<1x8x1xf32>
      %25 = vector.shape_cast %24 : vector<1x8x1xf32> to vector<8x1xf32>
      %26 = tpu.reciprocal %25 : vector<8x1xf32> -> vector<8x1xf32>
      %c1_16 = arith.constant 1 : index
      %c0_17 = arith.constant 0 : index
      %c0_18 = arith.constant 0 : index
      %27 = vector.load %arg15[%c1_16, %c0_17, %c0_18] : memref<4x8x8xf32, #tpu.memory_space<vmem>>, vector<1x8x8xf32>
      %28 = vector.shape_cast %27 : vector<1x8x8xf32> to vector<8x8xf32>
      %29 = vector.broadcast %26 : vector<8x1xf32> to vector<8x8xf32>
      %30 = arith.mulf %28, %29 : vector<8x8xf32>
      %c8 = arith.constant 8 : index
      %c0_19 = arith.constant 0 : index
      %31 = vector.load %arg9[%c8, %c0_19] : memref<32x32xf32, #tpu.memory_space<vmem>>, vector<8x32xf32>
      %cst_20 = arith.constant dense<0.000000e+00> : vector<8x32xf32>
      %32 = tpu.matmul %30, %31, %cst_20 {dimension_numbers = #tpu.dot_dimension_numbers<[1], [0], [0], [1], [0, 0, 1, 1], [], []>} : vector<8x8xf32>, vector<8x32xf32>, vector<8x32xf32> -> vector<8x32xf32>
      %33 = arith.addf %23, %32 : vector<8x32xf32>
      %c2 = arith.constant 2 : index
      %c0_21 = arith.constant 0 : index
      %c0_22 = arith.constant 0 : index
      %34 = vector.load %arg14[%c2, %c0_21, %c0_22] : memref<4x8x1xf32, #tpu.memory_space<vmem>>, vector<1x8x1xf32>
      %35 = vector.shape_cast %34 : vector<1x8x1xf32> to vector<8x1xf32>
      %36 = tpu.reciprocal %35 : vector<8x1xf32> -> vector<8x1xf32>
      %c2_23 = arith.constant 2 : index
      %c0_24 = arith.constant 0 : index
      %c0_25 = arith.constant 0 : index
      %37 = vector.load %arg15[%c2_23, %c0_24, %c0_25] : memref<4x8x8xf32, #tpu.memory_space<vmem>>, vector<1x8x8xf32>
      %38 = vector.shape_cast %37 : vector<1x8x8xf32> to vector<8x8xf32>
      %39 = vector.broadcast %36 : vector<8x1xf32> to vector<8x8xf32>
      %40 = arith.mulf %38, %39 : vector<8x8xf32>
      %c16 = arith.constant 16 : index
      %c0_26 = arith.constant 0 : index
      %41 = vector.load %arg9[%c16, %c0_26] : memref<32x32xf32, #tpu.memory_space<vmem>>, vector<8x32xf32>
      %cst_27 = arith.constant dense<0.000000e+00> : vector<8x32xf32>
      %42 = tpu.matmul %40, %41, %cst_27 {dimension_numbers = #tpu.dot_dimension_numbers<[1], [0], [0], [1], [0, 0, 1, 1], [], []>} : vector<8x8xf32>, vector<8x32xf32>, vector<8x32xf32> -> vector<8x32xf32>
      %43 = arith.addf %33, %42 : vector<8x32xf32>
      %c3 = arith.constant 3 : index
      %c0_28 = arith.constant 0 : index
      %c0_29 = arith.constant 0 : index
      %44 = vector.load %arg14[%c3, %c0_28, %c0_29] : memref<4x8x1xf32, #tpu.memory_space<vmem>>, vector<1x8x1xf32>
      %45 = vector.shape_cast %44 : vector<1x8x1xf32> to vector<8x1xf32>
      %46 = tpu.reciprocal %45 : vector<8x1xf32> -> vector<8x1xf32>
      %c3_30 = arith.constant 3 : index
      %c0_31 = arith.constant 0 : index
      %c0_32 = arith.constant 0 : index
      %47 = vector.load %arg15[%c3_30, %c0_31, %c0_32] : memref<4x8x8xf32, #tpu.memory_space<vmem>>, vector<1x8x8xf32>
      %48 = vector.shape_cast %47 : vector<1x8x8xf32> to vector<8x8xf32>
      %49 = vector.broadcast %46 : vector<8x1xf32> to vector<8x8xf32>
      %50 = arith.mulf %48, %49 : vector<8x8xf32>
      %c24 = arith.constant 24 : index
      %c0_33 = arith.constant 0 : index
      %51 = vector.load %arg9[%c24, %c0_33] : memref<32x32xf32, #tpu.memory_space<vmem>>, vector<8x32xf32>
      %cst_34 = arith.constant dense<0.000000e+00> : vector<8x32xf32>
      %52 = tpu.matmul %50, %51, %cst_34 {dimension_numbers = #tpu.dot_dimension_numbers<[1], [0], [0], [1], [0, 0, 1, 1], [], []>} : vector<8x8xf32>, vector<8x32xf32>, vector<8x32xf32> -> vector<8x32xf32>
      %53 = arith.addf %43, %52 : vector<8x32xf32>
      %c0_35 = arith.constant 0 : index
      %c0_36 = arith.constant 0 : index
      %54 = vector.load %arg10[%c0_35, %c0_36] : memref<1x32xf32, #tpu.memory_space<vmem>>, vector<1x32xf32>
      %55 = vector.broadcast %54 : vector<1x32xf32> to vector<8x32xf32>
      %56 = arith.addf %53, %55 : vector<8x32xf32>
      %c0_37 = arith.constant 0 : index
      %c0_38 = arith.constant 0 : index
      %c0_39 = arith.constant 0 : index
      %57 = vector.load %arg11[%c0_37, %c0_38, %c0_39] : memref<1x8x32xf32, #tpu.memory_space<vmem>>, vector<1x8x32xf32>
      %58 = vector.shape_cast %57 : vector<1x8x32xf32> to vector<8x32xf32>
      %59 = vector.shape_cast %56 : vector<8x32xf32> to vector<1x8x32xf32>
      tpu.vector_store %arg11[%c0_37, %c0_38, %c0_39], %59 {strides = array<i32>} : memref<1x8x32xf32, #tpu.memory_space<vmem>>, vector<1x8x32xf32>,
    } else {
    }
    return
  }
  func.func @transform_0(%arg0: i32, %arg1: i32, %arg2: i32) -> i32 {
    %c0_i32 = arith.constant 0 : i32
    %c0_i32_0 = arith.constant 0 : i32
    return %c0_i32 : i32
  }
  func.func @transform_1(%arg0: i32, %arg1: i32, %arg2: i32) -> (i32, i32, i32) {
    %c0_i32 = arith.constant 0 : i32
    %c0_i32_0 = arith.constant 0 : i32
    return %arg0, %arg1, %c0_i32 : i32, i32, i32
  }
  func.func @transform_2(%arg0: i32, %arg1: i32, %arg2: i32) -> (i32, i32, i32) {
    %c0_i32 = arith.constant 0 : i32
    %c0_i32_0 = arith.constant 0 : i32
    return %arg0, %arg2, %c0_i32 : i32, i32, i32
  }
  func.func @transform_3(%arg0: i32, %arg1: i32, %arg2: i32) -> (i32, i32) {
    %c0_i32 = arith.constant 0 : i32
    %c0_i32_0 = arith.constant 0 : i32
    %c0_i32_1 = arith.constant 0 : i32
    return %c0_i32, %c0_i32_0 : i32, i32
  }
  func.func @transform_4(%arg0: i32, %arg1: i32, %arg2: i32) -> (i32, i32) {
    %c0_i32 = arith.constant 0 : i32
    %c0_i32_0 = arith.constant 0 : i32
    %c0_i32_1 = arith.constant 0 : i32
    return %c0_i32, %c0_i32_0 : i32, i32
  }
  func.func @transform_5(%arg0: i32, %arg1: i32, %arg2: i32) -> (i32, i32) {
    %c0_i32 = arith.constant 0 : i32
    %c0_i32_0 = arith.constant 0 : i32
    %c0_i32_1 = arith.constant 0 : i32
    return %c0_i32, %c0_i32_0 : i32, i32
  }
  func.func @transform_6(%arg0: i32, %arg1: i32, %arg2: i32) -> (i32, i32) {
    %c0_i32 = arith.constant 0 : i32
    %c0_i32_0 = arith.constant 0 : i32
    %c0_i32_1 = arith.constant 0 : i32
    return %c0_i32, %c0_i32_0 : i32, i32
  }
  func.func @transform_7(%arg0: i32, %arg1: i32, %arg2: i32) -> (i32, i32) {
    %c0_i32 = arith.constant 0 : i32
    %c0_i32_0 = arith.constant 0 : i32
    %c0_i32_1 = arith.constant 0 : i32
    return %c0_i32, %c0_i32_0 : i32, i32
  }
  func.func @transform_8(%arg0: i32, %arg1: i32, %arg2: i32) -> (i32, i32, i32) {
    %c0_i32 = arith.constant 0 : i32
    %c0_i32_0 = arith.constant 0 : i32
    return %arg0, %arg1, %c0_i32 : i32, i32, i32
  }
}

module attributes {stable_mosaic.version = 11 : i64} {
  func.func @_mha_flash_kernel(%arg0: i32, %arg1: i32, %arg2: i32, %arg3: memref<1xi32, #tpu.memory_space<smem>>, %arg4: memref<1x8x32xf32, #tpu.memory_space<vmem>>, %arg5: memref<1x8x32xf32, #tpu.memory_space<vmem>>, %arg6: memref<32x32xf32, #tpu.memory_space<vmem>>, %arg7: memref<32x32xf32, #tpu.memory_space<vmem>>, %arg8: memref<32x32xf32, #tpu.memory_space<vmem>>, %arg9: memref<32x32xf32, #tpu.memory_space<vmem>>, %arg10: memref<1x32xf32, #tpu.memory_space<vmem>>, %arg11: memref<1x8x32xf32, #tpu.memory_space<vmem>>, %arg12: memref<8x32xf32, #tpu.memory_space<vmem>>, %arg13: memref<4x8x1xf32, #tpu.memory_space<vmem>>, %arg14: memref<4x8x1xf32, #tpu.memory_space<vmem>>, %arg15: memref<4x8x8xf32, #tpu.memory_space<vmem>>) attributes {dimension_semantics = [#tpu.dimension_semantics<parallel>, #tpu.dimension_semantics<parallel>, #tpu.dimension_semantics<arbitrary>], iteration_bounds = array<i64: 2, 1, 1>, scalar_prefetch = 0 : i64, scratch_operands = 4 : i64, tpu.core_type = #tpu.core_type<tc>, window_params = [{transform_indices = @transform_0, window_bounds = array<i64: 1>}, {transform_indices = @transform_1, window_bounds = array<i64: 1, 8, 32>}, {transform_indices = @transform_2, window_bounds = array<i64: 1, 8, 32>}, {pipeline_mode = #tpu.pipeline_mode<synchronous>, transform_indices = @transform_3, window_bounds = array<i64: 32, 32>}, {pipeline_mode = #tpu.pipeline_mode<synchronous>, transform_indices = @transform_4, window_bounds = array<i64: 32, 32>}, {pipeline_mode = #tpu.pipeline_mode<synchronous>, transform_indices = @transform_5, window_bounds = array<i64: 32, 32>}, {pipeline_mode = #tpu.pipeline_mode<synchronous>, transform_indices = @transform_6, window_bounds = array<i64: 32, 32>}, {pipeline_mode = #tpu.pipeline_mode<synchronous>, transform_indices = @transform_7, window_bounds = array<i64: 1, 32>}, {transform_indices = @transform_8, window_bounds = array<i64: 1, 8, 32>}]} {
    %c0_i32 = arith.constant 0 : i32
    %0 = arith.cmpi eq, %arg2, %c0_i32 : i32
    %1 = arith.extui %0 : i1 to i32
    %c0_i32_0 = arith.constant 0 : i32
    %2 = arith.cmpi ne, %1, %c0_i32_0 : i32
    scf.if %2 {
      %c0 = arith.constant 0 : index
      %c0_6 = arith.constant 0 : index
      %c0_7 = arith.constant 0 : index
      %13 = vector.load %arg4[%c0, %c0_6, %c0_7] : memref<1x8x32xf32, #tpu.memory_space<vmem>>, vector<1x8x32xf32>
      %14 = vector.shape_cast %13 : vector<1x8x32xf32> to vector<8x32xf32>
      %c0_8 = arith.constant 0 : index
      %c0_9 = arith.constant 0 : index
      %15 = vector.load %arg6[%c0_8, %c0_9] : memref<32x32xf32, #tpu.memory_space<vmem>>, vector<32x32xf32>
      %cst = arith.constant dense<0.000000e+00> : vector<8x32xf32>
      %16 = tpu.matmul %14, %15, %cst {dimension_numbers = #tpu.dot_dimension_numbers<[1], [0], [0], [1], [0, 0, 1, 1], [], []>} : vector<8x32xf32>, vector<32x32xf32>, vector<8x32xf32> -> vector<8x32xf32>
      %cst_10 = arith.constant 0.176776692 : f32
      %17 = vector.broadcast %cst_10 : f32 to vector<8x32xf32>
      %18 = arith.mulf %16, %17 : vector<8x32xf32>
      %c0_11 = arith.constant 0 : index
      %c0_12 = arith.constant 0 : index
      %19 = vector.load %arg12[%c0_11, %c0_12] : memref<8x32xf32, #tpu.memory_space<vmem>>, vector<8x32xf32>
      tpu.vector_store %arg12[%c0_11, %c0_12], %18 {strides = array<i32>} : memref<8x32xf32, #tpu.memory_space<vmem>>, vector<8x32xf32>,
      %cst_13 = arith.constant -1.000000e+30 : f32
      %20 = vector.broadcast %cst_13 : f32 to vector<4x8x1xf32>
      %c0_14 = arith.constant 0 : index
      %c0_15 = arith.constant 0 : index
      %c0_16 = arith.constant 0 : index
      %21 = vector.load %arg13[%c0_14, %c0_15, %c0_16] : memref<4x8x1xf32, #tpu.memory_space<vmem>>, vector<4x8x1xf32>
      tpu.vector_store %arg13[%c0_14, %c0_15, %c0_16], %20 {strides = array<i32>} : memref<4x8x1xf32, #tpu.memory_space<vmem>>, vector<4x8x1xf32>,
      %cst_17 = arith.constant 0.000000e+00 : f32
      %22 = vector.broadcast %cst_17 : f32 to vector<4x8x1xf32>
      %c0_18 = arith.constant 0 : index
      %c0_19 = arith.constant 0 : index
      %c0_20 = arith.constant 0 : index
      %23 = vector.load %arg14[%c0_18, %c0_19, %c0_20] : memref<4x8x1xf32, #tpu.memory_space<vmem>>, vector<4x8x1xf32>
      tpu.vector_store %arg14[%c0_18, %c0_19, %c0_20], %22 {strides = array<i32>} : memref<4x8x1xf32, #tpu.memory_space<vmem>>, vector<4x8x1xf32>,
      %cst_21 = arith.constant 0.000000e+00 : f32
      %24 = vector.broadcast %cst_21 : f32 to vector<4x8x8xf32>
      %c0_22 = arith.constant 0 : index
      %c0_23 = arith.constant 0 : index
      %c0_24 = arith.constant 0 : index
      %25 = vector.load %arg15[%c0_22, %c0_23, %c0_24] : memref<4x8x8xf32, #tpu.memory_space<vmem>>, vector<4x8x8xf32>
      tpu.vector_store %arg15[%c0_22, %c0_23, %c0_24], %24 {strides = array<i32>} : memref<4x8x8xf32, #tpu.memory_space<vmem>>, vector<4x8x8xf32>,
    } else {
    }
    %c1_i32 = arith.constant 1 : i32
    %3 = arith.addi %arg1, %c1_i32 : i32
    %c8_i32 = arith.constant 8 : i32
    %4 = arith.muli %3, %c8_i32 : i32
    %c1_i32_1 = arith.constant 1 : i32
    %5 = arith.subi %4, %c1_i32_1 : i32
    %c8_i32_2 = arith.constant 8 : i32
    %6 = arith.muli %arg2, %c8_i32_2 : i32
    %7 = arith.cmpi sle, %6, %5 : i32
    %8 = arith.extui %7 : i1 to i32
    %c0_i32_3 = arith.constant 0 : i32
    %9 = arith.cmpi ne, %8, %c0_i32_3 : i32
    scf.if %9 {
      %c0 = arith.constant 0 : index
      %c0_6 = arith.constant 0 : index
      %c0_7 = arith.constant 0 : index
      %13 = vector.load %arg5[%c0, %c0_6, %c0_7] : memref<1x8x32xf32, #tpu.memory_space<vmem>>, vector<1x8x32xf32>
      %14 = vector.shape_cast %13 : vector<1x8x32xf32> to vector<8x32xf32>
      %c0_8 = arith.constant 0 : index
      %c0_9 = arith.constant 0 : index
      %15 = vector.load %arg7[%c0_8, %c0_9] : memref<32x32xf32, #tpu.memory_space<vmem>>, vector<32x32xf32>
      %cst = arith.constant dense<0.000000e+00> : vector<8x32xf32>
      %16 = tpu.matmul %14, %15, %cst {dimension_numbers = #tpu.dot_dimension_numbers<[1], [0], [0], [1], [0, 0, 1, 1], [], []>} : vector<8x32xf32>, vector<32x32xf32>, vector<8x32xf32> -> vector<8x32xf32>
      %c0_10 = arith.constant 0 : index
      %c0_11 = arith.constant 0 : index
      %17 = vector.load %arg8[%c0_10, %c0_11] : memref<32x32xf32, #tpu.memory_space<vmem>>, vector<32x32xf32>
      %cst_12 = arith.constant dense<0.000000e+00> : vector<8x32xf32>
      %18 = tpu.matmul %14, %17, %cst_12 {dimension_numbers = #tpu.dot_dimension_numbers<[1], [0], [0], [1], [0, 0, 1, 1], [], []>} : vector<8x32xf32>, vector<32x32xf32>, vector<8x32xf32> -> vector<8x32xf32>
      %c0_13 = arith.constant 0 : index
      %c0_14 = arith.constant 0 : index
      %19 = vector.load %arg12[%c0_13, %c0_14] : memref<8x32xf32, #tpu.memory_space<vmem>>, vector<8x32xf32>
      %c8_i32_15 = arith.constant 8 : i32
      %20 = arith.muli %arg1, %c8_i32_15 : i32
      %21 = tpu.iota {dimensions = array<i32: 0>} : vector<8x8xi32>
      %22 = vector.broadcast %20 : i32 to vector<8x8xi32>
      %23 = arith.addi %22, %21 : vector<8x8xi32>
      %c8_i32_16 = arith.constant 8 : i32
      %24 = arith.muli %arg2, %c8_i32_16 : i32
      %25 = tpu.iota {dimensions = array<i32: 1>} : vector<8x8xi32>
      %26 = vector.broadcast %24 : i32 to vector<8x8xi32>
      %27 = arith.addi %26, %25 : vector<8x8xi32>
      %28 = arith.cmpi sle, %27, %23 : vector<8x8xi32>
      %cst_17 = arith.constant 0.000000e+00 : f32
      %cst_18 = arith.constant -1.000000e+30 : f32
      %29 = vector.broadcast %cst_17 : f32 to vector<8x8xf32>
      %30 = vector.broadcast %cst_18 : f32 to vector<8x8xf32>
      %31 = arith.select %28, %29, %30 : vector<8x8xi1>, vector<8x8xf32>
      %32 = vector.extract_strided_slice %19 {offsets = [0, 0], sizes = [8, 8], strides = [1, 1]} : vector<8x32xf32> to vector<8x8xf32>
      %33 = vector.extract_strided_slice %16 {offsets = [0, 0], sizes = [8, 8], strides = [1, 1]} : vector<8x32xf32> to vector<8x8xf32>
      %34 = vector.extract_strided_slice %18 {offsets = [0, 0], sizes = [8, 8], strides = [1, 1]} : vector<8x32xf32> to vector<8x8xf32>
      %35 = tpu.transpose %33, [1, 0] : vector<8x8xf32> -> vector<8x8xf32>
      %cst_19 = arith.constant dense<0.000000e+00> : vector<8x8xf32>
      %36 = tpu.matmul %32, %35, %cst_19 {dimension_numbers = #tpu.dot_dimension_numbers<[1], [0], [0], [1], [0, 0, 1, 1], [], []>} : vector<8x8xf32>, vector<8x8xf32>, vector<8x8xf32> -> vector<8x8xf32>
      %37 = arith.addf %36, %31 : vector<8x8xf32>
      %c0_20 = arith.constant 0 : index
      %c0_21 = arith.constant 0 : index
      %c0_22 = arith.constant 0 : index
      %38 = vector.load %arg13[%c0_20, %c0_21, %c0_22] : memref<4x8x1xf32, #tpu.memory_space<vmem>>, vector<1x8x1xf32>
      %39 = vector.shape_cast %38 : vector<1x8x1xf32> to vector<8x1xf32>
      %cst_23 = arith.constant dense<0xFF800000> : vector<8xf32>
      %40 = vector.multi_reduction <maximumf>, %37, %cst_23 [1] : vector<8x8xf32> to vector<8xf32>
      %41 = vector.shape_cast %40 : vector<8xf32> to vector<8x1xf32>
      %42 = arith.maximumf %39, %41 : vector<8x1xf32>
      %43 = arith.subf %39, %42 : vector<8x1xf32>
      %44 = math.exp %43 : vector<8x1xf32>
      %45 = vector.broadcast %42 : vector<8x1xf32> to vector<8x8xf32>
      %46 = arith.subf %37, %45 : vector<8x8xf32>
      %47 = math.exp %46 : vector<8x8xf32>
      %c0_24 = arith.constant 0 : index
      %c0_25 = arith.constant 0 : index
      %c0_26 = arith.constant 0 : index
      %48 = vector.load %arg14[%c0_24, %c0_25, %c0_26] : memref<4x8x1xf32, #tpu.memory_space<vmem>>, vector<1x8x1xf32>
      %49 = vector.shape_cast %48 : vector<1x8x1xf32> to vector<8x1xf32>
      %50 = arith.mulf %44, %49 : vector<8x1xf32>
      %cst_27 = arith.constant dense<0.000000e+00> : vector<8xf32>
      %51 = vector.multi_reduction <add>, %47, %cst_27 [1] : vector<8x8xf32> to vector<8xf32>
      %52 = vector.shape_cast %51 : vector<8xf32> to vector<8x1xf32>
      %53 = arith.addf %50, %52 : vector<8x1xf32>
      %c0_28 = arith.constant 0 : index
      %c0_29 = arith.constant 0 : index
      %c0_30 = arith.constant 0 : index
      %54 = vector.load %arg14[%c0_28, %c0_29, %c0_30] : memref<4x8x1xf32, #tpu.memory_space<vmem>>, vector<1x8x1xf32>
      %55 = vector.shape_cast %54 : vector<1x8x1xf32> to vector<8x1xf32>
      %56 = vector.shape_cast %53 : vector<8x1xf32> to vector<1x8x1xf32>
      tpu.vector_store %arg14[%c0_28, %c0_29, %c0_30], %56 {strides = array<i32>} : memref<4x8x1xf32, #tpu.memory_space<vmem>>, vector<1x8x1xf32>,
      %c0_31 = arith.constant 0 : index
      %c0_32 = arith.constant 0 : index
      %c0_33 = arith.constant 0 : index
      %57 = vector.load %arg15[%c0_31, %c0_32, %c0_33] : memref<4x8x8xf32, #tpu.memory_space<vmem>>, vector<1x8x8xf32>
      %58 = vector.shape_cast %57 : vector<1x8x8xf32> to vector<8x8xf32>
      %59 = vector.broadcast %44 : vector<8x1xf32> to vector<8x8xf32>
      %60 = arith.mulf %59, %58 : vector<8x8xf32>
      %cst_34 = arith.constant dense<0.000000e+00> : vector<8x8xf32>
      %61 = tpu.matmul %47, %34, %cst_34 {dimension_numbers = #tpu.dot_dimension_numbers<[1], [0], [0], [1], [0, 0, 1, 1], [], []>} : vector<8x8xf32>, vector<8x8xf32>, vector<8x8xf32> -> vector<8x8xf32>
      %62 = arith.addf %60, %61 : vector<8x8xf32>
      %c0_35 = arith.constant 0 : index
      %c0_36 = arith.constant 0 : index
      %c0_37 = arith.constant 0 : index
      %63 = vector.load %arg15[%c0_35, %c0_36, %c0_37] : memref<4x8x8xf32, #tpu.memory_space<vmem>>, vector<1x8x8xf32>
      %64 = vector.shape_cast %63 : vector<1x8x8xf32> to vector<8x8xf32>
      %65 = vector.shape_cast %62 : vector<8x8xf32> to vector<1x8x8xf32>
      tpu.vector_store %arg15[%c0_35, %c0_36, %c0_37], %65 {strides = array<i32>} : memref<4x8x8xf32, #tpu.memory_space<vmem>>, vector<1x8x8xf32>,
      %c0_38 = arith.constant 0 : index
      %c0_39 = arith.constant 0 : index
      %c0_40 = arith.constant 0 : index
      %66 = vector.load %arg13[%c0_38, %c0_39, %c0_40] : memref<4x8x1xf32, #tpu.memory_space<vmem>>, vector<1x8x1xf32>
      %67 = vector.shape_cast %66 : vector<1x8x1xf32> to vector<8x1xf32>
      %68 = vector.shape_cast %42 : vector<8x1xf32> to vector<1x8x1xf32>
      tpu.vector_store %arg13[%c0_38, %c0_39, %c0_40], %68 {strides = array<i32>} : memref<4x8x1xf32, #tpu.memory_space<vmem>>, vector<1x8x1xf32>,
      %69 = vector.extract_strided_slice %19 {offsets = [0, 8], sizes = [8, 8], strides = [1, 1]} : vector<8x32xf32> to vector<8x8xf32>
      %70 = vector.extract_strided_slice %16 {offsets = [0, 8], sizes = [8, 8], strides = [1, 1]} : vector<8x32xf32> to vector<8x8xf32>
      %71 = vector.extract_strided_slice %18 {offsets = [0, 8], sizes = [8, 8], strides = [1, 1]} : vector<8x32xf32> to vector<8x8xf32>
      %72 = tpu.transpose %70, [1, 0] : vector<8x8xf32> -> vector<8x8xf32>
      %cst_41 = arith.constant dense<0.000000e+00> : vector<8x8xf32>
      %73 = tpu.matmul %69, %72, %cst_41 {dimension_numbers = #tpu.dot_dimension_numbers<[1], [0], [0], [1], [0, 0, 1, 1], [], []>} : vector<8x8xf32>, vector<8x8xf32>, vector<8x8xf32> -> vector<8x8xf32>
      %74 = arith.addf %73, %31 : vector<8x8xf32>
      %c1 = arith.constant 1 : index
      %c0_42 = arith.constant 0 : index
      %c0_43 = arith.constant 0 : index
      %75 = vector.load %arg13[%c1, %c0_42, %c0_43] : memref<4x8x1xf32, #tpu.memory_space<vmem>>, vector<1x8x1xf32>
      %76 = vector.shape_cast %75 : vector<1x8x1xf32> to vector<8x1xf32>
      %cst_44 = arith.constant dense<0xFF800000> : vector<8xf32>
      %77 = vector.multi_reduction <maximumf>, %74, %cst_44 [1] : vector<8x8xf32> to vector<8xf32>
      %78 = vector.shape_cast %77 : vector<8xf32> to vector<8x1xf32>
      %79 = arith.maximumf %76, %78 : vector<8x1xf32>
      %80 = arith.subf %76, %79 : vector<8x1xf32>
      %81 = math.exp %80 : vector<8x1xf32>
      %82 = vector.broadcast %79 : vector<8x1xf32> to vector<8x8xf32>
      %83 = arith.subf %74, %82 : vector<8x8xf32>
      %84 = math.exp %83 : vector<8x8xf32>
      %c1_45 = arith.constant 1 : index
      %c0_46 = arith.constant 0 : index
      %c0_47 = arith.constant 0 : index
      %85 = vector.load %arg14[%c1_45, %c0_46, %c0_47] : memref<4x8x1xf32, #tpu.memory_space<vmem>>, vector<1x8x1xf32>
      %86 = vector.shape_cast %85 : vector<1x8x1xf32> to vector<8x1xf32>
      %87 = arith.mulf %81, %86 : vector<8x1xf32>
      %cst_48 = arith.constant dense<0.000000e+00> : vector<8xf32>
      %88 = vector.multi_reduction <add>, %84, %cst_48 [1] : vector<8x8xf32> to vector<8xf32>
      %89 = vector.shape_cast %88 : vector<8xf32> to vector<8x1xf32>
      %90 = arith.addf %87, %89 : vector<8x1xf32>
      %c1_49 = arith.constant 1 : index
      %c0_50 = arith.constant 0 : index
      %c0_51 = arith.constant 0 : index
      %91 = vector.load %arg14[%c1_49, %c0_50, %c0_51] : memref<4x8x1xf32, #tpu.memory_space<vmem>>, vector<1x8x1xf32>
      %92 = vector.shape_cast %91 : vector<1x8x1xf32> to vector<8x1xf32>
      %93 = vector.shape_cast %90 : vector<8x1xf32> to vector<1x8x1xf32>
      tpu.vector_store %arg14[%c1_49, %c0_50, %c0_51], %93 {strides = array<i32>} : memref<4x8x1xf32, #tpu.memory_space<vmem>>, vector<1x8x1xf32>,
      %c1_52 = arith.constant 1 : index
      %c0_53 = arith.constant 0 : index
      %c0_54 = arith.constant 0 : index
      %94 = vector.load %arg15[%c1_52, %c0_53, %c0_54] : memref<4x8x8xf32, #tpu.memory_space<vmem>>, vector<1x8x8xf32>
      %95 = vector.shape_cast %94 : vector<1x8x8xf32> to vector<8x8xf32>
      %96 = vector.broadcast %81 : vector<8x1xf32> to vector<8x8xf32>
      %97 = arith.mulf %96, %95 : vector<8x8xf32>
      %cst_55 = arith.constant dense<0.000000e+00> : vector<8x8xf32>
      %98 = tpu.matmul %84, %71, %cst_55 {dimension_numbers = #tpu.dot_dimension_numbers<[1], [0], [0], [1], [0, 0, 1, 1], [], []>} : vector<8x8xf32>, vector<8x8xf32>, vector<8x8xf32> -> vector<8x8xf32>
      %99 = arith.addf %97, %98 : vector<8x8xf32>
      %c1_56 = arith.constant 1 : index
      %c0_57 = arith.constant 0 : index
      %c0_58 = arith.constant 0 : index
      %100 = vector.load %arg15[%c1_56, %c0_57, %c0_58] : memref<4x8x8xf32, #tpu.memory_space<vmem>>, vector<1x8x8xf32>
      %101 = vector.shape_cast %100 : vector<1x8x8xf32> to vector<8x8xf32>
      %102 = vector.shape_cast %99 : vector<8x8xf32> to vector<1x8x8xf32>
      tpu.vector_store %arg15[%c1_56, %c0_57, %c0_58], %102 {strides = array<i32>} : memref<4x8x8xf32, #tpu.memory_space<vmem>>, vector<1x8x8xf32>,
      %c1_59 = arith.constant 1 : index
      %c0_60 = arith.constant 0 : index
      %c0_61 = arith.constant 0 : index
      %103 = vector.load %arg13[%c1_59, %c0_60, %c0_61] : memref<4x8x1xf32, #tpu.memory_space<vmem>>, vector<1x8x1xf32>
      %104 = vector.shape_cast %103 : vector<1x8x1xf32> to vector<8x1xf32>
      %105 = vector.shape_cast %79 : vector<8x1xf32> to vector<1x8x1xf32>
      tpu.vector_store %arg13[%c1_59, %c0_60, %c0_61], %105 {strides = array<i32>} : memref<4x8x1xf32, #tpu.memory_space<vmem>>, vector<1x8x1xf32>,
      %106 = vector.extract_strided_slice %19 {offsets = [0, 16], sizes = [8, 8], strides = [1, 1]} : vector<8x32xf32> to vector<8x8xf32>
      %107 = vector.extract_strided_slice %16 {offsets = [0, 16], sizes = [8, 8], strides = [1, 1]} : vector<8x32xf32> to vector<8x8xf32>
      %108 = vector.extract_strided_slice %18 {offsets = [0, 16], sizes = [8, 8], strides = [1, 1]} : vector<8x32xf32> to vector<8x8xf32>
      %109 = tpu.transpose %107, [1, 0] : vector<8x8xf32> -> vector<8x8xf32>
      %cst_62 = arith.constant dense<0.000000e+00> : vector<8x8xf32>
      %110 = tpu.matmul %106, %109, %cst_62 {dimension_numbers = #tpu.dot_dimension_numbers<[1], [0], [0], [1], [0, 0, 1, 1], [], []>} : vector<8x8xf32>, vector<8x8xf32>, vector<8x8xf32> -> vector<8x8xf32>
      %111 = arith.addf %110, %31 : vector<8x8xf32>
      %c2 = arith.constant 2 : index
      %c0_63 = arith.constant 0 : index
      %c0_64 = arith.constant 0 : index
      %112 = vector.load %arg13[%c2, %c0_63, %c0_64] : memref<4x8x1xf32, #tpu.memory_space<vmem>>, vector<1x8x1xf32>
      %113 = vector.shape_cast %112 : vector<1x8x1xf32> to vector<8x1xf32>
      %cst_65 = arith.constant dense<0xFF800000> : vector<8xf32>
      %114 = vector.multi_reduction <maximumf>, %111, %cst_65 [1] : vector<8x8xf32> to vector<8xf32>
      %115 = vector.shape_cast %114 : vector<8xf32> to vector<8x1xf32>
      %116 = arith.maximumf %113, %115 : vector<8x1xf32>
      %117 = arith.subf %113, %116 : vector<8x1xf32>
      %118 = math.exp %117 : vector<8x1xf32>
      %119 = vector.broadcast %116 : vector<8x1xf32> to vector<8x8xf32>
      %120 = arith.subf %111, %119 : vector<8x8xf32>
      %121 = math.exp %120 : vector<8x8xf32>
      %c2_66 = arith.constant 2 : index
      %c0_67 = arith.constant 0 : index
      %c0_68 = arith.constant 0 : index
      %122 = vector.load %arg14[%c2_66, %c0_67, %c0_68] : memref<4x8x1xf32, #tpu.memory_space<vmem>>, vector<1x8x1xf32>
      %123 = vector.shape_cast %122 : vector<1x8x1xf32> to vector<8x1xf32>
      %124 = arith.mulf %118, %123 : vector<8x1xf32>
      %cst_69 = arith.constant dense<0.000000e+00> : vector<8xf32>
      %125 = vector.multi_reduction <add>, %121, %cst_69 [1] : vector<8x8xf32> to vector<8xf32>
      %126 = vector.shape_cast %125 : vector<8xf32> to vector<8x1xf32>
      %127 = arith.addf %124, %126 : vector<8x1xf32>
      %c2_70 = arith.constant 2 : index
      %c0_71 = arith.constant 0 : index
      %c0_72 = arith.constant 0 : index
      %128 = vector.load %arg14[%c2_70, %c0_71, %c0_72] : memref<4x8x1xf32, #tpu.memory_space<vmem>>, vector<1x8x1xf32>
      %129 = vector.shape_cast %128 : vector<1x8x1xf32> to vector<8x1xf32>
      %130 = vector.shape_cast %127 : vector<8x1xf32> to vector<1x8x1xf32>
      tpu.vector_store %arg14[%c2_70, %c0_71, %c0_72], %130 {strides = array<i32>} : memref<4x8x1xf32, #tpu.memory_space<vmem>>, vector<1x8x1xf32>,
      %c2_73 = arith.constant 2 : index
      %c0_74 = arith.constant 0 : index
      %c0_75 = arith.constant 0 : index
      %131 = vector.load %arg15[%c2_73, %c0_74, %c0_75] : memref<4x8x8xf32, #tpu.memory_space<vmem>>, vector<1x8x8xf32>
      %132 = vector.shape_cast %131 : vector<1x8x8xf32> to vector<8x8xf32>
      %133 = vector.broadcast %118 : vector<8x1xf32> to vector<8x8xf32>
      %134 = arith.mulf %133, %132 : vector<8x8xf32>
      %cst_76 = arith.constant dense<0.000000e+00> : vector<8x8xf32>
      %135 = tpu.matmul %121, %108, %cst_76 {dimension_numbers = #tpu.dot_dimension_numbers<[1], [0], [0], [1], [0, 0, 1, 1], [], []>} : vector<8x8xf32>, vector<8x8xf32>, vector<8x8xf32> -> vector<8x8xf32>
      %136 = arith.addf %134, %135 : vector<8x8xf32>
      %c2_77 = arith.constant 2 : index
      %c0_78 = arith.constant 0 : index
      %c0_79 = arith.constant 0 : index
      %137 = vector.load %arg15[%c2_77, %c0_78, %c0_79] : memref<4x8x8xf32, #tpu.memory_space<vmem>>, vector<1x8x8xf32>
      %138 = vector.shape_cast %137 : vector<1x8x8xf32> to vector<8x8xf32>
      %139 = vector.shape_cast %136 : vector<8x8xf32> to vector<1x8x8xf32>
      tpu.vector_store %arg15[%c2_77, %c0_78, %c0_79], %139 {strides = array<i32>} : memref<4x8x8xf32, #tpu.memory_space<vmem>>, vector<1x8x8xf32>,
      %c2_80 = arith.constant 2 : index
      %c0_81 = arith.constant 0 : index
      %c0_82 = arith.constant 0 : index
      %140 = vector.load %arg13[%c2_80, %c0_81, %c0_82] : memref<4x8x1xf32, #tpu.memory_space<vmem>>, vector<1x8x1xf32>
      %141 = vector.shape_cast %140 : vector<1x8x1xf32> to vector<8x1xf32>
      %142 = vector.shape_cast %116 : vector<8x1xf32> to vector<1x8x1xf32>
      tpu.vector_store %arg13[%c2_80, %c0_81, %c0_82], %142 {strides = array<i32>} : memref<4x8x1xf32, #tpu.memory_space<vmem>>, vector<1x8x1xf32>,
      %143 = vector.extract_strided_slice %19 {offsets = [0, 24], sizes = [8, 8], strides = [1, 1]} : vector<8x32xf32> to vector<8x8xf32>
      %144 = vector.extract_strided_slice %16 {offsets = [0, 24], sizes = [8, 8], strides = [1, 1]} : vector<8x32xf32> to vector<8x8xf32>
      %145 = vector.extract_strided_slice %18 {offsets = [0, 24], sizes = [8, 8], strides = [1, 1]} : vector<8x32xf32> to vector<8x8xf32>
      %146 = tpu.transpose %144, [1, 0] : vector<8x8xf32> -> vector<8x8xf32>
      %cst_83 = arith.constant dense<0.000000e+00> : vector<8x8xf32>
      %147 = tpu.matmul %143, %146, %cst_83 {dimension_numbers = #tpu.dot_dimension_numbers<[1], [0], [0], [1], [0, 0, 1, 1], [], []>} : vector<8x8xf32>, vector<8x8xf32>, vector<8x8xf32> -> vector<8x8xf32>
      %148 = arith.addf %147, %31 : vector<8x8xf32>
      %c3 = arith.constant 3 : index
      %c0_84 = arith.constant 0 : index
      %c0_85 = arith.constant 0 : index
      %149 = vector.load %arg13[%c3, %c0_84, %c0_85] : memref<4x8x1xf32, #tpu.memory_space<vmem>>, vector<1x8x1xf32>
      %150 = vector.shape_cast %149 : vector<1x8x1xf32> to vector<8x1xf32>
      %cst_86 = arith.constant dense<0xFF800000> : vector<8xf32>
      %151 = vector.multi_reduction <maximumf>, %148, %cst_86 [1] : vector<8x8xf32> to vector<8xf32>
      %152 = vector.shape_cast %151 : vector<8xf32> to vector<8x1xf32>
      %153 = arith.maximumf %150, %152 : vector<8x1xf32>
      %154 = arith.subf %150, %153 : vector<8x1xf32>
      %155 = math.exp %154 : vector<8x1xf32>
      %156 = vector.broadcast %153 : vector<8x1xf32> to vector<8x8xf32>
      %157 = arith.subf %148, %156 : vector<8x8xf32>
      %158 = math.exp %157 : vector<8x8xf32>
      %c3_87 = arith.constant 3 : index
      %c0_88 = arith.constant 0 : index
      %c0_89 = arith.constant 0 : index
      %159 = vector.load %arg14[%c3_87, %c0_88, %c0_89] : memref<4x8x1xf32, #tpu.memory_space<vmem>>, vector<1x8x1xf32>
      %160 = vector.shape_cast %159 : vector<1x8x1xf32> to vector<8x1xf32>
      %161 = arith.mulf %155, %160 : vector<8x1xf32>
      %cst_90 = arith.constant dense<0.000000e+00> : vector<8xf32>
      %162 = vector.multi_reduction <add>, %158, %cst_90 [1] : vector<8x8xf32> to vector<8xf32>
      %163 = vector.shape_cast %162 : vector<8xf32> to vector<8x1xf32>
      %164 = arith.addf %161, %163 : vector<8x1xf32>
      %c3_91 = arith.constant 3 : index
      %c0_92 = arith.constant 0 : index
      %c0_93 = arith.constant 0 : index
      %165 = vector.load %arg14[%c3_91, %c0_92, %c0_93] : memref<4x8x1xf32, #tpu.memory_space<vmem>>, vector<1x8x1xf32>
      %166 = vector.shape_cast %165 : vector<1x8x1xf32> to vector<8x1xf32>
      %167 = vector.shape_cast %164 : vector<8x1xf32> to vector<1x8x1xf32>
      tpu.vector_store %arg14[%c3_91, %c0_92, %c0_93], %167 {strides = array<i32>} : memref<4x8x1xf32, #tpu.memory_space<vmem>>, vector<1x8x1xf32>,
      %c3_94 = arith.constant 3 : index
      %c0_95 = arith.constant 0 : index
      %c0_96 = arith.constant 0 : index
      %168 = vector.load %arg15[%c3_94, %c0_95, %c0_96] : memref<4x8x8xf32, #tpu.memory_space<vmem>>, vector<1x8x8xf32>
      %169 = vector.shape_cast %168 : vector<1x8x8xf32> to vector<8x8xf32>
      %170 = vector.broadcast %155 : vector<8x1xf32> to vector<8x8xf32>
      %171 = arith.mulf %170, %169 : vector<8x8xf32>
      %cst_97 = arith.constant dense<0.000000e+00> : vector<8x8xf32>
      %172 = tpu.matmul %158, %145, %cst_97 {dimension_numbers = #tpu.dot_dimension_numbers<[1], [0], [0], [1], [0, 0, 1, 1], [], []>} : vector<8x8xf32>, vector<8x8xf32>, vector<8x8xf32> -> vector<8x8xf32>
      %173 = arith.addf %171, %172 : vector<8x8xf32>
      %c3_98 = arith.constant 3 : index
      %c0_99 = arith.constant 0 : index
      %c0_100 = arith.constant 0 : index
      %174 = vector.load %arg15[%c3_98, %c0_99, %c0_100] : memref<4x8x8xf32, #tpu.memory_space<vmem>>, vector<1x8x8xf32>
      %175 = vector.shape_cast %174 : vector<1x8x8xf32> to vector<8x8xf32>
      %176 = vector.shape_cast %173 : vector<8x8xf32> to vector<1x8x8xf32>
      tpu.vector_store %arg15[%c3_98, %c0_99, %c0_100], %176 {strides = array<i32>} : memref<4x8x8xf32, #tpu.memory_space<vmem>>, vector<1x8x8xf32>,
      %c3_101 = arith.constant 3 : index
      %c0_102 = arith.constant 0 : index
      %c0_103 = arith.constant 0 : index
      %177 = vector.load %arg13[%c3_101, %c0_102, %c0_103] : memref<4x8x1xf32, #tpu.memory_space<vmem>>, vector<1x8x1xf32>
      %178 = vector.shape_cast %177 : vector<1x8x1xf32> to vector<8x1xf32>
      %179 = vector.shape_cast %153 : vector<8x1xf32> to vector<1x8x1xf32>
      tpu.vector_store %arg13[%c3_101, %c0_102, %c0_103], %179 {strides = array<i32>} : memref<4x8x1xf32, #tpu.memory_space<vmem>>, vector<1x8x1xf32>,
    } else {
    }
    %c0_i32_4 = arith.constant 0 : i32
    %10 = arith.cmpi eq, %arg2, %c0_i32_4 : i32
    %11 = arith.extui %10 : i1 to i32
    %c0_i32_5 = arith.constant 0 : i32
    %12 = arith.cmpi ne, %11, %c0_i32_5 : i32
    scf.if %12 {
      %cst = arith.constant 0.000000e+00 : f32
      %13 = vector.broadcast %cst : f32 to vector<8x32xf32>
      %c0 = arith.constant 0 : index
      %c0_6 = arith.constant 0 : index
      %c0_7 = arith.constant 0 : index
      %14 = vector.load %arg14[%c0, %c0_6, %c0_7] : memref<4x8x1xf32, #tpu.memory_space<vmem>>, vector<1x8x1xf32>
      %15 = vector.shape_cast %14 : vector<1x8x1xf32> to vector<8x1xf32>
      %16 = tpu.reciprocal %15 : vector<8x1xf32> -> vector<8x1xf32>
      %c0_8 = arith.constant 0 : index
      %c0_9 = arith.constant 0 : index
      %c0_10 = arith.constant 0 : index
      %17 = vector.load %arg15[%c0_8, %c0_9, %c0_10] : memref<4x8x8xf32, #tpu.memory_space<vmem>>, vector<1x8x8xf32>
      %18 = vector.shape_cast %17 : vector<1x8x8xf32> to vector<8x8xf32>
      %19 = vector.broadcast %16 : vector<8x1xf32> to vector<8x8xf32>
      %20 = arith.mulf %18, %19 : vector<8x8xf32>
      %c0_11 = arith.constant 0 : index
      %c0_12 = arith.constant 0 : index
      %21 = vector.load %arg9[%c0_11, %c0_12] : memref<32x32xf32, #tpu.memory_space<vmem>>, vector<8x32xf32>
      %cst_13 = arith.constant dense<0.000000e+00> : vector<8x32xf32>
      %22 = tpu.matmul %20, %21, %cst_13 {dimension_numbers = #tpu.dot_dimension_numbers<[1], [0], [0], [1], [0, 0, 1, 1], [], []>} : vector<8x8xf32>, vector<8x32xf32>, vector<8x32xf32> -> vector<8x32xf32>
      %23 = arith.addf %13, %22 : vector<8x32xf32>
      %c1 = arith.constant 1 : index
      %c0_14 = arith.constant 0 : index
      %c0_15 = arith.constant 0 : index
      %24 = vector.load %arg14[%c1, %c0_14, %c0_15] : memref<4x8x1xf32, #tpu.memory_space<vmem>>, vector<1x8x1xf32>
      %25 = vector.shape_cast %24 : vector<1x8x1xf32> to vector<8x1xf32>
      %26 = tpu.reciprocal %25 : vector<8x1xf32> -> vector<8x1xf32>
      %c1_16 = arith.constant 1 : index
      %c0_17 = arith.constant 0 : index
      %c0_18 = arith.constant 0 : index
      %27 = vector.load %arg15[%c1_16, %c0_17, %c0_18] : memref<4x8x8xf32, #tpu.memory_space<vmem>>, vector<1x8x8xf32>
      %28 = vector.shape_cast %27 : vector<1x8x8xf32> to vector<8x8xf32>
      %29 = vector.broadcast %26 : vector<8x1xf32> to vector<8x8xf32>
      %30 = arith.mulf %28, %29 : vector<8x8xf32>
      %c8 = arith.constant 8 : index
      %c0_19 = arith.constant 0 : index
      %31 = vector.load %arg9[%c8, %c0_19] : memref<32x32xf32, #tpu.memory_space<vmem>>, vector<8x32xf32>
      %cst_20 = arith.constant dense<0.000000e+00> : vector<8x32xf32>
      %32 = tpu.matmul %30, %31, %cst_20 {dimension_numbers = #tpu.dot_dimension_numbers<[1], [0], [0], [1], [0, 0, 1, 1], [], []>} : vector<8x8xf32>, vector<8x32xf32>, vector<8x32xf32> -> vector<8x32xf32>
      %33 = arith.addf %23, %32 : vector<8x32xf32>
      %c2 = arith.constant 2 : index
      %c0_21 = arith.constant 0 : index
      %c0_22 = arith.constant 0 : index
      %34 = vector.load %arg14[%c2, %c0_21, %c0_22] : memref<4x8x1xf32, #tpu.memory_space<vmem>>, vector<1x8x1xf32>
      %35 = vector.shape_cast %34 : vector<1x8x1xf32> to vector<8x1xf32>
      %36 = tpu.reciprocal %35 : vector<8x1xf32> -> vector<8x1xf32>
      %c2_23 = arith.constant 2 : index
      %c0_24 = arith.constant 0 : index
      %c0_25 = arith.constant 0 : index
      %37 = vector.load %arg15[%c2_23, %c0_24, %c0_25] : memref<4x8x8xf32, #tpu.memory_space<vmem>>, vector<1x8x8xf32>
      %38 = vector.shape_cast %37 : vector<1x8x8xf32> to vector<8x8xf32>
      %39 = vector.broadcast %36 : vector<8x1xf32> to vector<8x8xf32>
      %40 = arith.mulf %38, %39 : vector<8x8xf32>
      %c16 = arith.constant 16 : index
      %c0_26 = arith.constant 0 : index
      %41 = vector.load %arg9[%c16, %c0_26] : memref<32x32xf32, #tpu.memory_space<vmem>>, vector<8x32xf32>
      %cst_27 = arith.constant dense<0.000000e+00> : vector<8x32xf32>
      %42 = tpu.matmul %40, %41, %cst_27 {dimension_numbers = #tpu.dot_dimension_numbers<[1], [0], [0], [1], [0, 0, 1, 1], [], []>} : vector<8x8xf32>, vector<8x32xf32>, vector<8x32xf32> -> vector<8x32xf32>
      %43 = arith.addf %33, %42 : vector<8x32xf32>
      %c3 = arith.constant 3 : index
      %c0_28 = arith.constant 0 : index
      %c0_29 = arith.constant 0 : index
      %44 = vector.load %arg14[%c3, %c0_28, %c0_29] : memref<4x8x1xf32, #tpu.memory_space<vmem>>, vector<1x8x1xf32>
      %45 = vector.shape_cast %44 : vector<1x8x1xf32> to vector<8x1xf32>
      %46 = tpu.reciprocal %45 : vector<8x1xf32> -> vector<8x1xf32>
      %c3_30 = arith.constant 3 : index
      %c0_31 = arith.constant 0 : index
      %c0_32 = arith.constant 0 : index
      %47 = vector.load %arg15[%c3_30, %c0_31, %c0_32] : memref<4x8x8xf32, #tpu.memory_space<vmem>>, vector<1x8x8xf32>
      %48 = vector.shape_cast %47 : vector<1x8x8xf32> to vector<8x8xf32>
      %49 = vector.broadcast %46 : vector<8x1xf32> to vector<8x8xf32>
      %50 = arith.mulf %48, %49 : vector<8x8xf32>
      %c24 = arith.constant 24 : index
      %c0_33 = arith.constant 0 : index
      %51 = vector.load %arg9[%c24, %c0_33] : memref<32x32xf32, #tpu.memory_space<vmem>>, vector<8x32xf32>
      %cst_34 = arith.constant dense<0.000000e+00> : vector<8x32xf32>
      %52 = tpu.matmul %50, %51, %cst_34 {dimension_numbers = #tpu.dot_dimension_numbers<[1], [0], [0], [1], [0, 0, 1, 1], [], []>} : vector<8x8xf32>, vector<8x32xf32>, vector<8x32xf32> -> vector<8x32xf32>
      %53 = arith.addf %43, %52 : vector<8x32xf32>
      %c0_35 = arith.constant 0 : index
      %c0_36 = arith.constant 0 : index
      %54 = vector.load %arg10[%c0_35, %c0_36] : memref<1x32xf32, #tpu.memory_space<vmem>>, vector<1x32xf32>
      %55 = vector.broadcast %54 : vector<1x32xf32> to vector<8x32xf32>
      %56 = arith.addf %53, %55 : vector<8x32xf32>
      %c0_37 = arith.constant 0 : index
      %c0_38 = arith.constant 0 : index
      %c0_39 = arith.constant 0 : index
      %57 = vector.load %arg11[%c0_37, %c0_38, %c0_39] : memref<1x8x32xf32, #tpu.memory_space<vmem>>, vector<1x8x32xf32>
      %58 = vector.shape_cast %57 : vector<1x8x32xf32> to vector<8x32xf32>
      %59 = vector.shape_cast %56 : vector<8x32xf32> to vector<1x8x32xf32>
      tpu.vector_store %arg11[%c0_37, %c0_38, %c0_39], %59 {strides = array<i32>} : memref<1x8x32xf32, #tpu.memory_space<vmem>>, vector<1x8x32xf32>,
    } else {
    }
    return
  }
  func.func @transform_0(%arg0: i32, %arg1: i32, %arg2: i32) -> i32 {
    %c0_i32 = arith.constant 0 : i32
    %c0_i32_0 = arith.constant 0 : i32
    return %c0_i32 : i32
  }
  func.func @transform_1(%arg0: i32, %arg1: i32, %arg2: i32) -> (i32, i32, i32) {
    %c0_i32 = arith.constant 0 : i32
    %c0_i32_0 = arith.constant 0 : i32
    return %arg0, %arg1, %c0_i32 : i32, i32, i32
  }
  func.func @transform_2(%arg0: i32, %arg1: i32, %arg2: i32) -> (i32, i32, i32) {
    %c0_i32 = arith.constant 0 : i32
    %c0_i32_0 = arith.constant 0 : i32
    return %arg0, %arg2, %c0_i32 : i32, i32, i32
  }
  func.func @transform_3(%arg0: i32, %arg1: i32, %arg2: i32) -> (i32, i32) {
    %c0_i32 = arith.constant 0 : i32
    %c0_i32_0 = arith.constant 0 : i32
    %c0_i32_1 = arith.constant 0 : i32
    return %c0_i32, %c0_i32_0 : i32, i32
  }
  func.func @transform_4(%arg0: i32, %arg1: i32, %arg2: i32) -> (i32, i32) {
    %c0_i32 = arith.constant 0 : i32
    %c0_i32_0 = arith.constant 0 : i32
    %c0_i32_1 = arith.constant 0 : i32
    return %c0_i32, %c0_i32_0 : i32, i32
  }
  func.func @transform_5(%arg0: i32, %arg1: i32, %arg2: i32) -> (i32, i32) {
    %c0_i32 = arith.constant 0 : i32
    %c0_i32_0 = arith.constant 0 : i32
    %c0_i32_1 = arith.constant 0 : i32
    return %c0_i32, %c0_i32_0 : i32, i32
  }
  func.func @transform_6(%arg0: i32, %arg1: i32, %arg2: i32) -> (i32, i32) {
    %c0_i32 = arith.constant 0 : i32
    %c0_i32_0 = arith.constant 0 : i32
    %c0_i32_1 = arith.constant 0 : i32
    return %c0_i32, %c0_i32_0 : i32, i32
  }
  func.func @transform_7(%arg0: i32, %arg1: i32, %arg2: i32) -> (i32, i32) {
    %c0_i32 = arith.constant 0 : i32
    %c0_i32_0 = arith.constant 0 : i32
    %c0_i32_1 = arith.constant 0 : i32
    return %c0_i32, %c0_i32_0 : i32, i32
  }
  func.func @transform_8(%arg0: i32, %arg1: i32, %arg2: i32) -> (i32, i32, i32) {
    %c0_i32 = arith.constant 0 : i32
    %c0_i32_0 = arith.constant 0 : i32
    return %arg0, %arg1, %c0_i32 : i32, i32, i32
  }
}

</mosaic_0001>

<llo_original>
// kernel: tpu_custom_call.1
$region0: #{tpu_custom_call.1}
  #allocation0 [shape = 'u32[]', space=smem, size = 0x4, offset = 0x4, fixed_abs, tag = 'smem constant byte address 0x4 - core index']
  #allocation1 [shape = 'u32[144,128]{1,0:T(1,128)}', space=vmem, size = 0x12000, scoped, tag = 'internal scratch']
  #allocation2 [shape = 'f32[8,32]{1,0:T(8,128)}', space=vmem, size = 0x1000, scoped, tag = 'scratch operand']
  #allocation3 [shape = 'f32[4,8,1]{2,1,0:T(8,128)}', space=vmem, size = 0x4000, scoped, tag = 'scratch operand']
  #allocation4 [shape = 'f32[4,8,1]{2,1,0:T(8,128)}', space=vmem, size = 0x4000, scoped, tag = 'scratch operand']
  #allocation5 [shape = 'f32[4,8,8]{2,1,0:T(8,128)}', space=vmem, size = 0x4000, scoped, tag = 'scratch operand']
  #allocation6 [shape = 's32[1]{0:T(128)S(6)}', space=smem, size = 0x200, scoped, tag = 'scoped memory for tpu_custom_call.1']
  %s0 = inlined_call_operand.<no memory space> [shape: s32[1], index: 0, kind: input, shape index: {}]
  %s1 = inlined_call_operand.hbm [shape: f32[2,8,32], index: 1, kind: input, shape index: {}]
  %s2 = inlined_call_operand.hbm [shape: f32[2,8,32], index: 2, kind: input, shape index: {}]
  %s3 = inlined_call_operand.hbm [shape: f32[32,32], index: 3, kind: input, shape index: {}]
  %s4 = inlined_call_operand.hbm [shape: f32[32,32], index: 4, kind: input, shape index: {}]
  %s5 = inlined_call_operand.hbm [shape: f32[32,32], index: 5, kind: input, shape index: {}]
  %s6 = inlined_call_operand.hbm [shape: f32[32,32], index: 6, kind: input, shape index: {}]
  %s7 = inlined_call_operand.vmem [shape: f32[1,32], index: 7, kind: input, shape index: {}]
  %s8 = inlined_call_operand.hbm [shape: f32[2,8,32], index: 8, kind: output, shape index: {}]
  %s9 = sld [smem:[#allocation0]]
  $region101: #{tpu_custom_call.1} parent=0
    _
  %s11 = ssub.s32 1, %s9
  %s12 = scalar_select 0, %s11, %s9
  %13 = sst [smem:[#allocation6]] %s0
  $region1: #{tpu_custom_call.1} parent=0
    #allocation7 [shape = 'u8[8192]{0}', space=vmem, size = 0x2000, scoped, tag = 'input window, operand 1']
    #allocation8 [shape = 's32[2]{0}', space=sflag, size = 0x8, scoped, tag = 'scoped memory for tpu_custom_call.1']
    #allocation9 [shape = 's32[2]{0}', space=sflag, size = 0x8, scoped, tag = 'scoped memory for tpu_custom_call.1']
    #allocation10 [shape = 'u8[8192]{0}', space=vmem, size = 0x2000, scoped, tag = 'input window, operand 2']
    #allocation11 [shape = 's32[2]{0}', space=sflag, size = 0x8, scoped, tag = 'scoped memory for tpu_custom_call.1']
    #allocation12 [shape = 'u8[16384]{0}', space=vmem, size = 0x4000, scoped, tag = 'input window, operand 3, single buffered']
    #allocation13 [shape = 'u8[16384]{0}', space=vmem, size = 0x4000, scoped, tag = 'input window, operand 4, single buffered']
    #allocation14 [shape = 's32[1]{0}', space=sflag, size = 0x4, scoped, tag = 'scoped memory for tpu_custom_call.1']
    #allocation15 [shape = 'u8[16384]{0}', space=vmem, size = 0x4000, scoped, tag = 'input window, operand 5, single buffered']
    #allocation16 [shape = 'u8[16384]{0}', space=vmem, size = 0x4000, scoped, tag = 'input window, operand 6, single buffered']
    #allocation17 [shape = 's32[1]{0}', space=sflag, size = 0x4, scoped, tag = 'scoped memory for tpu_custom_call.1']
    #allocation18 [shape = 'u8[8192]{0}', space=vmem, size = 0x2000, scoped, tag = 'output window, operand 0']
    %14 = vsyncpa [#allocation8], 0
    %s15 = scalar_lea.sflag [#allocation8], 1
    %16 = vsyncpa %s15, 0
    %17 = vsyncpa [#allocation11], 0
    %s18 = scalar_lea.sflag [#allocation11], 1
    %19 = vsyncpa %s18, 0
    %20 = vsyncpa [#allocation14], 0
    %21 = vsyncpa [#allocation17], 0
    %22 = vsyncpa [#allocation9], 0
    %s23 = scalar_lea.sflag [#allocation9], 1
    %24 = vsyncpa %s23, 0
    loop: start=0, step=1, limit=4
    $region2: #{tpu_custom_call.1} parent=1 // loop_pre_header
      _
    $region3: #{tpu_custom_call.1} parent=1 // loop_header
      %s26 = sphi 0, %s30
      %p27 = scmp.ge.s32.totalorder %s26, 4
      %s33 = sphi 0, %s52
      %s34 = sphi 0, %s48
      %s35 = sphi 0, %s44
      %s36 = sphi 0, %s33
      %s37 = sphi 0, %s34
      %s38 = sphi 0, %s35
      %s39 = sphi 0, %s36
      %s40 = sphi 0, %s37
      %s41 = sphi 0, %s38
      %s53 = sphi 0, %s53
      %s55 = sphi 0, %s53
      %s56 = sphi 0, %s55
      %s70 = sphi 0, %s56
      %s78 = sphi 0, %s80
      %s81 = sphi 0, %s78
      %s82 = sphi 0, %s81
      %s98 = sphi 0, %s82
      %s106 = sphi 0, %s108
      %s109 = sphi 0, %s106
      %s110 = sphi 0, %s109
      %s126 = sphi 0, %s110
      %s130 = sphi 0, %s130
      %s132 = sphi 0, %s130
      %s133 = sphi 0, %s132
      %s147 = sphi 0, %s133
      %s151 = sphi 0, %s151
      %s153 = sphi 0, %s151
      %s154 = sphi 0, %s153
      %s168 = sphi 0, %s154
      %s172 = sphi 0, %s172
      %s174 = sphi 0, %s172
      %s175 = sphi 0, %s174
      %s189 = sphi 0, %s175
      %s193 = sphi 0, %s193
      %s195 = sphi 0, %s193
      %s196 = sphi 0, %s195
      %s210 = sphi 0, %s196
      %s214 = sphi 0, %s214
      %s216 = sphi 0, %s214
      %s217 = sphi 0, %s216
      %s231 = sphi 0, %s217
      %s239 = sphi 0, %s241
      %s242 = sphi 0, %s239
      %s243 = sphi 0, %s242
      %s259 = sphi 0, %s243
    $region4: #{tpu_custom_call.1} parent=1 // loop_header_branch
      %29 = sbr.rel (%p27) target = $region8
    $region5: #{tpu_custom_call.1} parent=1 // loop_body
      %s31 = ssub.s32 %s26, 1
      %s32 = ssub.s32 %s26, 2
      %s42 = sadd.s32 1, %s35
      %p43 = scmp.ge.s32.totalorder %s42, 1
      %s44 = scalar_select %p43, 0, %s42
      %s45 = sadd.s32 1, %s34
      %s46 = scalar_select %p43, %s45, %s34
      %p47 = scmp.ge.s32.totalorder %s46, 1
      %s48 = scalar_select %p47, 0, %s46
      %s49 = sadd.s32 1, %s33
      %s50 = scalar_select %p47, %s49, %s33
      %p51 = scmp.ge.s32.totalorder %s50, 2
      %s52 = scalar_select %p51, 0, %s50
      %s54 = sadd.s32 %s53, 1
      %p57 = scmp.eq.s32.totalorder %s26, 1
      %p58 = scmp.ne.s32.totalorder %s53, %s55
      %p59 = scmp.eq.s32.totalorder %s26, 0
      %p60 = por %p58, %p59
      %p61 = scmp.ne.s32.totalorder %s53, %s55
      %p62 = scmp.eq.s32.totalorder %s31, 1
      %p63 = por %p61, %p62
      %p64 = scmp.ne.s32.totalorder %s55, %s56
      %p65 = scmp.eq.s32.totalorder %s31, 0
      %p66 = por %p64, %p65
      %p67 = scmp.ne.s32.totalorder %s55, %s56
      %p68 = scmp.eq.s32.totalorder %s32, 1
      %p69 = por %p67, %p68
      %p71 = scmp.ne.s32.totalorder %s56, %s70
      %p72 = scmp.eq.s32.totalorder %s32, 0
      %p73 = por %p71, %p72
      %s74 = ssub.s32 %s33, %s52
      %s75 = ssub.s32 %s34, %s48
      %s76 = sor.u32 %s74, %s75
      %p77 = scmp.eq.s32.totalorder %s76, 0
      %s79 = sadd.s32 %s78, 1
      %s80 = scalar_select %p77, %s78, %s79
      %p83 = pneg %p77
      %p84 = scmp.eq.s32.totalorder %s26, 1
      %p85 = por %p83, %p84
      %p86 = scmp.ne.s32.totalorder %s78, %s81
      %p87 = scmp.eq.s32.totalorder %s26, 0
      %p88 = por %p86, %p87
      %p89 = scmp.ne.s32.totalorder %s78, %s81
      %p90 = scmp.eq.s32.totalorder %s31, 1
      %p91 = por %p89, %p90
      %p92 = scmp.ne.s32.totalorder %s81, %s82
      %p93 = scmp.eq.s32.totalorder %s31, 0
      %p94 = por %p92, %p93
      %p95 = scmp.ne.s32.totalorder %s81, %s82
      %p96 = scmp.eq.s32.totalorder %s32, 1
      %p97 = por %p95, %p96
      %p99 = scmp.ne.s32.totalorder %s82, %s98
      %p100 = scmp.eq.s32.totalorder %s32, 0
      %p101 = por %p99, %p100
      %s102 = ssub.s32 %s33, %s52
      %s103 = ssub.s32 %s35, %s44
      %s104 = sor.u32 %s102, %s103
      %p105 = scmp.eq.s32.totalorder %s104, 0
      %s107 = sadd.s32 %s106, 1
      %s108 = scalar_select %p105, %s106, %s107
      %p111 = pneg %p105
      %p112 = scmp.eq.s32.totalorder %s26, 1
      %p113 = por %p111, %p112
      %p114 = scmp.ne.s32.totalorder %s106, %s109
      %p115 = scmp.eq.s32.totalorder %s26, 0
      %p116 = por %p114, %p115
      %p117 = scmp.ne.s32.totalorder %s106, %s109
      %p118 = scmp.eq.s32.totalorder %s31, 1
      %p119 = por %p117, %p118
      %p120 = scmp.ne.s32.totalorder %s109, %s110
      %p121 = scmp.eq.s32.totalorder %s31, 0
      %p122 = por %p120, %p121
      %p123 = scmp.ne.s32.totalorder %s109, %s110
      %p124 = scmp.eq.s32.totalorder %s32, 1
      %p125 = por %p123, %p124
      %p127 = scmp.ne.s32.totalorder %s110, %s126
      %p128 = scmp.eq.s32.totalorder %s32, 0
      %p129 = por %p127, %p128
      %s131 = sadd.s32 %s130, 1
      %p134 = scmp.eq.s32.totalorder %s26, 1
      %p135 = scmp.ne.s32.totalorder %s130, %s132
      %p136 = scmp.eq.s32.totalorder %s26, 0
      %p137 = por %p135, %p136
      %p138 = scmp.ne.s32.totalorder %s130, %s132
      %p139 = scmp.eq.s32.totalorder %s31, 1
      %p140 = por %p138, %p139
      %p141 = scmp.ne.s32.totalorder %s132, %s133
      %p142 = scmp.eq.s32.totalorder %s31, 0
      %p143 = por %p141, %p142
      %p144 = scmp.ne.s32.totalorder %s132, %s133
      %p145 = scmp.eq.s32.totalorder %s32, 1
      %p146 = por %p144, %p145
      %p148 = scmp.ne.s32.totalorder %s133, %s147
      %p149 = scmp.eq.s32.totalorder %s32, 0
      %p150 = por %p148, %p149
      %s152 = sadd.s32 %s151, 1
      %p155 = scmp.eq.s32.totalorder %s26, 1
      %p156 = scmp.ne.s32.totalorder %s151, %s153
      %p157 = scmp.eq.s32.totalorder %s26, 0
      %p158 = por %p156, %p157
      %p159 = scmp.ne.s32.totalorder %s151, %s153
      %p160 = scmp.eq.s32.totalorder %s31, 1
      %p161 = por %p159, %p160
      %p162 = scmp.ne.s32.totalorder %s153, %s154
      %p163 = scmp.eq.s32.totalorder %s31, 0
      %p164 = por %p162, %p163
      %p165 = scmp.ne.s32.totalorder %s153, %s154
      %p166 = scmp.eq.s32.totalorder %s32, 1
      %p167 = por %p165, %p166
      %p169 = scmp.ne.s32.totalorder %s154, %s168
      %p170 = scmp.eq.s32.totalorder %s32, 0
      %p171 = por %p169, %p170
      %s173 = sadd.s32 %s172, 1
      %p176 = scmp.eq.s32.totalorder %s26, 1
      %p177 = scmp.ne.s32.totalorder %s172, %s174
      %p178 = scmp.eq.s32.totalorder %s26, 0
      %p179 = por %p177, %p178
      %p180 = scmp.ne.s32.totalorder %s172, %s174
      %p181 = scmp.eq.s32.totalorder %s31, 1
      %p182 = por %p180, %p181
      %p183 = scmp.ne.s32.totalorder %s174, %s175
      %p184 = scmp.eq.s32.totalorder %s31, 0
      %p185 = por %p183, %p184
      %p186 = scmp.ne.s32.totalorder %s174, %s175
      %p187 = scmp.eq.s32.totalorder %s32, 1
      %p188 = por %p186, %p187
      %p190 = scmp.ne.s32.totalorder %s175, %s189
      %p191 = scmp.eq.s32.totalorder %s32, 0
      %p192 = por %p190, %p191
      %s194 = sadd.s32 %s193, 1
      %p197 = scmp.eq.s32.totalorder %s26, 1
      %p198 = scmp.ne.s32.totalorder %s193, %s195
      %p199 = scmp.eq.s32.totalorder %s26, 0
      %p200 = por %p198, %p199
      %p201 = scmp.ne.s32.totalorder %s193, %s195
      %p202 = scmp.eq.s32.totalorder %s31, 1
      %p203 = por %p201, %p202
      %p204 = scmp.ne.s32.totalorder %s195, %s196
      %p205 = scmp.eq.s32.totalorder %s31, 0
      %p206 = por %p204, %p205
      %p207 = scmp.ne.s32.totalorder %s195, %s196
      %p208 = scmp.eq.s32.totalorder %s32, 1
      %p209 = por %p207, %p208
      %p211 = scmp.ne.s32.totalorder %s196, %s210
      %p212 = scmp.eq.s32.totalorder %s32, 0
      %p213 = por %p211, %p212
      %s215 = sadd.s32 %s214, 1
      %p218 = scmp.eq.s32.totalorder %s26, 1
      %p219 = scmp.ne.s32.totalorder %s214, %s216
      %p220 = scmp.eq.s32.totalorder %s26, 0
      %p221 = por %p219, %p220
      %p222 = scmp.ne.s32.totalorder %s214, %s216
      %p223 = scmp.eq.s32.totalorder %s31, 1
      %p224 = por %p222, %p223
      %p225 = scmp.ne.s32.totalorder %s216, %s217
      %p226 = scmp.eq.s32.totalorder %s31, 0
      %p227 = por %p225, %p226
      %p228 = scmp.ne.s32.totalorder %s216, %s217
      %p229 = scmp.eq.s32.totalorder %s32, 1
      %p230 = por %p228, %p229
      %p232 = scmp.ne.s32.totalorder %s217, %s231
      %p233 = scmp.eq.s32.totalorder %s32, 0
      %p234 = por %p232, %p233
      %s235 = ssub.s32 %s33, %s52
      %s236 = ssub.s32 %s34, %s48
      %s237 = sor.u32 %s235, %s236
      %p238 = scmp.eq.s32.totalorder %s237, 0
      %s240 = sadd.s32 %s239, 1
      %s241 = scalar_select %p238, %s239, %s240
      %p244 = pneg %p238
      %p245 = scmp.eq.s32.totalorder %s26, 1
      %p246 = por %p244, %p245
      %p247 = scmp.ne.s32.totalorder %s239, %s242
      %p248 = scmp.eq.s32.totalorder %s26, 0
      %p249 = por %p247, %p248
      %p250 = scmp.ne.s32.totalorder %s239, %s242
      %p251 = scmp.eq.s32.totalorder %s31, 1
      %p252 = por %p250, %p251
      %p253 = scmp.ne.s32.totalorder %s242, %s243
      %p254 = scmp.eq.s32.totalorder %s31, 0
      %p255 = por %p253, %p254
      %p256 = scmp.ne.s32.totalorder %s242, %s243
      %p257 = scmp.eq.s32.totalorder %s32, 1
      %p258 = por %p256, %p257
      %p260 = scmp.ne.s32.totalorder %s243, %s259
      %p261 = scmp.eq.s32.totalorder %s32, 0
      %p262 = por %p260, %p261
      %p263 = scmp.le.s32.totalorder 1, %s26
      %p264 = scmp.lt.s32.totalorder %s26, 3
      %p265 = pnand %p263, %p264
      %p266 = pneg %p265
      // Predicated region
      $region9: #{tpu_custom_call.1} parent=5 // pred_check
        _
      $region10: #{tpu_custom_call.1} parent=5 // pred_check_branch
        %268 = sbr.rel (%p265) target = $region12
      $region11: #{tpu_custom_call.1} parent=5 // pred_region
        %s269 = ssub.s32 %s26, 1
        // Predicated region
        $region13: #{tpu_custom_call.1} parent=11 // pred_check
          %p270 = pneg %p66
        $region14: #{tpu_custom_call.1} parent=11 // pred_check_branch
          %272 = sbr.rel (%p270) target = $region16
        $region15: #{tpu_custom_call.1} parent=11 // pred_region
          _
        $region16: #{tpu_custom_call.1} parent=11 // pred_fallthru
          _
        // Predicated region
        $region17: #{tpu_custom_call.1} parent=11 // pred_check
          %p273 = pneg %p143
        $region18: #{tpu_custom_call.1} parent=11 // pred_check_branch
          %275 = sbr.rel (%p273) target = $region20
        $region19: #{tpu_custom_call.1} parent=11 // pred_region
          %s277 = ssub.s32 512, 512
          %278 = vsyncadd [#allocation11], %s277
          %s279 = sshll.u32 [#allocation12], 4
          %s280 = int_to_ptr.vmem [resolvable:$true] %s279
          %285 = dma.hbm_to_vmem [thread:$0]  %s3, 512, %s280, [#allocation11], 128, 128, 8
        $region20: #{tpu_custom_call.1} parent=11 // pred_fallthru
          _
        // Predicated region
        $region21: #{tpu_custom_call.1} parent=11 // pred_check
          %p286 = pneg %p164
        $region22: #{tpu_custom_call.1} parent=11 // pred_check_branch
          %288 = sbr.rel (%p286) target = $region24
        $region23: #{tpu_custom_call.1} parent=11 // pred_region
          %s290 = ssub.s32 512, 512
          %291 = vsyncadd [#allocation14], %s290
          %s292 = sshll.u32 [#allocation13], 4
          %s293 = int_to_ptr.vmem [resolvable:$true] %s292
          %298 = dma.hbm_to_vmem [thread:$0]  %s4, 512, %s293, [#allocation14], 128, 128, 8
        $region24: #{tpu_custom_call.1} parent=11 // pred_fallthru
          _
        // Predicated region
        $region25: #{tpu_custom_call.1} parent=11 // pred_check
          %p299 = pneg %p185
        $region26: #{tpu_custom_call.1} parent=11 // pred_check_branch
          %301 = sbr.rel (%p299) target = $region28
        $region27: #{tpu_custom_call.1} parent=11 // pred_region
          %s303 = ssub.s32 512, 512
          %304 = vsyncadd [#allocation14], %s303
          %s305 = sshll.u32 [#allocation15], 4
          %s306 = int_to_ptr.vmem [resolvable:$true] %s305
          %311 = dma.hbm_to_vmem [thread:$0]  %s5, 512, %s306, [#allocation14], 128, 128, 8
        $region28: #{tpu_custom_call.1} parent=11 // pred_fallthru
          _
        // Predicated region
        $region29: #{tpu_custom_call.1} parent=11 // pred_check
          %p312 = pneg %p206
        $region30: #{tpu_custom_call.1} parent=11 // pred_check_branch
          %314 = sbr.rel (%p312) target = $region32
        $region31: #{tpu_custom_call.1} parent=11 // pred_region
          %s316 = ssub.s32 512, 512
          %317 = vsyncadd [#allocation17], %s316
          %s318 = sshll.u32 [#allocation16], 4
          %s319 = int_to_ptr.vmem [resolvable:$true] %s318
          %324 = dma.hbm_to_vmem [thread:$0]  %s6, 512, %s319, [#allocation17], 128, 128, 8
        $region32: #{tpu_custom_call.1} parent=11 // pred_fallthru
          _
        // Predicated region
        $region33: #{tpu_custom_call.1} parent=11 // pred_check
          %p325 = pneg %p227
        $region34: #{tpu_custom_call.1} parent=11 // pred_check_branch
          %327 = sbr.rel (%p325) target = $region36
        $region35: #{tpu_custom_call.1} parent=11 // pred_region
          _
        $region36: #{tpu_custom_call.1} parent=11 // pred_fallthru
          _
      $region12: #{tpu_custom_call.1} parent=5 // pred_fallthru
        _
      %p328 = scmp.lt.s32.totalorder %s26, 2
      // Predicated region
      $region37: #{tpu_custom_call.1} parent=5 // pred_check
        %p329 = pneg %p328
      $region38: #{tpu_custom_call.1} parent=5 // pred_check_branch
        %331 = sbr.rel (%p329) target = $region40
      $region39: #{tpu_custom_call.1} parent=5 // pred_region
        // Predicated region
        $region41: #{tpu_custom_call.1} parent=39 // pred_check
          %p332 = pneg %p88
        $region42: #{tpu_custom_call.1} parent=39 // pred_check_branch
          %334 = sbr.rel (%p332) target = $region44
        $region43: #{tpu_custom_call.1} parent=39 // pred_region
          %s335 = sand.u32 %s78, 1
          %s336 = scalar_lea.sflag [#allocation8], %s335
          %s337 = sand.u32 %s78, 1
          %s338 = smul.addr %s337, 8
          %s339 = scalar_lea.vmem [#allocation7], %s338
          %s341 = ssub.s32 128, 128
          %342 = vsyncadd %s336, %s341
          %s343 = sadd.s32 %s34, %s33
          %s344 = smul.addr %s343, 128
          %s345 = scalar_lea.hbm %s1, %s344
          %s347 = sshll.u32 %s339, 4
          %s348 = int_to_ptr.vmem [resolvable:$true] %s347
          %350 = dma.hbm_to_vmem [thread:$0]  %s345, 128, %s348, %s336
        $region44: #{tpu_custom_call.1} parent=39 // pred_fallthru
          _
        // Predicated region
        $region45: #{tpu_custom_call.1} parent=39 // pred_check
          %p351 = pneg %p116
        $region46: #{tpu_custom_call.1} parent=39 // pred_check_branch
          %353 = sbr.rel (%p351) target = $region48
        $region47: #{tpu_custom_call.1} parent=39 // pred_region
          %s354 = sand.u32 %s26, 1
          %s355 = scalar_lea.sflag [#allocation11], %s354
          %s356 = sand.u32 %s106, 1
          %s357 = smul.addr %s356, 8
          %s358 = scalar_lea.vmem [#allocation10], %s357
          %s360 = ssub.s32 128, 128
          %361 = vsyncadd %s355, %s360
          %s362 = sadd.s32 %s35, %s33
          %s363 = smul.addr %s362, 128
          %s364 = scalar_lea.hbm %s2, %s363
          %s366 = sshll.u32 %s358, 4
          %s367 = int_to_ptr.vmem [resolvable:$true] %s366
          %369 = dma.hbm_to_vmem [thread:$0]  %s364, 128, %s367, %s355
        $region48: #{tpu_custom_call.1} parent=39 // pred_fallthru
          _
      $region40: #{tpu_custom_call.1} parent=5 // pred_fallthru
        _
      %p370 = scmp.le.s32.totalorder 1, %s26
      %p371 = scmp.lt.s32.totalorder %s26, 3
      %p372 = pnand %p370, %p371
      %p373 = pneg %p372
      // Predicated region
      $region49: #{tpu_custom_call.1} parent=5 // pred_check
        _
      $region50: #{tpu_custom_call.1} parent=5 // pred_check_branch
        %375 = sbr.rel (%p372) target = $region52
      $region51: #{tpu_custom_call.1} parent=5 // pred_region
        %s376 = ssub.s32 %s26, 1
        %s377 = sand.u32 %s81, 1
        %s378 = scalar_lea.sflag [#allocation8], %s377
        %s379 = sand.u32 %s81, 1
        %s380 = smul.addr %s379, 8
        %s381 = scalar_lea.vmem [#allocation7], %s380
        // Predicated region
        $region53: #{tpu_custom_call.1} parent=51 // pred_check
          %p382 = pneg %p94
        $region54: #{tpu_custom_call.1} parent=51 // pred_check_branch
          %384 = sbr.rel (%p382) target = $region56
        $region55: #{tpu_custom_call.1} parent=51 // pred_region
          %385 = dma.done %s378, 128
        $region56: #{tpu_custom_call.1} parent=51 // pred_fallthru
          _
        %s386 = sand.u32 %s31, 1
        %s387 = scalar_lea.sflag [#allocation11], %s386
        %s388 = sand.u32 %s109, 1
        %s389 = smul.addr %s388, 8
        %s390 = scalar_lea.vmem [#allocation10], %s389
        // Predicated region
        $region57: #{tpu_custom_call.1} parent=51 // pred_check
          %p391 = pneg %p122
        $region58: #{tpu_custom_call.1} parent=51 // pred_check_branch
          %393 = sbr.rel (%p391) target = $region60
        $region59: #{tpu_custom_call.1} parent=51 // pred_region
          %394 = dma.done %s387, 128
        $region60: #{tpu_custom_call.1} parent=51 // pred_fallthru
          _
        // Predicated region
        $region61: #{tpu_custom_call.1} parent=51 // pred_check
          %p395 = pneg %p143
        $region62: #{tpu_custom_call.1} parent=51 // pred_check_branch
          %397 = sbr.rel (%p395) target = $region64
        $region63: #{tpu_custom_call.1} parent=51 // pred_region
          %398 = dma.done [#allocation11], 512
        $region64: #{tpu_custom_call.1} parent=51 // pred_fallthru
          _
        // Predicated region
        $region65: #{tpu_custom_call.1} parent=51 // pred_check
          %p399 = pneg %p164
        $region66: #{tpu_custom_call.1} parent=51 // pred_check_branch
          %401 = sbr.rel (%p399) target = $region68
        $region67: #{tpu_custom_call.1} parent=51 // pred_region
          %402 = dma.done [#allocation14], 512
        $region68: #{tpu_custom_call.1} parent=51 // pred_fallthru
          _
        // Predicated region
        $region69: #{tpu_custom_call.1} parent=51 // pred_check
          %p403 = pneg %p185
        $region70: #{tpu_custom_call.1} parent=51 // pred_check_branch
          %405 = sbr.rel (%p403) target = $region72
        $region71: #{tpu_custom_call.1} parent=51 // pred_region
          %406 = dma.done [#allocation14], 512
        $region72: #{tpu_custom_call.1} parent=51 // pred_fallthru
          _
        // Predicated region
        $region73: #{tpu_custom_call.1} parent=51 // pred_check
          %p407 = pneg %p206
        $region74: #{tpu_custom_call.1} parent=51 // pred_check_branch
          %409 = sbr.rel (%p407) target = $region76
        $region75: #{tpu_custom_call.1} parent=51 // pred_region
          %410 = dma.done [#allocation17], 512
        $region76: #{tpu_custom_call.1} parent=51 // pred_fallthru
          _
        %p411 = pneg %p66
        %p412 = pneg %p63
        %s413 = sand.u32 %s81, 1
        %s414 = scalar_lea.sflag [#allocation8], %s413
        %s415 = sand.u32 %s81, 1
        %s416 = smul.addr %s415, 8
        %s417 = scalar_lea.vmem [#allocation7], %s416
        %p418 = pneg %p94
        %p419 = pneg %p91
        %s420 = sand.u32 %s31, 1
        %s421 = scalar_lea.sflag [#allocation11], %s420
        %s422 = sand.u32 %s109, 1
        %s423 = smul.addr %s422, 8
        %s424 = scalar_lea.vmem [#allocation10], %s423
        %p425 = pneg %p122
        %p426 = pneg %p119
        %p427 = pneg %p143
        %p428 = pneg %p140
        %p429 = pneg %p164
        %p430 = pneg %p161
        %p431 = pneg %p185
        %p432 = pneg %p182
        %p433 = pneg %p206
        %p434 = pneg %p203
        %p435 = pneg %p227
        %p436 = pneg %p224
        %p437 = pneg %p255
        %p438 = pneg %p252
        %s439 = sand.u32 %s242, 1
        %s440 = scalar_lea.sflag [#allocation9], %s439
        %s441 = sand.u32 %s242, 1
        %s442 = smul.addr %s441, 8
        %s443 = scalar_lea.vmem [#allocation18], %s442
        %p444 = scmp.eq.s32.totalorder %s38, 0
        // Predicated region
        $region77: #{tpu_custom_call.1} parent=51 // pred_check
          %p445 = pneg %p444
        $region78: #{tpu_custom_call.1} parent=51 // pred_check_branch
          %447 = sbr.rel (%p445) target = $region80
        $region79: #{tpu_custom_call.1} parent=51 // pred_region
          %v448 = vld [vmem:[%s381] sm:$0xff]
          %v449 = vld [vmem:[#allocation12] sm:$0xff]
          %v450 = vld [vmem:[#allocation12 + $0x8] sm:$0xff]
          %v451 = vld [vmem:[#allocation12 + $0x10] sm:$0xff]
          %v452 = vld [vmem:[#allocation12 + $0x18] sm:$0xff]
          %vm453 = vcmask 261120
          %v455 = vsel %vm453, %v448, 0
          %457 = vmatprep.subr.mxu0 0.0
          %458 = vmatpush1.msra.mxu0 0.0
          %459 = vmatprep.subr.mxu0 0.0
          %460 = vmatpush1.msra.mxu0 0.0
          %461 = vmatprep.subr.mxu0 0.0
          %462 = vmatpush1.msra.mxu0 0.0
          %463 = vmatprep.subr.mxu0 0.0
          %464 = vmatpush1.msra.mxu0 0.0
          %465 = vmatprep.subr.mxu0 0.0
          %466 = vmatpush1.msra.mxu0 0.0
          %467 = vmatprep.subr.mxu0 0.0
          %468 = vmatpush1.msra.mxu0 0.0
          %469 = vmatprep.subr.mxu0 0.0
          %470 = vmatpush1.msra.mxu0 0.0
          %471 = vmatprep.subr.mxu0 0.0
          %472 = vmatpush1.msra.mxu0 0.0
          %473 = vmatprep.subr.mxu0 0.0
          %474 = vmatpush1.msra.mxu0 0.0
          %475 = vmatprep.subr.mxu0 0.0
          %476 = vmatpush1.msra.mxu0 0.0
          %477 = vmatprep.subr.mxu0 0.0
          %478 = vmatpush1.msra.mxu0 0.0
          %479 = vmatprep.subr.mxu0 0.0
          %480 = vmatpush1.msra.mxu0 0.0
          %481 = vmatprep.subr.mxu0 0.0
          %482 = vmatpush1.msra.mxu0 %v452
          %483 = vmatprep.subr.mxu0 0.0
          %484 = vmatpush1.msra.mxu0 %v451
          %485 = vmatprep.subr.mxu0 0.0
          %486 = vmatpush1.msra.mxu0 %v450
          %487 = vmatprep.subr.mxu0 0.0
          %488 = vmatpush1.msra.mxu0 %v449
          %489 = vmatprep.subr.mxu0 0.0
          %490 = vmatpush2.msra.mxu0 0.0
          %491 = vmatprep.subr.mxu0 0.0
          %492 = vmatpush2.msra.mxu0 0.0
          %493 = vmatprep.subr.mxu0 0.0
          %494 = vmatpush2.msra.mxu0 0.0
          %495 = vmatprep.subr.mxu0 0.0
          %496 = vmatpush2.msra.mxu0 0.0
          %497 = vmatprep.subr.mxu0 0.0
          %498 = vmatpush2.msra.mxu0 0.0
          %499 = vmatprep.subr.mxu0 0.0
          %500 = vmatpush2.msra.mxu0 0.0
          %501 = vmatprep.subr.mxu0 0.0
          %502 = vmatpush2.msra.mxu0 0.0
          %503 = vmatprep.subr.mxu0 0.0
          %504 = vmatpush2.msra.mxu0 0.0
          %505 = vmatprep.subr.mxu0 0.0
          %506 = vmatpush2.msra.mxu0 0.0
          %507 = vmatprep.subr.mxu0 0.0
          %508 = vmatpush2.msra.mxu0 0.0
          %509 = vmatprep.subr.mxu0 0.0
          %510 = vmatpush2.msra.mxu0 0.0
          %511 = vmatprep.subr.mxu0 0.0
          %512 = vmatpush2.msra.mxu0 0.0
          %513 = vmatprep.subr.mxu0 0.0
          %514 = vmatpush2.msra.mxu0 0.0
          %515 = vmatprep.subr.mxu0 0.0
          %516 = vmatpush2.msra.mxu0 0.0
          %517 = vmatprep.subr.mxu0 0.0
          %518 = vmatpush2.msra.mxu0 0.0
          %519 = vmatprep.subr.mxu0 0.0
          %520 = vmatpush2.msra.mxu0 0.0
          %521 = vmatprep.mubr.f32.mxu0 0.0
          %522 = vmatmul.mubr.f32.gmra.mxu0 %v455
          %v523 = vpop.f32.mrf.mxu0
          %v524 = vadd.f32 0.0, %v523
          %v525 = vpop.f32.mrf.mxu0
          %526 = vdwg.mxu0
          %v527 = vmul.f32 %v524, 0.17677669
          %528 = vst.msk [vmem:[#allocation2] sm:$0xff] %vm453, %v527
          %vm529 = vcmask 7168
          %530 = vst.msk [vmem:[#allocation3] sm:$0xff] %vm529, -1e+30
          %531 = vst.msk [vmem:[#allocation3 + $0x8] sm:$0xff] %vm529, -1e+30
          %532 = vst.msk [vmem:[#allocation3 + $0x10] sm:$0xff] %vm529, -1e+30
          %533 = vst.msk [vmem:[#allocation3 + $0x18] sm:$0xff] %vm529, -1e+30
          %534 = vst.msk [vmem:[#allocation4] sm:$0xff] %vm529, 0.0
          %535 = vst.msk [vmem:[#allocation4 + $0x8] sm:$0xff] %vm529, 0.0
          %536 = vst.msk [vmem:[#allocation4 + $0x10] sm:$0xff] %vm529, 0.0
          %537 = vst.msk [vmem:[#allocation4 + $0x18] sm:$0xff] %vm529, 0.0
          %vm538 = vcmask 64512
          %539 = vst.msk [vmem:[#allocation5] sm:$0xff] %vm538, 0.0
          %540 = vst.msk [vmem:[#allocation5 + $0x8] sm:$0xff] %vm538, 0.0
          %541 = vst.msk [vmem:[#allocation5 + $0x10] sm:$0xff] %vm538, 0.0
          %542 = vst.msk [vmem:[#allocation5 + $0x18] sm:$0xff] %vm538, 0.0
        $region80: #{tpu_custom_call.1} parent=51 // pred_fallthru
          _
        %s543 = sadd.s32 %s37, 1
        %s544 = smul.u32 %s543, 8
        %s545 = ssub.s32 %s544, 1
        %s546 = smul.u32 %s38, 8
        %p547 = scmp.le.s32.totalorder %s546, %s545
        // Predicated region
        $region81: #{tpu_custom_call.1} parent=51 // pred_check
          %p548 = pneg %p547
        $region82: #{tpu_custom_call.1} parent=51 // pred_check_branch
          %550 = sbr.rel (%p548) target = $region84
        $region83: #{tpu_custom_call.1} parent=51 // pred_region
          %v551 = vld [vmem:[%s390] sm:$0xff]
          %v552 = vld [vmem:[#allocation13] sm:$0xff]
          %v553 = vld [vmem:[#allocation13 + $0x8] sm:$0xff]
          %v554 = vld [vmem:[#allocation13 + $0x10] sm:$0xff]
          %v555 = vld [vmem:[#allocation13 + $0x18] sm:$0xff]
          %vm556 = vcmask 261120
          %v558 = vsel %vm556, %v551, 0
          %560 = vmatprep.subr.mxu0 0.0
          %561 = vmatpush1.msra.mxu0 0.0
          %562 = vmatprep.subr.mxu0 0.0
          %563 = vmatpush1.msra.mxu0 0.0
          %564 = vmatprep.subr.mxu0 0.0
          %565 = vmatpush1.msra.mxu0 0.0
          %566 = vmatprep.subr.mxu0 0.0
          %567 = vmatpush1.msra.mxu0 0.0
          %568 = vmatprep.subr.mxu0 0.0
          %569 = vmatpush1.msra.mxu0 0.0
          %570 = vmatprep.subr.mxu0 0.0
          %571 = vmatpush1.msra.mxu0 0.0
          %572 = vmatprep.subr.mxu0 0.0
          %573 = vmatpush1.msra.mxu0 0.0
          %574 = vmatprep.subr.mxu0 0.0
          %575 = vmatpush1.msra.mxu0 0.0
          %576 = vmatprep.subr.mxu0 0.0
          %577 = vmatpush1.msra.mxu0 0.0
          %578 = vmatprep.subr.mxu0 0.0
          %579 = vmatpush1.msra.mxu0 0.0
          %580 = vmatprep.subr.mxu0 0.0
          %581 = vmatpush1.msra.mxu0 0.0
          %582 = vmatprep.subr.mxu0 0.0
          %583 = vmatpush1.msra.mxu0 0.0
          %584 = vmatprep.subr.mxu0 0.0
          %585 = vmatpush1.msra.mxu0 %v555
          %586 = vmatprep.subr.mxu0 0.0
          %587 = vmatpush1.msra.mxu0 %v554
          %588 = vmatprep.subr.mxu0 0.0
          %589 = vmatpush1.msra.mxu0 %v553
          %590 = vmatprep.subr.mxu0 0.0
          %591 = vmatpush1.msra.mxu0 %v552
          %592 = vmatprep.subr.mxu0 0.0
          %593 = vmatpush2.msra.mxu0 0.0
          %594 = vmatprep.subr.mxu0 0.0
          %595 = vmatpush2.msra.mxu0 0.0
          %596 = vmatprep.subr.mxu0 0.0
          %597 = vmatpush2.msra.mxu0 0.0
          %598 = vmatprep.subr.mxu0 0.0
          %599 = vmatpush2.msra.mxu0 0.0
          %600 = vmatprep.subr.mxu0 0.0
          %601 = vmatpush2.msra.mxu0 0.0
          %602 = vmatprep.subr.mxu0 0.0
          %603 = vmatpush2.msra.mxu0 0.0
          %604 = vmatprep.subr.mxu0 0.0
          %605 = vmatpush2.msra.mxu0 0.0
          %606 = vmatprep.subr.mxu0 0.0
          %607 = vmatpush2.msra.mxu0 0.0
          %608 = vmatprep.subr.mxu0 0.0
          %609 = vmatpush2.msra.mxu0 0.0
          %610 = vmatprep.subr.mxu0 0.0
          %611 = vmatpush2.msra.mxu0 0.0
          %612 = vmatprep.subr.mxu0 0.0
          %613 = vmatpush2.msra.mxu0 0.0
          %614 = vmatprep.subr.mxu0 0.0
          %615 = vmatpush2.msra.mxu0 0.0
          %616 = vmatprep.subr.mxu0 0.0
          %617 = vmatpush2.msra.mxu0 0.0
          %618 = vmatprep.subr.mxu0 0.0
          %619 = vmatpush2.msra.mxu0 0.0
          %620 = vmatprep.subr.mxu0 0.0
          %621 = vmatpush2.msra.mxu0 0.0
          %622 = vmatprep.subr.mxu0 0.0
          %623 = vmatpush2.msra.mxu0 0.0
          %624 = vmatprep.mubr.f32.mxu0 0.0
          %625 = vmatmul.mubr.f32.gmra.mxu0 %v558
          %v626 = vpop.f32.mrf.mxu0
          %v627 = vadd.f32 0.0, %v626
          %v628 = vpop.f32.mrf.mxu0
          %629 = vdwg.mxu0
          %v630 = vld [vmem:[#allocation15] sm:$0xff]
          %v631 = vld [vmem:[#allocation15 + $0x8] sm:$0xff]
          %v632 = vld [vmem:[#allocation15 + $0x10] sm:$0xff]
          %v633 = vld [vmem:[#allocation15 + $0x18] sm:$0xff]
          %634 = vmatprep.subr.mxu0 0.0
          %635 = vmatpush1.msra.mxu0 0.0
          %636 = vmatprep.subr.mxu0 0.0
          %637 = vmatpush1.msra.mxu0 0.0
          %638 = vmatprep.subr.mxu0 0.0
          %639 = vmatpush1.msra.mxu0 0.0
          %640 = vmatprep.subr.mxu0 0.0
          %641 = vmatpush1.msra.mxu0 0.0
          %642 = vmatprep.subr.mxu0 0.0
          %643 = vmatpush1.msra.mxu0 0.0
          %644 = vmatprep.subr.mxu0 0.0
          %645 = vmatpush1.msra.mxu0 0.0
          %646 = vmatprep.subr.mxu0 0.0
          %647 = vmatpush1.msra.mxu0 0.0
          %648 = vmatprep.subr.mxu0 0.0
          %649 = vmatpush1.msra.mxu0 0.0
          %650 = vmatprep.subr.mxu0 0.0
          %651 = vmatpush1.msra.mxu0 0.0
          %652 = vmatprep.subr.mxu0 0.0
          %653 = vmatpush1.msra.mxu0 0.0
          %654 = vmatprep.subr.mxu0 0.0
          %655 = vmatpush1.msra.mxu0 0.0
          %656 = vmatprep.subr.mxu0 0.0
          %657 = vmatpush1.msra.mxu0 0.0
          %658 = vmatprep.subr.mxu0 0.0
          %659 = vmatpush1.msra.mxu0 %v633
          %660 = vmatprep.subr.mxu0 0.0
          %661 = vmatpush1.msra.mxu0 %v632
          %662 = vmatprep.subr.mxu0 0.0
          %663 = vmatpush1.msra.mxu0 %v631
          %664 = vmatprep.subr.mxu0 0.0
          %665 = vmatpush1.msra.mxu0 %v630
          %666 = vmatprep.subr.mxu0 0.0
          %667 = vmatpush2.msra.mxu0 0.0
          %668 = vmatprep.subr.mxu0 0.0
          %669 = vmatpush2.msra.mxu0 0.0
          %670 = vmatprep.subr.mxu0 0.0
          %671 = vmatpush2.msra.mxu0 0.0
          %672 = vmatprep.subr.mxu0 0.0
          %673 = vmatpush2.msra.mxu0 0.0
          %674 = vmatprep.subr.mxu0 0.0
          %675 = vmatpush2.msra.mxu0 0.0
          %676 = vmatprep.subr.mxu0 0.0
          %677 = vmatpush2.msra.mxu0 0.0
          %678 = vmatprep.subr.mxu0 0.0
          %679 = vmatpush2.msra.mxu0 0.0
          %680 = vmatprep.subr.mxu0 0.0
          %681 = vmatpush2.msra.mxu0 0.0
          %682 = vmatprep.subr.mxu0 0.0
          %683 = vmatpush2.msra.mxu0 0.0
          %684 = vmatprep.subr.mxu0 0.0
          %685 = vmatpush2.msra.mxu0 0.0
          %686 = vmatprep.subr.mxu0 0.0
          %687 = vmatpush2.msra.mxu0 0.0
          %688 = vmatprep.subr.mxu0 0.0
          %689 = vmatpush2.msra.mxu0 0.0
          %690 = vmatprep.subr.mxu0 0.0
          %691 = vmatpush2.msra.mxu0 0.0
          %692 = vmatprep.subr.mxu0 0.0
          %693 = vmatpush2.msra.mxu0 0.0
          %694 = vmatprep.subr.mxu0 0.0
          %695 = vmatpush2.msra.mxu0 0.0
          %696 = vmatprep.subr.mxu0 0.0
          %697 = vmatpush2.msra.mxu0 0.0
          %698 = vmatprep.mubr.f32.mxu0 0.0
          %699 = vmatmul.mubr.f32.gmra.mxu0 %v558
          %v700 = vpop.f32.mrf.mxu0
          %v701 = vadd.f32 0.0, %v700
          %v702 = vpop.f32.mrf.mxu0
          %703 = vdwg.mxu0
          %v704 = vld [vmem:[#allocation2] sm:$0xff]
          %s705 = smul.u32 %s37, 8
          %v706 = vlaneseq
          %v707 = vshrl.u32 %v706, 7
          %v708 = vstv %s705
          %v709 = vadd.s32 %v708, %v707
          %v710 = vlaneseq
          %v711 = vand.u32 %v710, 127
          %v712 = vstv %s546
          %v713 = vadd.s32 %v712, %v711
          %vm714 = vcmp.le.s32.totalorder %v713, %v709
          %v715 = vsel %vm714, 0.0, -1e+30
          %vm716 = vcmask 64512
          %v718 = vsel %vm716, %v704, 0
          %v721 = vsel %vm716, %v627, 0
          %723 = vmatprep.subr.mxu0 0.0
          %724 = vmatpush1.xpose.msra.mxu0 0.0
          %725 = vmatprep.subr.mxu0 0.0
          %726 = vmatpush1.xpose.msra.mxu0 0.0
          %727 = vmatprep.subr.mxu0 0.0
          %728 = vmatpush1.xpose.msra.mxu0 0.0
          %729 = vmatprep.subr.mxu0 0.0
          %730 = vmatpush1.xpose.msra.mxu0 0.0
          %731 = vmatprep.subr.mxu0 0.0
          %732 = vmatpush1.xpose.msra.mxu0 0.0
          %733 = vmatprep.subr.mxu0 0.0
          %734 = vmatpush1.xpose.msra.mxu0 0.0
          %735 = vmatprep.subr.mxu0 0.0
          %736 = vmatpush1.xpose.msra.mxu0 0.0
          %737 = vmatprep.subr.mxu0 0.0
          %738 = vmatpush1.xpose.msra.mxu0 0.0
          %739 = vmatprep.subr.mxu0 0.0
          %740 = vmatpush1.xpose.msra.mxu0 0.0
          %741 = vmatprep.subr.mxu0 0.0
          %742 = vmatpush1.xpose.msra.mxu0 0.0
          %743 = vmatprep.subr.mxu0 0.0
          %744 = vmatpush1.xpose.msra.mxu0 0.0
          %745 = vmatprep.subr.mxu0 0.0
          %746 = vmatpush1.xpose.msra.mxu0 0.0
          %747 = vmatprep.subr.mxu0 0.0
          %748 = vmatpush1.xpose.msra.mxu0 0.0
          %749 = vmatprep.subr.mxu0 0.0
          %750 = vmatpush1.xpose.msra.mxu0 0.0
          %751 = vmatprep.subr.mxu0 0.0
          %752 = vmatpush1.xpose.msra.mxu0 0.0
          %753 = vmatprep.subr.mxu0 0.0
          %754 = vmatpush1.xpose.msra.mxu0 %v721
          %755 = vmatprep.subr.mxu0 0.0
          %756 = vmatpush2.xpose.msra.mxu0 0.0
          %757 = vmatprep.subr.mxu0 0.0
          %758 = vmatpush2.xpose.msra.mxu0 0.0
          %759 = vmatprep.subr.mxu0 0.0
          %760 = vmatpush2.xpose.msra.mxu0 0.0
          %761 = vmatprep.subr.mxu0 0.0
          %762 = vmatpush2.xpose.msra.mxu0 0.0
          %763 = vmatprep.subr.mxu0 0.0
          %764 = vmatpush2.xpose.msra.mxu0 0.0
          %765 = vmatprep.subr.mxu0 0.0
          %766 = vmatpush2.xpose.msra.mxu0 0.0
          %767 = vmatprep.subr.mxu0 0.0
          %768 = vmatpush2.xpose.msra.mxu0 0.0
          %769 = vmatprep.subr.mxu0 0.0
          %770 = vmatpush2.xpose.msra.mxu0 0.0
          %771 = vmatprep.subr.mxu0 0.0
          %772 = vmatpush2.xpose.msra.mxu0 0.0
          %773 = vmatprep.subr.mxu0 0.0
          %774 = vmatpush2.xpose.msra.mxu0 0.0
          %775 = vmatprep.subr.mxu0 0.0
          %776 = vmatpush2.xpose.msra.mxu0 0.0
          %777 = vmatprep.subr.mxu0 0.0
          %778 = vmatpush2.xpose.msra.mxu0 0.0
          %779 = vmatprep.subr.mxu0 0.0
          %780 = vmatpush2.xpose.msra.mxu0 0.0
          %781 = vmatprep.subr.mxu0 0.0
          %782 = vmatpush2.xpose.msra.mxu0 0.0
          %783 = vmatprep.subr.mxu0 0.0
          %784 = vmatpush2.xpose.msra.mxu0 0.0
          %785 = vmatprep.subr.mxu0 0.0
          %786 = vmatpush2.xpose.msra.mxu0 0.0
          %787 = vmatprep.mubr.f32.mxu0 0.0
          %788 = vmatmul.mubr.f32.gmra.mxu0 %v718
          %v789 = vpop.f32.mrf.mxu0
          %v790 = vadd.f32 %v715, %v789
          %v791 = vpop.f32.mrf.mxu0
          %792 = vdwg.mxu0
          %v793 = vld [vmem:[#allocation3] sm:$0xff]
          %v794 = vsel %vm716, %v790, -inf
          %795 = vmax.xlane.f32.xlu0 %v794
          %v796 = vpop.xlane.xlu0 %795
          %v797 = vmax.f32 %v793, %v796
          %v798 = vsub.f32 %v793, %v797
          %v799 = vmul.f32 %v798, 1.442695
          %v800 = vpow.pop %v799
          %802 = vset.pattern.permute.xlu0 0
          %803 = vperm.xlu0 %802, %v797
          %v804 = vpop.permute.xlu0 %803
          %v806 = vsub.f32 %v790, %v804
          %v807 = vmul.f32 %v806, 1.442695
          %v808 = vpow.pop %v807
          %v809 = vld [vmem:[#allocation4] sm:$0xff]
          %v810 = vmul.f32 %v800, %v809
          %v811 = vsel %vm716, %v808, 0.0
          %812 = vadd.xlane.f32.xlu0 %v811
          %v813 = vpop.xlane.xlu0 %812
          %v814 = vadd.f32 %v810, %v813
          %vm815 = vcmask 7168
          %816 = vst.msk [vmem:[#allocation4] sm:$0xff] %vm815, %v814
          %v817 = vld [vmem:[#allocation5] sm:$0xff]
          %819 = vset.pattern.permute.xlu0 0
          %820 = vperm.xlu0 %819, %v800
          %v821 = vpop.permute.xlu0 %820
          %v823 = vmul.f32 %v821, %v817
          %v825 = vsel %vm716, %v808, 0
          %827 = vmatprep.subr.mxu0 0.0
          %828 = vmatpush1.msra.mxu0 0.0
          %829 = vmatprep.subr.mxu0 0.0
          %830 = vmatpush1.msra.mxu0 0.0
          %831 = vmatprep.subr.mxu0 0.0
          %832 = vmatpush1.msra.mxu0 0.0
          %833 = vmatprep.subr.mxu0 0.0
          %834 = vmatpush1.msra.mxu0 0.0
          %835 = vmatprep.subr.mxu0 0.0
          %836 = vmatpush1.msra.mxu0 0.0
          %837 = vmatprep.subr.mxu0 0.0
          %838 = vmatpush1.msra.mxu0 0.0
          %839 = vmatprep.subr.mxu0 0.0
          %840 = vmatpush1.msra.mxu0 0.0
          %841 = vmatprep.subr.mxu0 0.0
          %842 = vmatpush1.msra.mxu0 0.0
          %843 = vmatprep.subr.mxu0 0.0
          %844 = vmatpush1.msra.mxu0 0.0
          %845 = vmatprep.subr.mxu0 0.0
          %846 = vmatpush1.msra.mxu0 0.0
          %847 = vmatprep.subr.mxu0 0.0
          %848 = vmatpush1.msra.mxu0 0.0
          %849 = vmatprep.subr.mxu0 0.0
          %850 = vmatpush1.msra.mxu0 0.0
          %851 = vmatprep.subr.mxu0 0.0
          %852 = vmatpush1.msra.mxu0 0.0
          %853 = vmatprep.subr.mxu0 0.0
          %854 = vmatpush1.msra.mxu0 0.0
          %855 = vmatprep.subr.mxu0 0.0
          %856 = vmatpush1.msra.mxu0 0.0
          %857 = vmatprep.subr.mxu0 0.0
          %858 = vmatpush1.msra.mxu0 %v701
          %859 = vmatprep.subr.mxu0 0.0
          %860 = vmatpush2.msra.mxu0 0.0
          %861 = vmatprep.subr.mxu0 0.0
          %862 = vmatpush2.msra.mxu0 0.0
          %863 = vmatprep.subr.mxu0 0.0
          %864 = vmatpush2.msra.mxu0 0.0
          %865 = vmatprep.subr.mxu0 0.0
          %866 = vmatpush2.msra.mxu0 0.0
          %867 = vmatprep.subr.mxu0 0.0
          %868 = vmatpush2.msra.mxu0 0.0
          %869 = vmatprep.subr.mxu0 0.0
          %870 = vmatpush2.msra.mxu0 0.0
          %871 = vmatprep.subr.mxu0 0.0
          %872 = vmatpush2.msra.mxu0 0.0
          %873 = vmatprep.subr.mxu0 0.0
          %874 = vmatpush2.msra.mxu0 0.0
          %875 = vmatprep.subr.mxu0 0.0
          %876 = vmatpush2.msra.mxu0 0.0
          %877 = vmatprep.subr.mxu0 0.0
          %878 = vmatpush2.msra.mxu0 0.0
          %879 = vmatprep.subr.mxu0 0.0
          %880 = vmatpush2.msra.mxu0 0.0
          %881 = vmatprep.subr.mxu0 0.0
          %882 = vmatpush2.msra.mxu0 0.0
          %883 = vmatprep.subr.mxu0 0.0
          %884 = vmatpush2.msra.mxu0 0.0
          %885 = vmatprep.subr.mxu0 0.0
          %886 = vmatpush2.msra.mxu0 0.0
          %887 = vmatprep.subr.mxu0 0.0
          %888 = vmatpush2.msra.mxu0 0.0
          %889 = vmatprep.subr.mxu0 0.0
          %890 = vmatpush2.msra.mxu0 0.0
          %891 = vmatprep.mubr.f32.mxu0 0.0
          %892 = vmatmul.mubr.f32.gmra.mxu0 %v825
          %v893 = vpop.f32.mrf.mxu0
          %v894 = vadd.f32 0.0, %v893
          %v895 = vpop.f32.mrf.mxu0
          %896 = vdwg.mxu0
          %v897 = vadd.f32 %v823, %v894
          %898 = vst.msk [vmem:[#allocation5] sm:$0xff] %vm716, %v897
          %899 = vst.msk [vmem:[#allocation3] sm:$0xff] %vm815, %v797
          %900 = vrot.lane.b32.xlu0 %v704, 120
          %v901 = vpop.permute.xlu0 %900
          %902 = vrot.lane.b32.xlu0 %v627, 120
          %v903 = vpop.permute.xlu0 %902
          %v904 = vsel %vm716, %v901, 0
          %v906 = vsel %vm716, %v903, 0
          %908 = vmatprep.subr.mxu0 0.0
          %909 = vmatpush1.xpose.msra.mxu0 0.0
          %910 = vmatprep.subr.mxu0 0.0
          %911 = vmatpush1.xpose.msra.mxu0 0.0
          %912 = vmatprep.subr.mxu0 0.0
          %913 = vmatpush1.xpose.msra.mxu0 0.0
          %914 = vmatprep.subr.mxu0 0.0
          %915 = vmatpush1.xpose.msra.mxu0 0.0
          %916 = vmatprep.subr.mxu0 0.0
          %917 = vmatpush1.xpose.msra.mxu0 0.0
          %918 = vmatprep.subr.mxu0 0.0
          %919 = vmatpush1.xpose.msra.mxu0 0.0
          %920 = vmatprep.subr.mxu0 0.0
          %921 = vmatpush1.xpose.msra.mxu0 0.0
          %922 = vmatprep.subr.mxu0 0.0
          %923 = vmatpush1.xpose.msra.mxu0 0.0
          %924 = vmatprep.subr.mxu0 0.0
          %925 = vmatpush1.xpose.msra.mxu0 0.0
          %926 = vmatprep.subr.mxu0 0.0
          %927 = vmatpush1.xpose.msra.mxu0 0.0
          %928 = vmatprep.subr.mxu0 0.0
          %929 = vmatpush1.xpose.msra.mxu0 0.0
          %930 = vmatprep.subr.mxu0 0.0
          %931 = vmatpush1.xpose.msra.mxu0 0.0
          %932 = vmatprep.subr.mxu0 0.0
          %933 = vmatpush1.xpose.msra.mxu0 0.0
          %934 = vmatprep.subr.mxu0 0.0
          %935 = vmatpush1.xpose.msra.mxu0 0.0
          %936 = vmatprep.subr.mxu0 0.0
          %937 = vmatpush1.xpose.msra.mxu0 0.0
          %938 = vmatprep.subr.mxu0 0.0
          %939 = vmatpush1.xpose.msra.mxu0 %v906
          %940 = vmatprep.subr.mxu0 0.0
          %941 = vmatpush2.xpose.msra.mxu0 0.0
          %942 = vmatprep.subr.mxu0 0.0
          %943 = vmatpush2.xpose.msra.mxu0 0.0
          %944 = vmatprep.subr.mxu0 0.0
          %945 = vmatpush2.xpose.msra.mxu0 0.0
          %946 = vmatprep.subr.mxu0 0.0
          %947 = vmatpush2.xpose.msra.mxu0 0.0
          %948 = vmatprep.subr.mxu0 0.0
          %949 = vmatpush2.xpose.msra.mxu0 0.0
          %950 = vmatprep.subr.mxu0 0.0
          %951 = vmatpush2.xpose.msra.mxu0 0.0
          %952 = vmatprep.subr.mxu0 0.0
          %953 = vmatpush2.xpose.msra.mxu0 0.0
          %954 = vmatprep.subr.mxu0 0.0
          %955 = vmatpush2.xpose.msra.mxu0 0.0
          %956 = vmatprep.subr.mxu0 0.0
          %957 = vmatpush2.xpose.msra.mxu0 0.0
          %958 = vmatprep.subr.mxu0 0.0
          %959 = vmatpush2.xpose.msra.mxu0 0.0
          %960 = vmatprep.subr.mxu0 0.0
          %961 = vmatpush2.xpose.msra.mxu0 0.0
          %962 = vmatprep.subr.mxu0 0.0
          %963 = vmatpush2.xpose.msra.mxu0 0.0
          %964 = vmatprep.subr.mxu0 0.0
          %965 = vmatpush2.xpose.msra.mxu0 0.0
          %966 = vmatprep.subr.mxu0 0.0
          %967 = vmatpush2.xpose.msra.mxu0 0.0
          %968 = vmatprep.subr.mxu0 0.0
          %969 = vmatpush2.xpose.msra.mxu0 0.0
          %970 = vmatprep.subr.mxu0 0.0
          %971 = vmatpush2.xpose.msra.mxu0 0.0
          %972 = vmatprep.mubr.f32.mxu0 0.0
          %973 = vmatmul.mubr.f32.gmra.mxu0 %v904
          %v974 = vpop.f32.mrf.mxu0
          %v975 = vadd.f32 %v715, %v974
          %v976 = vpop.f32.mrf.mxu0
          %977 = vdwg.mxu0
          %s978 = scalar_lea.vmem [#allocation3], 8
          %v979 = vld [vmem:[%s978] sm:$0xff]
          %v980 = vsel %vm716, %v975, -inf
          %981 = vmax.xlane.f32.xlu0 %v980
          %v982 = vpop.xlane.xlu0 %981
          %v983 = vmax.f32 %v979, %v982
          %v984 = vsub.f32 %v979, %v983
          %v985 = vmul.f32 %v984, 1.442695
          %v986 = vpow.pop %v985
          %988 = vset.pattern.permute.xlu0 0
          %989 = vperm.xlu0 %988, %v983
          %v990 = vpop.permute.xlu0 %989
          %v992 = vsub.f32 %v975, %v990
          %v993 = vmul.f32 %v992, 1.442695
          %v994 = vpow.pop %v993
          %s995 = scalar_lea.vmem [#allocation4], 8
          %v996 = vld [vmem:[%s995] sm:$0xff]
          %v997 = vmul.f32 %v986, %v996
          %v998 = vsel %vm716, %v994, 0.0
          %999 = vadd.xlane.f32.xlu0 %v998
          %v1000 = vpop.xlane.xlu0 %999
          %v1001 = vadd.f32 %v997, %v1000
          %1002 = vst.msk [vmem:[%s995] sm:$0xff] %vm815, %v1001
          %s1003 = scalar_lea.vmem [#allocation5], 8
          %v1004 = vld [vmem:[%s1003] sm:$0xff]
          %1006 = vset.pattern.permute.xlu0 0
          %1007 = vperm.xlu0 %1006, %v986
          %v1008 = vpop.permute.xlu0 %1007
          %v1010 = vmul.f32 %v1008, %v1004
          %1012 = vrot.lane.b32.xlu0 %v701, 120
          %v1013 = vpop.permute.xlu0 %1012
          %v1016 = vsel %vm716, %v994, 0
          %1018 = vmatprep.subr.mxu0 0.0
          %1019 = vmatpush1.msra.mxu0 0.0
          %1020 = vmatprep.subr.mxu0 0.0
          %1021 = vmatpush1.msra.mxu0 0.0
          %1022 = vmatprep.subr.mxu0 0.0
          %1023 = vmatpush1.msra.mxu0 0.0
          %1024 = vmatprep.subr.mxu0 0.0
          %1025 = vmatpush1.msra.mxu0 0.0
          %1026 = vmatprep.subr.mxu0 0.0
          %1027 = vmatpush1.msra.mxu0 0.0
          %1028 = vmatprep.subr.mxu0 0.0
          %1029 = vmatpush1.msra.mxu0 0.0
          %1030 = vmatprep.subr.mxu0 0.0
          %1031 = vmatpush1.msra.mxu0 0.0
          %1032 = vmatprep.subr.mxu0 0.0
          %1033 = vmatpush1.msra.mxu0 0.0
          %1034 = vmatprep.subr.mxu0 0.0
          %1035 = vmatpush1.msra.mxu0 0.0
          %1036 = vmatprep.subr.mxu0 0.0
          %1037 = vmatpush1.msra.mxu0 0.0
          %1038 = vmatprep.subr.mxu0 0.0
          %1039 = vmatpush1.msra.mxu0 0.0
          %1040 = vmatprep.subr.mxu0 0.0
          %1041 = vmatpush1.msra.mxu0 0.0
          %1042 = vmatprep.subr.mxu0 0.0
          %1043 = vmatpush1.msra.mxu0 0.0
          %1044 = vmatprep.subr.mxu0 0.0
          %1045 = vmatpush1.msra.mxu0 0.0
          %1046 = vmatprep.subr.mxu0 0.0
          %1047 = vmatpush1.msra.mxu0 0.0
          %1048 = vmatprep.subr.mxu0 0.0
          %1049 = vmatpush1.msra.mxu0 %v1013
          %1050 = vmatprep.subr.mxu0 0.0
          %1051 = vmatpush2.msra.mxu0 0.0
          %1052 = vmatprep.subr.mxu0 0.0
          %1053 = vmatpush2.msra.mxu0 0.0
          %1054 = vmatprep.subr.mxu0 0.0
          %1055 = vmatpush2.msra.mxu0 0.0
          %1056 = vmatprep.subr.mxu0 0.0
          %1057 = vmatpush2.msra.mxu0 0.0
          %1058 = vmatprep.subr.mxu0 0.0
          %1059 = vmatpush2.msra.mxu0 0.0
          %1060 = vmatprep.subr.mxu0 0.0
          %1061 = vmatpush2.msra.mxu0 0.0
          %1062 = vmatprep.subr.mxu0 0.0
          %1063 = vmatpush2.msra.mxu0 0.0
          %1064 = vmatprep.subr.mxu0 0.0
          %1065 = vmatpush2.msra.mxu0 0.0
          %1066 = vmatprep.subr.mxu0 0.0
          %1067 = vmatpush2.msra.mxu0 0.0
          %1068 = vmatprep.subr.mxu0 0.0
          %1069 = vmatpush2.msra.mxu0 0.0
          %1070 = vmatprep.subr.mxu0 0.0
          %1071 = vmatpush2.msra.mxu0 0.0
          %1072 = vmatprep.subr.mxu0 0.0
          %1073 = vmatpush2.msra.mxu0 0.0
          %1074 = vmatprep.subr.mxu0 0.0
          %1075 = vmatpush2.msra.mxu0 0.0
          %1076 = vmatprep.subr.mxu0 0.0
          %1077 = vmatpush2.msra.mxu0 0.0
          %1078 = vmatprep.subr.mxu0 0.0
          %1079 = vmatpush2.msra.mxu0 0.0
          %1080 = vmatprep.subr.mxu0 0.0
          %1081 = vmatpush2.msra.mxu0 0.0
          %1082 = vmatprep.mubr.f32.mxu0 0.0
          %1083 = vmatmul.mubr.f32.gmra.mxu0 %v1016
          %v1084 = vpop.f32.mrf.mxu0
          %v1085 = vadd.f32 0.0, %v1084
          %v1086 = vpop.f32.mrf.mxu0
          %1087 = vdwg.mxu0
          %v1088 = vadd.f32 %v1010, %v1085
          %1089 = vst.msk [vmem:[%s1003] sm:$0xff] %vm716, %v1088
          %1090 = vst.msk [vmem:[%s978] sm:$0xff] %vm815, %v983
          %1091 = vrot.lane.b32.xlu0 %v704, 112
          %v1092 = vpop.permute.xlu0 %1091
          %1093 = vrot.lane.b32.xlu0 %v627, 112
          %v1094 = vpop.permute.xlu0 %1093
          %v1095 = vsel %vm716, %v1092, 0
          %v1097 = vsel %vm716, %v1094, 0
          %1099 = vmatprep.subr.mxu0 0.0
          %1100 = vmatpush1.xpose.msra.mxu0 0.0
          %1101 = vmatprep.subr.mxu0 0.0
          %1102 = vmatpush1.xpose.msra.mxu0 0.0
          %1103 = vmatprep.subr.mxu0 0.0
          %1104 = vmatpush1.xpose.msra.mxu0 0.0
          %1105 = vmatprep.subr.mxu0 0.0
          %1106 = vmatpush1.xpose.msra.mxu0 0.0
          %1107 = vmatprep.subr.mxu0 0.0
          %1108 = vmatpush1.xpose.msra.mxu0 0.0
          %1109 = vmatprep.subr.mxu0 0.0
          %1110 = vmatpush1.xpose.msra.mxu0 0.0
          %1111 = vmatprep.subr.mxu0 0.0
          %1112 = vmatpush1.xpose.msra.mxu0 0.0
          %1113 = vmatprep.subr.mxu0 0.0
          %1114 = vmatpush1.xpose.msra.mxu0 0.0
          %1115 = vmatprep.subr.mxu0 0.0
          %1116 = vmatpush1.xpose.msra.mxu0 0.0
          %1117 = vmatprep.subr.mxu0 0.0
          %1118 = vmatpush1.xpose.msra.mxu0 0.0
          %1119 = vmatprep.subr.mxu0 0.0
          %1120 = vmatpush1.xpose.msra.mxu0 0.0
          %1121 = vmatprep.subr.mxu0 0.0
          %1122 = vmatpush1.xpose.msra.mxu0 0.0
          %1123 = vmatprep.subr.mxu0 0.0
          %1124 = vmatpush1.xpose.msra.mxu0 0.0
          %1125 = vmatprep.subr.mxu0 0.0
          %1126 = vmatpush1.xpose.msra.mxu0 0.0
          %1127 = vmatprep.subr.mxu0 0.0
          %1128 = vmatpush1.xpose.msra.mxu0 0.0
          %1129 = vmatprep.subr.mxu0 0.0
          %1130 = vmatpush1.xpose.msra.mxu0 %v1097
          %1131 = vmatprep.subr.mxu0 0.0
          %1132 = vmatpush2.xpose.msra.mxu0 0.0
          %1133 = vmatprep.subr.mxu0 0.0
          %1134 = vmatpush2.xpose.msra.mxu0 0.0
          %1135 = vmatprep.subr.mxu0 0.0
          %1136 = vmatpush2.xpose.msra.mxu0 0.0
          %1137 = vmatprep.subr.mxu0 0.0
          %1138 = vmatpush2.xpose.msra.mxu0 0.0
          %1139 = vmatprep.subr.mxu0 0.0
          %1140 = vmatpush2.xpose.msra.mxu0 0.0
          %1141 = vmatprep.subr.mxu0 0.0
          %1142 = vmatpush2.xpose.msra.mxu0 0.0
          %1143 = vmatprep.subr.mxu0 0.0
          %1144 = vmatpush2.xpose.msra.mxu0 0.0
          %1145 = vmatprep.subr.mxu0 0.0
          %1146 = vmatpush2.xpose.msra.mxu0 0.0
          %1147 = vmatprep.subr.mxu0 0.0
          %1148 = vmatpush2.xpose.msra.mxu0 0.0
          %1149 = vmatprep.subr.mxu0 0.0
          %1150 = vmatpush2.xpose.msra.mxu0 0.0
          %1151 = vmatprep.subr.mxu0 0.0
          %1152 = vmatpush2.xpose.msra.mxu0 0.0
          %1153 = vmatprep.subr.mxu0 0.0
          %1154 = vmatpush2.xpose.msra.mxu0 0.0
          %1155 = vmatprep.subr.mxu0 0.0
          %1156 = vmatpush2.xpose.msra.mxu0 0.0
          %1157 = vmatprep.subr.mxu0 0.0
          %1158 = vmatpush2.xpose.msra.mxu0 0.0
          %1159 = vmatprep.subr.mxu0 0.0
          %1160 = vmatpush2.xpose.msra.mxu0 0.0
          %1161 = vmatprep.subr.mxu0 0.0
          %1162 = vmatpush2.xpose.msra.mxu0 0.0
          %1163 = vmatprep.mubr.f32.mxu0 0.0
          %1164 = vmatmul.mubr.f32.gmra.mxu0 %v1095
          %v1165 = vpop.f32.mrf.mxu0
          %v1166 = vadd.f32 %v715, %v1165
          %v1167 = vpop.f32.mrf.mxu0
          %1168 = vdwg.mxu0
          %s1169 = scalar_lea.vmem [#allocation3], 16
          %v1170 = vld [vmem:[%s1169] sm:$0xff]
          %v1171 = vsel %vm716, %v1166, -inf
          %1172 = vmax.xlane.f32.xlu0 %v1171
          %v1173 = vpop.xlane.xlu0 %1172
          %v1174 = vmax.f32 %v1170, %v1173
          %v1175 = vsub.f32 %v1170, %v1174
          %v1176 = vmul.f32 %v1175, 1.442695
          %v1177 = vpow.pop %v1176
          %1179 = vset.pattern.permute.xlu0 0
          %1180 = vperm.xlu0 %1179, %v1174
          %v1181 = vpop.permute.xlu0 %1180
          %v1183 = vsub.f32 %v1166, %v1181
          %v1184 = vmul.f32 %v1183, 1.442695
          %v1185 = vpow.pop %v1184
          %s1186 = scalar_lea.vmem [#allocation4], 16
          %v1187 = vld [vmem:[%s1186] sm:$0xff]
          %v1188 = vmul.f32 %v1177, %v1187
          %v1189 = vsel %vm716, %v1185, 0.0
          %1190 = vadd.xlane.f32.xlu0 %v1189
          %v1191 = vpop.xlane.xlu0 %1190
          %v1192 = vadd.f32 %v1188, %v1191
          %1193 = vst.msk [vmem:[%s1186] sm:$0xff] %vm815, %v1192
          %s1194 = scalar_lea.vmem [#allocation5], 16
          %v1195 = vld [vmem:[%s1194] sm:$0xff]
          %1197 = vset.pattern.permute.xlu0 0
          %1198 = vperm.xlu0 %1197, %v1177
          %v1199 = vpop.permute.xlu0 %1198
          %v1201 = vmul.f32 %v1199, %v1195
          %1202 = vrot.lane.b32.xlu0 %v701, 112
          %v1203 = vpop.permute.xlu0 %1202
          %v1206 = vsel %vm716, %v1185, 0
          %1208 = vmatprep.subr.mxu0 0.0
          %1209 = vmatpush1.msra.mxu0 0.0
          %1210 = vmatprep.subr.mxu0 0.0
          %1211 = vmatpush1.msra.mxu0 0.0
          %1212 = vmatprep.subr.mxu0 0.0
          %1213 = vmatpush1.msra.mxu0 0.0
          %1214 = vmatprep.subr.mxu0 0.0
          %1215 = vmatpush1.msra.mxu0 0.0
          %1216 = vmatprep.subr.mxu0 0.0
          %1217 = vmatpush1.msra.mxu0 0.0
          %1218 = vmatprep.subr.mxu0 0.0
          %1219 = vmatpush1.msra.mxu0 0.0
          %1220 = vmatprep.subr.mxu0 0.0
          %1221 = vmatpush1.msra.mxu0 0.0
          %1222 = vmatprep.subr.mxu0 0.0
          %1223 = vmatpush1.msra.mxu0 0.0
          %1224 = vmatprep.subr.mxu0 0.0
          %1225 = vmatpush1.msra.mxu0 0.0
          %1226 = vmatprep.subr.mxu0 0.0
          %1227 = vmatpush1.msra.mxu0 0.0
          %1228 = vmatprep.subr.mxu0 0.0
          %1229 = vmatpush1.msra.mxu0 0.0
          %1230 = vmatprep.subr.mxu0 0.0
          %1231 = vmatpush1.msra.mxu0 0.0
          %1232 = vmatprep.subr.mxu0 0.0
          %1233 = vmatpush1.msra.mxu0 0.0
          %1234 = vmatprep.subr.mxu0 0.0
          %1235 = vmatpush1.msra.mxu0 0.0
          %1236 = vmatprep.subr.mxu0 0.0
          %1237 = vmatpush1.msra.mxu0 0.0
          %1238 = vmatprep.subr.mxu0 0.0
          %1239 = vmatpush1.msra.mxu0 %v1203
          %1240 = vmatprep.subr.mxu0 0.0
          %1241 = vmatpush2.msra.mxu0 0.0
          %1242 = vmatprep.subr.mxu0 0.0
          %1243 = vmatpush2.msra.mxu0 0.0
          %1244 = vmatprep.subr.mxu0 0.0
          %1245 = vmatpush2.msra.mxu0 0.0
          %1246 = vmatprep.subr.mxu0 0.0
          %1247 = vmatpush2.msra.mxu0 0.0
          %1248 = vmatprep.subr.mxu0 0.0
          %1249 = vmatpush2.msra.mxu0 0.0
          %1250 = vmatprep.subr.mxu0 0.0
          %1251 = vmatpush2.msra.mxu0 0.0
          %1252 = vmatprep.subr.mxu0 0.0
          %1253 = vmatpush2.msra.mxu0 0.0
          %1254 = vmatprep.subr.mxu0 0.0
          %1255 = vmatpush2.msra.mxu0 0.0
          %1256 = vmatprep.subr.mxu0 0.0
          %1257 = vmatpush2.msra.mxu0 0.0
          %1258 = vmatprep.subr.mxu0 0.0
          %1259 = vmatpush2.msra.mxu0 0.0
          %1260 = vmatprep.subr.mxu0 0.0
          %1261 = vmatpush2.msra.mxu0 0.0
          %1262 = vmatprep.subr.mxu0 0.0
          %1263 = vmatpush2.msra.mxu0 0.0
          %1264 = vmatprep.subr.mxu0 0.0
          %1265 = vmatpush2.msra.mxu0 0.0
          %1266 = vmatprep.subr.mxu0 0.0
          %1267 = vmatpush2.msra.mxu0 0.0
          %1268 = vmatprep.subr.mxu0 0.0
          %1269 = vmatpush2.msra.mxu0 0.0
          %1270 = vmatprep.subr.mxu0 0.0
          %1271 = vmatpush2.msra.mxu0 0.0
          %1272 = vmatprep.mubr.f32.mxu0 0.0
          %1273 = vmatmul.mubr.f32.gmra.mxu0 %v1206
          %v1274 = vpop.f32.mrf.mxu0
          %v1275 = vadd.f32 0.0, %v1274
          %v1276 = vpop.f32.mrf.mxu0
          %1277 = vdwg.mxu0
          %v1278 = vadd.f32 %v1201, %v1275
          %1279 = vst.msk [vmem:[%s1194] sm:$0xff] %vm716, %v1278
          %1280 = vst.msk [vmem:[%s1169] sm:$0xff] %vm815, %v1174
          %1281 = vrot.lane.b32.xlu0 %v704, 104
          %v1282 = vpop.permute.xlu0 %1281
          %1283 = vrot.lane.b32.xlu0 %v627, 104
          %v1284 = vpop.permute.xlu0 %1283
          %v1285 = vsel %vm716, %v1282, 0
          %v1287 = vsel %vm716, %v1284, 0
          %1289 = vmatprep.subr.mxu0 0.0
          %1290 = vmatpush1.xpose.msra.mxu0 0.0
          %1291 = vmatprep.subr.mxu0 0.0
          %1292 = vmatpush1.xpose.msra.mxu0 0.0
          %1293 = vmatprep.subr.mxu0 0.0
          %1294 = vmatpush1.xpose.msra.mxu0 0.0
          %1295 = vmatprep.subr.mxu0 0.0
          %1296 = vmatpush1.xpose.msra.mxu0 0.0
          %1297 = vmatprep.subr.mxu0 0.0
          %1298 = vmatpush1.xpose.msra.mxu0 0.0
          %1299 = vmatprep.subr.mxu0 0.0
          %1300 = vmatpush1.xpose.msra.mxu0 0.0
          %1301 = vmatprep.subr.mxu0 0.0
          %1302 = vmatpush1.xpose.msra.mxu0 0.0
          %1303 = vmatprep.subr.mxu0 0.0
          %1304 = vmatpush1.xpose.msra.mxu0 0.0
          %1305 = vmatprep.subr.mxu0 0.0
          %1306 = vmatpush1.xpose.msra.mxu0 0.0
          %1307 = vmatprep.subr.mxu0 0.0
          %1308 = vmatpush1.xpose.msra.mxu0 0.0
          %1309 = vmatprep.subr.mxu0 0.0
          %1310 = vmatpush1.xpose.msra.mxu0 0.0
          %1311 = vmatprep.subr.mxu0 0.0
          %1312 = vmatpush1.xpose.msra.mxu0 0.0
          %1313 = vmatprep.subr.mxu0 0.0
          %1314 = vmatpush1.xpose.msra.mxu0 0.0
          %1315 = vmatprep.subr.mxu0 0.0
          %1316 = vmatpush1.xpose.msra.mxu0 0.0
          %1317 = vmatprep.subr.mxu0 0.0
          %1318 = vmatpush1.xpose.msra.mxu0 0.0
          %1319 = vmatprep.subr.mxu0 0.0
          %1320 = vmatpush1.xpose.msra.mxu0 %v1287
          %1321 = vmatprep.subr.mxu0 0.0
          %1322 = vmatpush2.xpose.msra.mxu0 0.0
          %1323 = vmatprep.subr.mxu0 0.0
          %1324 = vmatpush2.xpose.msra.mxu0 0.0
          %1325 = vmatprep.subr.mxu0 0.0
          %1326 = vmatpush2.xpose.msra.mxu0 0.0
          %1327 = vmatprep.subr.mxu0 0.0
          %1328 = vmatpush2.xpose.msra.mxu0 0.0
          %1329 = vmatprep.subr.mxu0 0.0
          %1330 = vmatpush2.xpose.msra.mxu0 0.0
          %1331 = vmatprep.subr.mxu0 0.0
          %1332 = vmatpush2.xpose.msra.mxu0 0.0
          %1333 = vmatprep.subr.mxu0 0.0
          %1334 = vmatpush2.xpose.msra.mxu0 0.0
          %1335 = vmatprep.subr.mxu0 0.0
          %1336 = vmatpush2.xpose.msra.mxu0 0.0
          %1337 = vmatprep.subr.mxu0 0.0
          %1338 = vmatpush2.xpose.msra.mxu0 0.0
          %1339 = vmatprep.subr.mxu0 0.0
          %1340 = vmatpush2.xpose.msra.mxu0 0.0
          %1341 = vmatprep.subr.mxu0 0.0
          %1342 = vmatpush2.xpose.msra.mxu0 0.0
          %1343 = vmatprep.subr.mxu0 0.0
          %1344 = vmatpush2.xpose.msra.mxu0 0.0
          %1345 = vmatprep.subr.mxu0 0.0
          %1346 = vmatpush2.xpose.msra.mxu0 0.0
          %1347 = vmatprep.subr.mxu0 0.0
          %1348 = vmatpush2.xpose.msra.mxu0 0.0
          %1349 = vmatprep.subr.mxu0 0.0
          %1350 = vmatpush2.xpose.msra.mxu0 0.0
          %1351 = vmatprep.subr.mxu0 0.0
          %1352 = vmatpush2.xpose.msra.mxu0 0.0
          %1353 = vmatprep.mubr.f32.mxu0 0.0
          %1354 = vmatmul.mubr.f32.gmra.mxu0 %v1285
          %v1355 = vpop.f32.mrf.mxu0
          %v1356 = vadd.f32 %v715, %v1355
          %v1357 = vpop.f32.mrf.mxu0
          %1358 = vdwg.mxu0
          %s1359 = scalar_lea.vmem [#allocation3], 24
          %v1360 = vld [vmem:[%s1359] sm:$0xff]
          %v1361 = vsel %vm716, %v1356, -inf
          %1362 = vmax.xlane.f32.xlu0 %v1361
          %v1363 = vpop.xlane.xlu0 %1362
          %v1364 = vmax.f32 %v1360, %v1363
          %v1365 = vsub.f32 %v1360, %v1364
          %v1366 = vmul.f32 %v1365, 1.442695
          %v1367 = vpow.pop %v1366
          %1369 = vset.pattern.permute.xlu0 0
          %1370 = vperm.xlu0 %1369, %v1364
          %v1371 = vpop.permute.xlu0 %1370
          %v1373 = vsub.f32 %v1356, %v1371
          %v1374 = vmul.f32 %v1373, 1.442695
          %v1375 = vpow.pop %v1374
          %s1376 = scalar_lea.vmem [#allocation4], 24
          %v1377 = vld [vmem:[%s1376] sm:$0xff]
          %v1378 = vmul.f32 %v1367, %v1377
          %v1379 = vsel %vm716, %v1375, 0.0
          %1380 = vadd.xlane.f32.xlu0 %v1379
          %v1381 = vpop.xlane.xlu0 %1380
          %v1382 = vadd.f32 %v1378, %v1381
          %1383 = vst.msk [vmem:[%s1376] sm:$0xff] %vm815, %v1382
          %s1384 = scalar_lea.vmem [#allocation5], 24
          %v1385 = vld [vmem:[%s1384] sm:$0xff]
          %1387 = vset.pattern.permute.xlu0 0
          %1388 = vperm.xlu0 %1387, %v1367
          %v1389 = vpop.permute.xlu0 %1388
          %v1391 = vmul.f32 %v1389, %v1385
          %1392 = vrot.lane.b32.xlu0 %v701, 104
          %v1393 = vpop.permute.xlu0 %1392
          %v1396 = vsel %vm716, %v1375, 0
          %1398 = vmatprep.subr.mxu0 0.0
          %1399 = vmatpush1.msra.mxu0 0.0
          %1400 = vmatprep.subr.mxu0 0.0
          %1401 = vmatpush1.msra.mxu0 0.0
          %1402 = vmatprep.subr.mxu0 0.0
          %1403 = vmatpush1.msra.mxu0 0.0
          %1404 = vmatprep.subr.mxu0 0.0
          %1405 = vmatpush1.msra.mxu0 0.0
          %1406 = vmatprep.subr.mxu0 0.0
          %1407 = vmatpush1.msra.mxu0 0.0
          %1408 = vmatprep.subr.mxu0 0.0
          %1409 = vmatpush1.msra.mxu0 0.0
          %1410 = vmatprep.subr.mxu0 0.0
          %1411 = vmatpush1.msra.mxu0 0.0
          %1412 = vmatprep.subr.mxu0 0.0
          %1413 = vmatpush1.msra.mxu0 0.0
          %1414 = vmatprep.subr.mxu0 0.0
          %1415 = vmatpush1.msra.mxu0 0.0
          %1416 = vmatprep.subr.mxu0 0.0
          %1417 = vmatpush1.msra.mxu0 0.0
          %1418 = vmatprep.subr.mxu0 0.0
          %1419 = vmatpush1.msra.mxu0 0.0
          %1420 = vmatprep.subr.mxu0 0.0
          %1421 = vmatpush1.msra.mxu0 0.0
          %1422 = vmatprep.subr.mxu0 0.0
          %1423 = vmatpush1.msra.mxu0 0.0
          %1424 = vmatprep.subr.mxu0 0.0
          %1425 = vmatpush1.msra.mxu0 0.0
          %1426 = vmatprep.subr.mxu0 0.0
          %1427 = vmatpush1.msra.mxu0 0.0
          %1428 = vmatprep.subr.mxu0 0.0
          %1429 = vmatpush1.msra.mxu0 %v1393
          %1430 = vmatprep.subr.mxu0 0.0
          %1431 = vmatpush2.msra.mxu0 0.0
          %1432 = vmatprep.subr.mxu0 0.0
          %1433 = vmatpush2.msra.mxu0 0.0
          %1434 = vmatprep.subr.mxu0 0.0
          %1435 = vmatpush2.msra.mxu0 0.0
          %1436 = vmatprep.subr.mxu0 0.0
          %1437 = vmatpush2.msra.mxu0 0.0
          %1438 = vmatprep.subr.mxu0 0.0
          %1439 = vmatpush2.msra.mxu0 0.0
          %1440 = vmatprep.subr.mxu0 0.0
          %1441 = vmatpush2.msra.mxu0 0.0
          %1442 = vmatprep.subr.mxu0 0.0
          %1443 = vmatpush2.msra.mxu0 0.0
          %1444 = vmatprep.subr.mxu0 0.0
          %1445 = vmatpush2.msra.mxu0 0.0
          %1446 = vmatprep.subr.mxu0 0.0
          %1447 = vmatpush2.msra.mxu0 0.0
          %1448 = vmatprep.subr.mxu0 0.0
          %1449 = vmatpush2.msra.mxu0 0.0
          %1450 = vmatprep.subr.mxu0 0.0
          %1451 = vmatpush2.msra.mxu0 0.0
          %1452 = vmatprep.subr.mxu0 0.0
          %1453 = vmatpush2.msra.mxu0 0.0
          %1454 = vmatprep.subr.mxu0 0.0
          %1455 = vmatpush2.msra.mxu0 0.0
          %1456 = vmatprep.subr.mxu0 0.0
          %1457 = vmatpush2.msra.mxu0 0.0
          %1458 = vmatprep.subr.mxu0 0.0
          %1459 = vmatpush2.msra.mxu0 0.0
          %1460 = vmatprep.subr.mxu0 0.0
          %1461 = vmatpush2.msra.mxu0 0.0
          %1462 = vmatprep.mubr.f32.mxu0 0.0
          %1463 = vmatmul.mubr.f32.gmra.mxu0 %v1396
          %v1464 = vpop.f32.mrf.mxu0
          %v1465 = vadd.f32 0.0, %v1464
          %v1466 = vpop.f32.mrf.mxu0
          %1467 = vdwg.mxu0
          %v1468 = vadd.f32 %v1391, %v1465
          %1469 = vst.msk [vmem:[%s1384] sm:$0xff] %vm716, %v1468
          %1470 = vst.msk [vmem:[%s1359] sm:$0xff] %vm815, %v1364
        $region84: #{tpu_custom_call.1} parent=51 // pred_fallthru
          _
        // Predicated region
        $region85: #{tpu_custom_call.1} parent=51 // pred_check
          %p1471 = pneg %p444
        $region86: #{tpu_custom_call.1} parent=51 // pred_check_branch
          %1473 = sbr.rel (%p1471) target = $region88
        $region87: #{tpu_custom_call.1} parent=51 // pred_region
          %v1474 = vld [vmem:[#allocation4] sm:$0xff]
          %v1475 = vrcp.pop %v1474
          %v1476 = vld [vmem:[#allocation5] sm:$0xff]
          %1478 = vset.pattern.permute.xlu0 0
          %1479 = vperm.xlu0 %1478, %v1475
          %v1480 = vpop.permute.xlu0 %1479
          %v1482 = vmul.f32 %v1476, %v1480
          %v1483 = vld [vmem:[#allocation16] sm:$0xff]
          %s1484 = scalar_lea.vmem [#allocation4], 8
          %v1485 = vld [vmem:[%s1484] sm:$0xff]
          %v1486 = vrcp.pop %v1485
          %s1487 = scalar_lea.vmem [#allocation5], 8
          %v1488 = vld [vmem:[%s1487] sm:$0xff]
          %1490 = vset.pattern.permute.xlu0 0
          %1491 = vperm.xlu0 %1490, %v1486
          %v1492 = vpop.permute.xlu0 %1491
          %v1494 = vmul.f32 %v1488, %v1492
          %v1495 = vld [vmem:[#allocation16 + $0x8] sm:$0xff]
          %vm1496 = vcmask 64512
          %v1498 = vsel %vm1496, %v1494, 0
          %1500 = vmatprep.subr.mxu0 0.0
          %1501 = vmatpush1.msra.mxu0 0.0
          %1502 = vmatprep.subr.mxu0 0.0
          %1503 = vmatpush1.msra.mxu0 0.0
          %1504 = vmatprep.subr.mxu0 0.0
          %1505 = vmatpush1.msra.mxu0 0.0
          %1506 = vmatprep.subr.mxu0 0.0
          %1507 = vmatpush1.msra.mxu0 0.0
          %1508 = vmatprep.subr.mxu0 0.0
          %1509 = vmatpush1.msra.mxu0 0.0
          %1510 = vmatprep.subr.mxu0 0.0
          %1511 = vmatpush1.msra.mxu0 0.0
          %1512 = vmatprep.subr.mxu0 0.0
          %1513 = vmatpush1.msra.mxu0 0.0
          %1514 = vmatprep.subr.mxu0 0.0
          %1515 = vmatpush1.msra.mxu0 0.0
          %1516 = vmatprep.subr.mxu0 0.0
          %1517 = vmatpush1.msra.mxu0 0.0
          %1518 = vmatprep.subr.mxu0 0.0
          %1519 = vmatpush1.msra.mxu0 0.0
          %1520 = vmatprep.subr.mxu0 0.0
          %1521 = vmatpush1.msra.mxu0 0.0
          %1522 = vmatprep.subr.mxu0 0.0
          %1523 = vmatpush1.msra.mxu0 0.0
          %1524 = vmatprep.subr.mxu0 0.0
          %1525 = vmatpush1.msra.mxu0 0.0
          %1526 = vmatprep.subr.mxu0 0.0
          %1527 = vmatpush1.msra.mxu0 0.0
          %1528 = vmatprep.subr.mxu0 0.0
          %1529 = vmatpush1.msra.mxu0 0.0
          %1530 = vmatprep.subr.mxu0 0.0
          %1531 = vmatpush1.msra.mxu0 %v1495
          %1532 = vmatprep.subr.mxu0 0.0
          %1533 = vmatpush2.msra.mxu0 0.0
          %1534 = vmatprep.subr.mxu0 0.0
          %1535 = vmatpush2.msra.mxu0 0.0
          %1536 = vmatprep.subr.mxu0 0.0
          %1537 = vmatpush2.msra.mxu0 0.0
          %1538 = vmatprep.subr.mxu0 0.0
          %1539 = vmatpush2.msra.mxu0 0.0
          %1540 = vmatprep.subr.mxu0 0.0
          %1541 = vmatpush2.msra.mxu0 0.0
          %1542 = vmatprep.subr.mxu0 0.0
          %1543 = vmatpush2.msra.mxu0 0.0
          %1544 = vmatprep.subr.mxu0 0.0
          %1545 = vmatpush2.msra.mxu0 0.0
          %1546 = vmatprep.subr.mxu0 0.0
          %1547 = vmatpush2.msra.mxu0 0.0
          %1548 = vmatprep.subr.mxu0 0.0
          %1549 = vmatpush2.msra.mxu0 0.0
          %1550 = vmatprep.subr.mxu0 0.0
          %1551 = vmatpush2.msra.mxu0 0.0
          %1552 = vmatprep.subr.mxu0 0.0
          %1553 = vmatpush2.msra.mxu0 0.0
          %1554 = vmatprep.subr.mxu0 0.0
          %1555 = vmatpush2.msra.mxu0 0.0
          %1556 = vmatprep.subr.mxu0 0.0
          %1557 = vmatpush2.msra.mxu0 0.0
          %1558 = vmatprep.subr.mxu0 0.0
          %1559 = vmatpush2.msra.mxu0 0.0
          %1560 = vmatprep.subr.mxu0 0.0
          %1561 = vmatpush2.msra.mxu0 0.0
          %1562 = vmatprep.subr.mxu0 0.0
          %1563 = vmatpush2.msra.mxu0 0.0
          %1564 = vmatprep.mubr.f32.mxu0 0.0
          %1565 = vmatmul.mubr.f32.gmra.mxu0 %v1498
          %v1566 = vpop.f32.mrf.mxu0
          %v1567 = vadd.f32 0.0, %v1566
          %v1568 = vpop.f32.mrf.mxu0
          %1569 = vdwg.mxu0
          %v1571 = vsel %vm1496, %v1482, 0
          %1573 = vmatprep.subr.mxu0 0.0
          %1574 = vmatpush1.msra.mxu0 0.0
          %1575 = vmatprep.subr.mxu0 0.0
          %1576 = vmatpush1.msra.mxu0 0.0
          %1577 = vmatprep.subr.mxu0 0.0
          %1578 = vmatpush1.msra.mxu0 0.0
          %1579 = vmatprep.subr.mxu0 0.0
          %1580 = vmatpush1.msra.mxu0 0.0
          %1581 = vmatprep.subr.mxu0 0.0
          %1582 = vmatpush1.msra.mxu0 0.0
          %1583 = vmatprep.subr.mxu0 0.0
          %1584 = vmatpush1.msra.mxu0 0.0
          %1585 = vmatprep.subr.mxu0 0.0
          %1586 = vmatpush1.msra.mxu0 0.0
          %1587 = vmatprep.subr.mxu0 0.0
          %1588 = vmatpush1.msra.mxu0 0.0
          %1589 = vmatprep.subr.mxu0 0.0
          %1590 = vmatpush1.msra.mxu0 0.0
          %1591 = vmatprep.subr.mxu0 0.0
          %1592 = vmatpush1.msra.mxu0 0.0
          %1593 = vmatprep.subr.mxu0 0.0
          %1594 = vmatpush1.msra.mxu0 0.0
          %1595 = vmatprep.subr.mxu0 0.0
          %1596 = vmatpush1.msra.mxu0 0.0
          %1597 = vmatprep.subr.mxu0 0.0
          %1598 = vmatpush1.msra.mxu0 0.0
          %1599 = vmatprep.subr.mxu0 0.0
          %1600 = vmatpush1.msra.mxu0 0.0
          %1601 = vmatprep.subr.mxu0 0.0
          %1602 = vmatpush1.msra.mxu0 0.0
          %1603 = vmatprep.subr.mxu0 0.0
          %1604 = vmatpush1.msra.mxu0 %v1483
          %1605 = vmatprep.subr.mxu0 0.0
          %1606 = vmatpush2.msra.mxu0 0.0
          %1607 = vmatprep.subr.mxu0 0.0
          %1608 = vmatpush2.msra.mxu0 0.0
          %1609 = vmatprep.subr.mxu0 0.0
          %1610 = vmatpush2.msra.mxu0 0.0
          %1611 = vmatprep.subr.mxu0 0.0
          %1612 = vmatpush2.msra.mxu0 0.0
          %1613 = vmatprep.subr.mxu0 0.0
          %1614 = vmatpush2.msra.mxu0 0.0
          %1615 = vmatprep.subr.mxu0 0.0
          %1616 = vmatpush2.msra.mxu0 0.0
          %1617 = vmatprep.subr.mxu0 0.0
          %1618 = vmatpush2.msra.mxu0 0.0
          %1619 = vmatprep.subr.mxu0 0.0
          %1620 = vmatpush2.msra.mxu0 0.0
          %1621 = vmatprep.subr.mxu0 0.0
          %1622 = vmatpush2.msra.mxu0 0.0
          %1623 = vmatprep.subr.mxu0 0.0
          %1624 = vmatpush2.msra.mxu0 0.0
          %1625 = vmatprep.subr.mxu0 0.0
          %1626 = vmatpush2.msra.mxu0 0.0
          %1627 = vmatprep.subr.mxu0 0.0
          %1628 = vmatpush2.msra.mxu0 0.0
          %1629 = vmatprep.subr.mxu0 0.0
          %1630 = vmatpush2.msra.mxu0 0.0
          %1631 = vmatprep.subr.mxu0 0.0
          %1632 = vmatpush2.msra.mxu0 0.0
          %1633 = vmatprep.subr.mxu0 0.0
          %1634 = vmatpush2.msra.mxu0 0.0
          %1635 = vmatprep.subr.mxu0 0.0
          %1636 = vmatpush2.msra.mxu0 0.0
          %1637 = vmatprep.mubr.f32.mxu0 0.0
          %1638 = vmatmul.mubr.f32.gmra.mxu0 %v1571
          %v1639 = vpop.f32.mrf.mxu0
          %v1640 = vadd.f32 %v1567, %v1639
          %v1641 = vpop.f32.mrf.mxu0
          %1642 = vdwg.mxu0
          %s1643 = scalar_lea.vmem [#allocation4], 16
          %v1644 = vld [vmem:[%s1643] sm:$0xff]
          %v1645 = vrcp.pop %v1644
          %s1646 = scalar_lea.vmem [#allocation5], 16
          %v1647 = vld [vmem:[%s1646] sm:$0xff]
          %1649 = vset.pattern.permute.xlu0 0
          %1650 = vperm.xlu0 %1649, %v1645
          %v1651 = vpop.permute.xlu0 %1650
          %v1653 = vmul.f32 %v1647, %v1651
          %v1654 = vld [vmem:[#allocation16 + $0x10] sm:$0xff]
          %v1656 = vsel %vm1496, %v1653, 0
          %1658 = vmatprep.subr.mxu0 0.0
          %1659 = vmatpush1.msra.mxu0 0.0
          %1660 = vmatprep.subr.mxu0 0.0
          %1661 = vmatpush1.msra.mxu0 0.0
          %1662 = vmatprep.subr.mxu0 0.0
          %1663 = vmatpush1.msra.mxu0 0.0
          %1664 = vmatprep.subr.mxu0 0.0
          %1665 = vmatpush1.msra.mxu0 0.0
          %1666 = vmatprep.subr.mxu0 0.0
          %1667 = vmatpush1.msra.mxu0 0.0
          %1668 = vmatprep.subr.mxu0 0.0
          %1669 = vmatpush1.msra.mxu0 0.0
          %1670 = vmatprep.subr.mxu0 0.0
          %1671 = vmatpush1.msra.mxu0 0.0
          %1672 = vmatprep.subr.mxu0 0.0
          %1673 = vmatpush1.msra.mxu0 0.0
          %1674 = vmatprep.subr.mxu0 0.0
          %1675 = vmatpush1.msra.mxu0 0.0
          %1676 = vmatprep.subr.mxu0 0.0
          %1677 = vmatpush1.msra.mxu0 0.0
          %1678 = vmatprep.subr.mxu0 0.0
          %1679 = vmatpush1.msra.mxu0 0.0
          %1680 = vmatprep.subr.mxu0 0.0
          %1681 = vmatpush1.msra.mxu0 0.0
          %1682 = vmatprep.subr.mxu0 0.0
          %1683 = vmatpush1.msra.mxu0 0.0
          %1684 = vmatprep.subr.mxu0 0.0
          %1685 = vmatpush1.msra.mxu0 0.0
          %1686 = vmatprep.subr.mxu0 0.0
          %1687 = vmatpush1.msra.mxu0 0.0
          %1688 = vmatprep.subr.mxu0 0.0
          %1689 = vmatpush1.msra.mxu0 %v1654
          %1690 = vmatprep.subr.mxu0 0.0
          %1691 = vmatpush2.msra.mxu0 0.0
          %1692 = vmatprep.subr.mxu0 0.0
          %1693 = vmatpush2.msra.mxu0 0.0
          %1694 = vmatprep.subr.mxu0 0.0
          %1695 = vmatpush2.msra.mxu0 0.0
          %1696 = vmatprep.subr.mxu0 0.0
          %1697 = vmatpush2.msra.mxu0 0.0
          %1698 = vmatprep.subr.mxu0 0.0
          %1699 = vmatpush2.msra.mxu0 0.0
          %1700 = vmatprep.subr.mxu0 0.0
          %1701 = vmatpush2.msra.mxu0 0.0
          %1702 = vmatprep.subr.mxu0 0.0
          %1703 = vmatpush2.msra.mxu0 0.0
          %1704 = vmatprep.subr.mxu0 0.0
          %1705 = vmatpush2.msra.mxu0 0.0
          %1706 = vmatprep.subr.mxu0 0.0
          %1707 = vmatpush2.msra.mxu0 0.0
          %1708 = vmatprep.subr.mxu0 0.0
          %1709 = vmatpush2.msra.mxu0 0.0
          %1710 = vmatprep.subr.mxu0 0.0
          %1711 = vmatpush2.msra.mxu0 0.0
          %1712 = vmatprep.subr.mxu0 0.0
          %1713 = vmatpush2.msra.mxu0 0.0
          %1714 = vmatprep.subr.mxu0 0.0
          %1715 = vmatpush2.msra.mxu0 0.0
          %1716 = vmatprep.subr.mxu0 0.0
          %1717 = vmatpush2.msra.mxu0 0.0
          %1718 = vmatprep.subr.mxu0 0.0
          %1719 = vmatpush2.msra.mxu0 0.0
          %1720 = vmatprep.subr.mxu0 0.0
          %1721 = vmatpush2.msra.mxu0 0.0
          %1722 = vmatprep.mubr.f32.mxu0 0.0
          %1723 = vmatmul.mubr.f32.gmra.mxu0 %v1656
          %v1724 = vpop.f32.mrf.mxu0
          %v1725 = vadd.f32 0.0, %v1724
          %v1726 = vpop.f32.mrf.mxu0
          %1727 = vdwg.mxu0
          %v1728 = vadd.f32 %v1640, %v1725
          %s1729 = scalar_lea.vmem [#allocation4], 24
          %v1730 = vld [vmem:[%s1729] sm:$0xff]
          %v1731 = vrcp.pop %v1730
          %s1732 = scalar_lea.vmem [#allocation5], 24
          %v1733 = vld [vmem:[%s1732] sm:$0xff]
          %1735 = vset.pattern.permute.xlu0 0
          %1736 = vperm.xlu0 %1735, %v1731
          %v1737 = vpop.permute.xlu0 %1736
          %v1739 = vmul.f32 %v1733, %v1737
          %v1740 = vld [vmem:[#allocation16 + $0x18] sm:$0xff]
          %v1742 = vsel %vm1496, %v1739, 0
          %1744 = vmatprep.subr.mxu0 0.0
          %1745 = vmatpush1.msra.mxu0 0.0
          %1746 = vmatprep.subr.mxu0 0.0
          %1747 = vmatpush1.msra.mxu0 0.0
          %1748 = vmatprep.subr.mxu0 0.0
          %1749 = vmatpush1.msra.mxu0 0.0
          %1750 = vmatprep.subr.mxu0 0.0
          %1751 = vmatpush1.msra.mxu0 0.0
          %1752 = vmatprep.subr.mxu0 0.0
          %1753 = vmatpush1.msra.mxu0 0.0
          %1754 = vmatprep.subr.mxu0 0.0
          %1755 = vmatpush1.msra.mxu0 0.0
          %1756 = vmatprep.subr.mxu0 0.0
          %1757 = vmatpush1.msra.mxu0 0.0
          %1758 = vmatprep.subr.mxu0 0.0
          %1759 = vmatpush1.msra.mxu0 0.0
          %1760 = vmatprep.subr.mxu0 0.0
          %1761 = vmatpush1.msra.mxu0 0.0
          %1762 = vmatprep.subr.mxu0 0.0
          %1763 = vmatpush1.msra.mxu0 0.0
          %1764 = vmatprep.subr.mxu0 0.0
          %1765 = vmatpush1.msra.mxu0 0.0
          %1766 = vmatprep.subr.mxu0 0.0
          %1767 = vmatpush1.msra.mxu0 0.0
          %1768 = vmatprep.subr.mxu0 0.0
          %1769 = vmatpush1.msra.mxu0 0.0
          %1770 = vmatprep.subr.mxu0 0.0
          %1771 = vmatpush1.msra.mxu0 0.0
          %1772 = vmatprep.subr.mxu0 0.0
          %1773 = vmatpush1.msra.mxu0 0.0
          %1774 = vmatprep.subr.mxu0 0.0
          %1775 = vmatpush1.msra.mxu0 %v1740
          %1776 = vmatprep.subr.mxu0 0.0
          %1777 = vmatpush2.msra.mxu0 0.0
          %1778 = vmatprep.subr.mxu0 0.0
          %1779 = vmatpush2.msra.mxu0 0.0
          %1780 = vmatprep.subr.mxu0 0.0
          %1781 = vmatpush2.msra.mxu0 0.0
          %1782 = vmatprep.subr.mxu0 0.0
          %1783 = vmatpush2.msra.mxu0 0.0
          %1784 = vmatprep.subr.mxu0 0.0
          %1785 = vmatpush2.msra.mxu0 0.0
          %1786 = vmatprep.subr.mxu0 0.0
          %1787 = vmatpush2.msra.mxu0 0.0
          %1788 = vmatprep.subr.mxu0 0.0
          %1789 = vmatpush2.msra.mxu0 0.0
          %1790 = vmatprep.subr.mxu0 0.0
          %1791 = vmatpush2.msra.mxu0 0.0
          %1792 = vmatprep.subr.mxu0 0.0
          %1793 = vmatpush2.msra.mxu0 0.0
          %1794 = vmatprep.subr.mxu0 0.0
          %1795 = vmatpush2.msra.mxu0 0.0
          %1796 = vmatprep.subr.mxu0 0.0
          %1797 = vmatpush2.msra.mxu0 0.0
          %1798 = vmatprep.subr.mxu0 0.0
          %1799 = vmatpush2.msra.mxu0 0.0
          %1800 = vmatprep.subr.mxu0 0.0
          %1801 = vmatpush2.msra.mxu0 0.0
          %1802 = vmatprep.subr.mxu0 0.0
          %1803 = vmatpush2.msra.mxu0 0.0
          %1804 = vmatprep.subr.mxu0 0.0
          %1805 = vmatpush2.msra.mxu0 0.0
          %1806 = vmatprep.subr.mxu0 0.0
          %1807 = vmatpush2.msra.mxu0 0.0
          %1808 = vmatprep.mubr.f32.mxu0 0.0
          %1809 = vmatmul.mubr.f32.gmra.mxu0 %v1742
          %v1810 = vpop.f32.mrf.mxu0
          %v1811 = vadd.f32 0.0, %v1810
          %v1812 = vpop.f32.mrf.mxu0
          %1813 = vdwg.mxu0
          %v1814 = vadd.f32 %v1728, %v1811
          %v1815 = vld [vmem:[%s7] sm:$0x1]
          %v1817 = vlaneseq
          %v1818 = vshrl.u32 %v1817, 7
          %v1819 = vsub.s32 0, %v1818
          %v1820 = vrot.slane %v1815, %v1819
          %v1822 = vadd.f32 %v1814, %v1820
          %vm1823 = vcmask 261120
          %1824 = vst.msk [vmem:[%s443] sm:$0xff] %vm1823, %v1822
        $region88: #{tpu_custom_call.1} parent=51 // pred_fallthru
          _
        %s1825 = sand.u32 %s242, 1
        %s1826 = scalar_lea.sflag [#allocation9], %s1825
        %s1827 = sand.u32 %s242, 1
        %s1828 = smul.addr %s1827, 8
        %s1829 = scalar_lea.vmem [#allocation18], %s1828
        // Predicated region
        $region89: #{tpu_custom_call.1} parent=51 // pred_check
          %p1830 = pneg %p252
        $region90: #{tpu_custom_call.1} parent=51 // pred_check_branch
          %1832 = sbr.rel (%p1830) target = $region92
        $region91: #{tpu_custom_call.1} parent=51 // pred_region
          %s1834 = ssub.s32 128, 128
          %1835 = vsyncadd %s1826, %s1834
          %s1836 = sadd.s32 %s37, %s36
          %s1837 = smul.addr %s1836, 128
          %s1838 = scalar_lea.hbm %s8, %s1837
          %s1840 = sshll.u32 %s1829, 4
          %s1841 = int_to_ptr.vmem [resolvable:$true] %s1840
          %1843 = dma.vmem_to_hbm [thread:$0]  %s1841, 128, %s1838, %s1826
        $region92: #{tpu_custom_call.1} parent=51 // pred_fallthru
          _
      $region52: #{tpu_custom_call.1} parent=5 // pred_fallthru
        _
      %p1844 = scmp.le.s32.totalorder 2, %s26
      // Predicated region
      $region93: #{tpu_custom_call.1} parent=5 // pred_check
        %p1845 = pneg %p1844
      $region94: #{tpu_custom_call.1} parent=5 // pred_check_branch
        %1847 = sbr.rel (%p1845) target = $region96
      $region95: #{tpu_custom_call.1} parent=5 // pred_region
        %s1848 = ssub.s32 %s26, 2
        // Predicated region
        $region97: #{tpu_custom_call.1} parent=95 // pred_check
          %p1849 = pneg %p258
        $region98: #{tpu_custom_call.1} parent=95 // pred_check_branch
          %1851 = sbr.rel (%p1849) target = $region100
        $region99: #{tpu_custom_call.1} parent=95 // pred_region
          %s1852 = sand.u32 %s243, 1
          %s1853 = scalar_lea.sflag [#allocation9], %s1852
          %s1854 = sand.u32 %s243, 1
          %s1855 = smul.addr %s1854, 8
          %s1856 = scalar_lea.vmem [#allocation18], %s1855
          %1857 = dma.done %s1853, 128
        $region100: #{tpu_custom_call.1} parent=95 // pred_fallthru
          _
      $region96: #{tpu_custom_call.1} parent=5 // pred_fallthru
        _
    $region6: #{tpu_custom_call.1} parent=1 // loop_footer
      %s30 = sadd.s32 1, %s26
    $region7: #{tpu_custom_call.1} parent=1 // loop_footer_branch
      %25 = sbr.rel target = $region3
    $region8: #{tpu_custom_call.1} parent=1 // loop_exit
      _
    %1858 = vsyncpa [#allocation8], 1
    %s1859 = scalar_lea.sflag [#allocation8], 1
    %1860 = vsyncpa %s1859, 1
    %1861 = vsyncpa [#allocation11], 1
    %s1862 = scalar_lea.sflag [#allocation11], 1
    %1863 = vsyncpa %s1862, 1
    %1864 = vsyncpa [#allocation14], 1
    %1865 = vsyncpa [#allocation17], 1
    %1866 = vsyncpa [#allocation9], 1
    %s1867 = scalar_lea.sflag [#allocation9], 1
    %1868 = vsyncpa %s1867, 1

// kernel: tpu_custom_call.1
$region0: #{tpu_custom_call.1}
  #allocation0 [shape = 'u32[]', space=smem, size = 0x4, offset = 0x4, fixed_abs, tag = 'smem constant byte address 0x4 - core index']
  #allocation1 [shape = 'u32[144,128]{1,0:T(1,128)}', space=vmem, size = 0x12000, scoped, tag = 'internal scratch']
  #allocation2 [shape = 'f32[8,32]{1,0:T(8,128)}', space=vmem, size = 0x1000, scoped, tag = 'scratch operand']
  #allocation3 [shape = 'f32[4,8,1]{2,1,0:T(8,128)}', space=vmem, size = 0x4000, scoped, tag = 'scratch operand']
  #allocation4 [shape = 'f32[4,8,1]{2,1,0:T(8,128)}', space=vmem, size = 0x4000, scoped, tag = 'scratch operand']
  #allocation5 [shape = 'f32[4,8,8]{2,1,0:T(8,128)}', space=vmem, size = 0x4000, scoped, tag = 'scratch operand']
  #allocation6 [shape = 's32[1]{0:T(128)S(6)}', space=smem, size = 0x200, scoped, tag = 'scoped memory for tpu_custom_call.1']
  %s0 = inlined_call_operand.<no memory space> [shape: s32[1], index: 0, kind: input, shape index: {}]
  %s1 = inlined_call_operand.hbm [shape: f32[2,8,32], index: 1, kind: input, shape index: {}]
  %s2 = inlined_call_operand.hbm [shape: f32[2,8,32], index: 2, kind: input, shape index: {}]
  %s3 = inlined_call_operand.hbm [shape: f32[32,32], index: 3, kind: input, shape index: {}]
  %s4 = inlined_call_operand.hbm [shape: f32[32,32], index: 4, kind: input, shape index: {}]
  %s5 = inlined_call_operand.hbm [shape: f32[32,32], index: 5, kind: input, shape index: {}]
  %s6 = inlined_call_operand.hbm [shape: f32[32,32], index: 6, kind: input, shape index: {}]
  %s7 = inlined_call_operand.vmem [shape: f32[1,32], index: 7, kind: input, shape index: {}]
  %s8 = inlined_call_operand.hbm [shape: f32[2,8,32], index: 8, kind: output, shape index: {}]
  %s9 = sld [smem:[#allocation0]]
  $region101: #{tpu_custom_call.1} parent=0
    _
  %s11 = ssub.s32 1, %s9
  %s12 = scalar_select 0, %s11, %s9
  %13 = sst [smem:[#allocation6]] %s0
  $region1: #{tpu_custom_call.1} parent=0
    #allocation7 [shape = 'u8[8192]{0}', space=vmem, size = 0x2000, scoped, tag = 'input window, operand 1']
    #allocation8 [shape = 's32[2]{0}', space=sflag, size = 0x8, scoped, tag = 'scoped memory for tpu_custom_call.1']
    #allocation9 [shape = 's32[2]{0}', space=sflag, size = 0x8, scoped, tag = 'scoped memory for tpu_custom_call.1']
    #allocation10 [shape = 'u8[8192]{0}', space=vmem, size = 0x2000, scoped, tag = 'input window, operand 2']
    #allocation11 [shape = 's32[2]{0}', space=sflag, size = 0x8, scoped, tag = 'scoped memory for tpu_custom_call.1']
    #allocation12 [shape = 'u8[16384]{0}', space=vmem, size = 0x4000, scoped, tag = 'input window, operand 3, single buffered']
    #allocation13 [shape = 'u8[16384]{0}', space=vmem, size = 0x4000, scoped, tag = 'input window, operand 4, single buffered']
    #allocation14 [shape = 's32[1]{0}', space=sflag, size = 0x4, scoped, tag = 'scoped memory for tpu_custom_call.1']
    #allocation15 [shape = 'u8[16384]{0}', space=vmem, size = 0x4000, scoped, tag = 'input window, operand 5, single buffered']
    #allocation16 [shape = 'u8[16384]{0}', space=vmem, size = 0x4000, scoped, tag = 'input window, operand 6, single buffered']
    #allocation17 [shape = 's32[1]{0}', space=sflag, size = 0x4, scoped, tag = 'scoped memory for tpu_custom_call.1']
    #allocation18 [shape = 'u8[8192]{0}', space=vmem, size = 0x2000, scoped, tag = 'output window, operand 0']
    %14 = vsyncpa [#allocation8], 0
    %s15 = scalar_lea.sflag [#allocation8], 1
    %16 = vsyncpa %s15, 0
    %17 = vsyncpa [#allocation11], 0
    %s18 = scalar_lea.sflag [#allocation11], 1
    %19 = vsyncpa %s18, 0
    %20 = vsyncpa [#allocation14], 0
    %21 = vsyncpa [#allocation17], 0
    %22 = vsyncpa [#allocation9], 0
    %s23 = scalar_lea.sflag [#allocation9], 1
    %24 = vsyncpa %s23, 0
    loop: start=0, step=1, limit=4
    $region2: #{tpu_custom_call.1} parent=1 // loop_pre_header
      _
    $region3: #{tpu_custom_call.1} parent=1 // loop_header
      %s26 = sphi 0, %s30
      %p27 = scmp.ge.s32.totalorder %s26, 4
      %s33 = sphi 0, %s52
      %s34 = sphi 0, %s48
      %s35 = sphi 0, %s44
      %s36 = sphi 0, %s33
      %s37 = sphi 0, %s34
      %s38 = sphi 0, %s35
      %s39 = sphi 0, %s36
      %s40 = sphi 0, %s37
      %s41 = sphi 0, %s38
      %s53 = sphi 0, %s53
      %s55 = sphi 0, %s53
      %s56 = sphi 0, %s55
      %s70 = sphi 0, %s56
      %s78 = sphi 0, %s80
      %s81 = sphi 0, %s78
      %s82 = sphi 0, %s81
      %s98 = sphi 0, %s82
      %s106 = sphi 0, %s108
      %s109 = sphi 0, %s106
      %s110 = sphi 0, %s109
      %s126 = sphi 0, %s110
      %s130 = sphi 0, %s130
      %s132 = sphi 0, %s130
      %s133 = sphi 0, %s132
      %s147 = sphi 0, %s133
      %s151 = sphi 0, %s151
      %s153 = sphi 0, %s151
      %s154 = sphi 0, %s153
      %s168 = sphi 0, %s154
      %s172 = sphi 0, %s172
      %s174 = sphi 0, %s172
      %s175 = sphi 0, %s174
      %s189 = sphi 0, %s175
      %s193 = sphi 0, %s193
      %s195 = sphi 0, %s193
      %s196 = sphi 0, %s195
      %s210 = sphi 0, %s196
      %s214 = sphi 0, %s214
      %s216 = sphi 0, %s214
      %s217 = sphi 0, %s216
      %s231 = sphi 0, %s217
      %s239 = sphi 0, %s241
      %s242 = sphi 0, %s239
      %s243 = sphi 0, %s242
      %s259 = sphi 0, %s243
    $region4: #{tpu_custom_call.1} parent=1 // loop_header_branch
      %29 = sbr.rel (%p27) target = $region8
    $region5: #{tpu_custom_call.1} parent=1 // loop_body
      %s31 = ssub.s32 %s26, 1
      %s32 = ssub.s32 %s26, 2
      %s42 = sadd.s32 1, %s35
      %p43 = scmp.ge.s32.totalorder %s42, 1
      %s44 = scalar_select %p43, 0, %s42
      %s45 = sadd.s32 1, %s34
      %s46 = scalar_select %p43, %s45, %s34
      %p47 = scmp.ge.s32.totalorder %s46, 1
      %s48 = scalar_select %p47, 0, %s46
      %s49 = sadd.s32 1, %s33
      %s50 = scalar_select %p47, %s49, %s33
      %p51 = scmp.ge.s32.totalorder %s50, 2
      %s52 = scalar_select %p51, 0, %s50
      %s54 = sadd.s32 %s53, 1
      %p57 = scmp.eq.s32.totalorder %s26, 1
      %p58 = scmp.ne.s32.totalorder %s53, %s55
      %p59 = scmp.eq.s32.totalorder %s26, 0
      %p60 = por %p58, %p59
      %p61 = scmp.ne.s32.totalorder %s53, %s55
      %p62 = scmp.eq.s32.totalorder %s31, 1
      %p63 = por %p61, %p62
      %p64 = scmp.ne.s32.totalorder %s55, %s56
      %p65 = scmp.eq.s32.totalorder %s31, 0
      %p66 = por %p64, %p65
      %p67 = scmp.ne.s32.totalorder %s55, %s56
      %p68 = scmp.eq.s32.totalorder %s32, 1
      %p69 = por %p67, %p68
      %p71 = scmp.ne.s32.totalorder %s56, %s70
      %p72 = scmp.eq.s32.totalorder %s32, 0
      %p73 = por %p71, %p72
      %s74 = ssub.s32 %s33, %s52
      %s75 = ssub.s32 %s34, %s48
      %s76 = sor.u32 %s74, %s75
      %p77 = scmp.eq.s32.totalorder %s76, 0
      %s79 = sadd.s32 %s78, 1
      %s80 = scalar_select %p77, %s78, %s79
      %p83 = pneg %p77
      %p84 = scmp.eq.s32.totalorder %s26, 1
      %p85 = por %p83, %p84
      %p86 = scmp.ne.s32.totalorder %s78, %s81
      %p87 = scmp.eq.s32.totalorder %s26, 0
      %p88 = por %p86, %p87
      %p89 = scmp.ne.s32.totalorder %s78, %s81
      %p90 = scmp.eq.s32.totalorder %s31, 1
      %p91 = por %p89, %p90
      %p92 = scmp.ne.s32.totalorder %s81, %s82
      %p93 = scmp.eq.s32.totalorder %s31, 0
      %p94 = por %p92, %p93
      %p95 = scmp.ne.s32.totalorder %s81, %s82
      %p96 = scmp.eq.s32.totalorder %s32, 1
      %p97 = por %p95, %p96
      %p99 = scmp.ne.s32.totalorder %s82, %s98
      %p100 = scmp.eq.s32.totalorder %s32, 0
      %p101 = por %p99, %p100
      %s102 = ssub.s32 %s33, %s52
      %s103 = ssub.s32 %s35, %s44
      %s104 = sor.u32 %s102, %s103
      %p105 = scmp.eq.s32.totalorder %s104, 0
      %s107 = sadd.s32 %s106, 1
      %s108 = scalar_select %p105, %s106, %s107
      %p111 = pneg %p105
      %p112 = scmp.eq.s32.totalorder %s26, 1
      %p113 = por %p111, %p112
      %p114 = scmp.ne.s32.totalorder %s106, %s109
      %p115 = scmp.eq.s32.totalorder %s26, 0
      %p116 = por %p114, %p115
      %p117 = scmp.ne.s32.totalorder %s106, %s109
      %p118 = scmp.eq.s32.totalorder %s31, 1
      %p119 = por %p117, %p118
      %p120 = scmp.ne.s32.totalorder %s109, %s110
      %p121 = scmp.eq.s32.totalorder %s31, 0
      %p122 = por %p120, %p121
      %p123 = scmp.ne.s32.totalorder %s109, %s110
      %p124 = scmp.eq.s32.totalorder %s32, 1
      %p125 = por %p123, %p124
      %p127 = scmp.ne.s32.totalorder %s110, %s126
      %p128 = scmp.eq.s32.totalorder %s32, 0
      %p129 = por %p127, %p128
      %s131 = sadd.s32 %s130, 1
      %p134 = scmp.eq.s32.totalorder %s26, 1
      %p135 = scmp.ne.s32.totalorder %s130, %s132
      %p136 = scmp.eq.s32.totalorder %s26, 0
      %p137 = por %p135, %p136
      %p138 = scmp.ne.s32.totalorder %s130, %s132
      %p139 = scmp.eq.s32.totalorder %s31, 1
      %p140 = por %p138, %p139
      %p141 = scmp.ne.s32.totalorder %s132, %s133
      %p142 = scmp.eq.s32.totalorder %s31, 0
      %p143 = por %p141, %p142
      %p144 = scmp.ne.s32.totalorder %s132, %s133
      %p145 = scmp.eq.s32.totalorder %s32, 1
      %p146 = por %p144, %p145
      %p148 = scmp.ne.s32.totalorder %s133, %s147
      %p149 = scmp.eq.s32.totalorder %s32, 0
      %p150 = por %p148, %p149
      %s152 = sadd.s32 %s151, 1
      %p155 = scmp.eq.s32.totalorder %s26, 1
      %p156 = scmp.ne.s32.totalorder %s151, %s153
      %p157 = scmp.eq.s32.totalorder %s26, 0
      %p158 = por %p156, %p157
      %p159 = scmp.ne.s32.totalorder %s151, %s153
      %p160 = scmp.eq.s32.totalorder %s31, 1
      %p161 = por %p159, %p160
      %p162 = scmp.ne.s32.totalorder %s153, %s154
      %p163 = scmp.eq.s32.totalorder %s31, 0
      %p164 = por %p162, %p163
      %p165 = scmp.ne.s32.totalorder %s153, %s154
      %p166 = scmp.eq.s32.totalorder %s32, 1
      %p167 = por %p165, %p166
      %p169 = scmp.ne.s32.totalorder %s154, %s168
      %p170 = scmp.eq.s32.totalorder %s32, 0
      %p171 = por %p169, %p170
      %s173 = sadd.s32 %s172, 1
      %p176 = scmp.eq.s32.totalorder %s26, 1
      %p177 = scmp.ne.s32.totalorder %s172, %s174
      %p178 = scmp.eq.s32.totalorder %s26, 0
      %p179 = por %p177, %p178
      %p180 = scmp.ne.s32.totalorder %s172, %s174
      %p181 = scmp.eq.s32.totalorder %s31, 1
      %p182 = por %p180, %p181
      %p183 = scmp.ne.s32.totalorder %s174, %s175
      %p184 = scmp.eq.s32.totalorder %s31, 0
      %p185 = por %p183, %p184
      %p186 = scmp.ne.s32.totalorder %s174, %s175
      %p187 = scmp.eq.s32.totalorder %s32, 1
      %p188 = por %p186, %p187
      %p190 = scmp.ne.s32.totalorder %s175, %s189
      %p191 = scmp.eq.s32.totalorder %s32, 0
      %p192 = por %p190, %p191
      %s194 = sadd.s32 %s193, 1
      %p197 = scmp.eq.s32.totalorder %s26, 1
      %p198 = scmp.ne.s32.totalorder %s193, %s195
      %p199 = scmp.eq.s32.totalorder %s26, 0
      %p200 = por %p198, %p199
      %p201 = scmp.ne.s32.totalorder %s193, %s195
      %p202 = scmp.eq.s32.totalorder %s31, 1
      %p203 = por %p201, %p202
      %p204 = scmp.ne.s32.totalorder %s195, %s196
      %p205 = scmp.eq.s32.totalorder %s31, 0
      %p206 = por %p204, %p205
      %p207 = scmp.ne.s32.totalorder %s195, %s196
      %p208 = scmp.eq.s32.totalorder %s32, 1
      %p209 = por %p207, %p208
      %p211 = scmp.ne.s32.totalorder %s196, %s210
      %p212 = scmp.eq.s32.totalorder %s32, 0
      %p213 = por %p211, %p212
      %s215 = sadd.s32 %s214, 1
      %p218 = scmp.eq.s32.totalorder %s26, 1
      %p219 = scmp.ne.s32.totalorder %s214, %s216
      %p220 = scmp.eq.s32.totalorder %s26, 0
      %p221 = por %p219, %p220
      %p222 = scmp.ne.s32.totalorder %s214, %s216
      %p223 = scmp.eq.s32.totalorder %s31, 1
      %p224 = por %p222, %p223
      %p225 = scmp.ne.s32.totalorder %s216, %s217
      %p226 = scmp.eq.s32.totalorder %s31, 0
      %p227 = por %p225, %p226
      %p228 = scmp.ne.s32.totalorder %s216, %s217
      %p229 = scmp.eq.s32.totalorder %s32, 1
      %p230 = por %p228, %p229
      %p232 = scmp.ne.s32.totalorder %s217, %s231
      %p233 = scmp.eq.s32.totalorder %s32, 0
      %p234 = por %p232, %p233
      %s235 = ssub.s32 %s33, %s52
      %s236 = ssub.s32 %s34, %s48
      %s237 = sor.u32 %s235, %s236
      %p238 = scmp.eq.s32.totalorder %s237, 0
      %s240 = sadd.s32 %s239, 1
      %s241 = scalar_select %p238, %s239, %s240
      %p244 = pneg %p238
      %p245 = scmp.eq.s32.totalorder %s26, 1
      %p246 = por %p244, %p245
      %p247 = scmp.ne.s32.totalorder %s239, %s242
      %p248 = scmp.eq.s32.totalorder %s26, 0
      %p249 = por %p247, %p248
      %p250 = scmp.ne.s32.totalorder %s239, %s242
      %p251 = scmp.eq.s32.totalorder %s31, 1
      %p252 = por %p250, %p251
      %p253 = scmp.ne.s32.totalorder %s242, %s243
      %p254 = scmp.eq.s32.totalorder %s31, 0
      %p255 = por %p253, %p254
      %p256 = scmp.ne.s32.totalorder %s242, %s243
      %p257 = scmp.eq.s32.totalorder %s32, 1
      %p258 = por %p256, %p257
      %p260 = scmp.ne.s32.totalorder %s243, %s259
      %p261 = scmp.eq.s32.totalorder %s32, 0
      %p262 = por %p260, %p261
      %p263 = scmp.le.s32.totalorder 1, %s26
      %p264 = scmp.lt.s32.totalorder %s26, 3
      %p265 = pnand %p263, %p264
      %p266 = pneg %p265
      // Predicated region
      $region9: #{tpu_custom_call.1} parent=5 // pred_check
        _
      $region10: #{tpu_custom_call.1} parent=5 // pred_check_branch
        %268 = sbr.rel (%p265) target = $region12
      $region11: #{tpu_custom_call.1} parent=5 // pred_region
        %s269 = ssub.s32 %s26, 1
        // Predicated region
        $region13: #{tpu_custom_call.1} parent=11 // pred_check
          %p270 = pneg %p66
        $region14: #{tpu_custom_call.1} parent=11 // pred_check_branch
          %272 = sbr.rel (%p270) target = $region16
        $region15: #{tpu_custom_call.1} parent=11 // pred_region
          _
        $region16: #{tpu_custom_call.1} parent=11 // pred_fallthru
          _
        // Predicated region
        $region17: #{tpu_custom_call.1} parent=11 // pred_check
          %p273 = pneg %p143
        $region18: #{tpu_custom_call.1} parent=11 // pred_check_branch
          %275 = sbr.rel (%p273) target = $region20
        $region19: #{tpu_custom_call.1} parent=11 // pred_region
          %s277 = ssub.s32 512, 512
          %278 = vsyncadd [#allocation11], %s277
          %s279 = sshll.u32 [#allocation12], 4
          %s280 = int_to_ptr.vmem [resolvable:$true] %s279
          %285 = dma.hbm_to_vmem [thread:$0]  %s3, 512, %s280, [#allocation11], 128, 128, 8
        $region20: #{tpu_custom_call.1} parent=11 // pred_fallthru
          _
        // Predicated region
        $region21: #{tpu_custom_call.1} parent=11 // pred_check
          %p286 = pneg %p164
        $region22: #{tpu_custom_call.1} parent=11 // pred_check_branch
          %288 = sbr.rel (%p286) target = $region24
        $region23: #{tpu_custom_call.1} parent=11 // pred_region
          %s290 = ssub.s32 512, 512
          %291 = vsyncadd [#allocation14], %s290
          %s292 = sshll.u32 [#allocation13], 4
          %s293 = int_to_ptr.vmem [resolvable:$true] %s292
          %298 = dma.hbm_to_vmem [thread:$0]  %s4, 512, %s293, [#allocation14], 128, 128, 8
        $region24: #{tpu_custom_call.1} parent=11 // pred_fallthru
          _
        // Predicated region
        $region25: #{tpu_custom_call.1} parent=11 // pred_check
          %p299 = pneg %p185
        $region26: #{tpu_custom_call.1} parent=11 // pred_check_branch
          %301 = sbr.rel (%p299) target = $region28
        $region27: #{tpu_custom_call.1} parent=11 // pred_region
          %s303 = ssub.s32 512, 512
          %304 = vsyncadd [#allocation14], %s303
          %s305 = sshll.u32 [#allocation15], 4
          %s306 = int_to_ptr.vmem [resolvable:$true] %s305
          %311 = dma.hbm_to_vmem [thread:$0]  %s5, 512, %s306, [#allocation14], 128, 128, 8
        $region28: #{tpu_custom_call.1} parent=11 // pred_fallthru
          _
        // Predicated region
        $region29: #{tpu_custom_call.1} parent=11 // pred_check
          %p312 = pneg %p206
        $region30: #{tpu_custom_call.1} parent=11 // pred_check_branch
          %314 = sbr.rel (%p312) target = $region32
        $region31: #{tpu_custom_call.1} parent=11 // pred_region
          %s316 = ssub.s32 512, 512
          %317 = vsyncadd [#allocation17], %s316
          %s318 = sshll.u32 [#allocation16], 4
          %s319 = int_to_ptr.vmem [resolvable:$true] %s318
          %324 = dma.hbm_to_vmem [thread:$0]  %s6, 512, %s319, [#allocation17], 128, 128, 8
        $region32: #{tpu_custom_call.1} parent=11 // pred_fallthru
          _
        // Predicated region
        $region33: #{tpu_custom_call.1} parent=11 // pred_check
          %p325 = pneg %p227
        $region34: #{tpu_custom_call.1} parent=11 // pred_check_branch
          %327 = sbr.rel (%p325) target = $region36
        $region35: #{tpu_custom_call.1} parent=11 // pred_region
          _
        $region36: #{tpu_custom_call.1} parent=11 // pred_fallthru
          _
      $region12: #{tpu_custom_call.1} parent=5 // pred_fallthru
        _
      %p328 = scmp.lt.s32.totalorder %s26, 2
      // Predicated region
      $region37: #{tpu_custom_call.1} parent=5 // pred_check
        %p329 = pneg %p328
      $region38: #{tpu_custom_call.1} parent=5 // pred_check_branch
        %331 = sbr.rel (%p329) target = $region40
      $region39: #{tpu_custom_call.1} parent=5 // pred_region
        // Predicated region
        $region41: #{tpu_custom_call.1} parent=39 // pred_check
          %p332 = pneg %p88
        $region42: #{tpu_custom_call.1} parent=39 // pred_check_branch
          %334 = sbr.rel (%p332) target = $region44
        $region43: #{tpu_custom_call.1} parent=39 // pred_region
          %s335 = sand.u32 %s78, 1
          %s336 = scalar_lea.sflag [#allocation8], %s335
          %s337 = sand.u32 %s78, 1
          %s338 = smul.addr %s337, 8
          %s339 = scalar_lea.vmem [#allocation7], %s338
          %s341 = ssub.s32 128, 128
          %342 = vsyncadd %s336, %s341
          %s343 = sadd.s32 %s34, %s33
          %s344 = smul.addr %s343, 128
          %s345 = scalar_lea.hbm %s1, %s344
          %s347 = sshll.u32 %s339, 4
          %s348 = int_to_ptr.vmem [resolvable:$true] %s347
          %350 = dma.hbm_to_vmem [thread:$0]  %s345, 128, %s348, %s336
        $region44: #{tpu_custom_call.1} parent=39 // pred_fallthru
          _
        // Predicated region
        $region45: #{tpu_custom_call.1} parent=39 // pred_check
          %p351 = pneg %p116
        $region46: #{tpu_custom_call.1} parent=39 // pred_check_branch
          %353 = sbr.rel (%p351) target = $region48
        $region47: #{tpu_custom_call.1} parent=39 // pred_region
          %s354 = sand.u32 %s26, 1
          %s355 = scalar_lea.sflag [#allocation11], %s354
          %s356 = sand.u32 %s106, 1
          %s357 = smul.addr %s356, 8
          %s358 = scalar_lea.vmem [#allocation10], %s357
          %s360 = ssub.s32 128, 128
          %361 = vsyncadd %s355, %s360
          %s362 = sadd.s32 %s35, %s33
          %s363 = smul.addr %s362, 128
          %s364 = scalar_lea.hbm %s2, %s363
          %s366 = sshll.u32 %s358, 4
          %s367 = int_to_ptr.vmem [resolvable:$true] %s366
          %369 = dma.hbm_to_vmem [thread:$0]  %s364, 128, %s367, %s355
        $region48: #{tpu_custom_call.1} parent=39 // pred_fallthru
          _
      $region40: #{tpu_custom_call.1} parent=5 // pred_fallthru
        _
      %p370 = scmp.le.s32.totalorder 1, %s26
      %p371 = scmp.lt.s32.totalorder %s26, 3
      %p372 = pnand %p370, %p371
      %p373 = pneg %p372
      // Predicated region
      $region49: #{tpu_custom_call.1} parent=5 // pred_check
        _
      $region50: #{tpu_custom_call.1} parent=5 // pred_check_branch
        %375 = sbr.rel (%p372) target = $region52
      $region51: #{tpu_custom_call.1} parent=5 // pred_region
        %s376 = ssub.s32 %s26, 1
        %s377 = sand.u32 %s81, 1
        %s378 = scalar_lea.sflag [#allocation8], %s377
        %s379 = sand.u32 %s81, 1
        %s380 = smul.addr %s379, 8
        %s381 = scalar_lea.vmem [#allocation7], %s380
        // Predicated region
        $region53: #{tpu_custom_call.1} parent=51 // pred_check
          %p382 = pneg %p94
        $region54: #{tpu_custom_call.1} parent=51 // pred_check_branch
          %384 = sbr.rel (%p382) target = $region56
        $region55: #{tpu_custom_call.1} parent=51 // pred_region
          %385 = dma.done %s378, 128
        $region56: #{tpu_custom_call.1} parent=51 // pred_fallthru
          _
        %s386 = sand.u32 %s31, 1
        %s387 = scalar_lea.sflag [#allocation11], %s386
        %s388 = sand.u32 %s109, 1
        %s389 = smul.addr %s388, 8
        %s390 = scalar_lea.vmem [#allocation10], %s389
        // Predicated region
        $region57: #{tpu_custom_call.1} parent=51 // pred_check
          %p391 = pneg %p122
        $region58: #{tpu_custom_call.1} parent=51 // pred_check_branch
          %393 = sbr.rel (%p391) target = $region60
        $region59: #{tpu_custom_call.1} parent=51 // pred_region
          %394 = dma.done %s387, 128
        $region60: #{tpu_custom_call.1} parent=51 // pred_fallthru
          _
        // Predicated region
        $region61: #{tpu_custom_call.1} parent=51 // pred_check
          %p395 = pneg %p143
        $region62: #{tpu_custom_call.1} parent=51 // pred_check_branch
          %397 = sbr.rel (%p395) target = $region64
        $region63: #{tpu_custom_call.1} parent=51 // pred_region
          %398 = dma.done [#allocation11], 512
        $region64: #{tpu_custom_call.1} parent=51 // pred_fallthru
          _
        // Predicated region
        $region65: #{tpu_custom_call.1} parent=51 // pred_check
          %p399 = pneg %p164
        $region66: #{tpu_custom_call.1} parent=51 // pred_check_branch
          %401 = sbr.rel (%p399) target = $region68
        $region67: #{tpu_custom_call.1} parent=51 // pred_region
          %402 = dma.done [#allocation14], 512
        $region68: #{tpu_custom_call.1} parent=51 // pred_fallthru
          _
        // Predicated region
        $region69: #{tpu_custom_call.1} parent=51 // pred_check
          %p403 = pneg %p185
        $region70: #{tpu_custom_call.1} parent=51 // pred_check_branch
          %405 = sbr.rel (%p403) target = $region72
        $region71: #{tpu_custom_call.1} parent=51 // pred_region
          %406 = dma.done [#allocation14], 512
        $region72: #{tpu_custom_call.1} parent=51 // pred_fallthru
          _
        // Predicated region
        $region73: #{tpu_custom_call.1} parent=51 // pred_check
          %p407 = pneg %p206
        $region74: #{tpu_custom_call.1} parent=51 // pred_check_branch
          %409 = sbr.rel (%p407) target = $region76
        $region75: #{tpu_custom_call.1} parent=51 // pred_region
          %410 = dma.done [#allocation17], 512
        $region76: #{tpu_custom_call.1} parent=51 // pred_fallthru
          _
        %p411 = pneg %p66
        %p412 = pneg %p63
        %s413 = sand.u32 %s81, 1
        %s414 = scalar_lea.sflag [#allocation8], %s413
        %s415 = sand.u32 %s81, 1
        %s416 = smul.addr %s415, 8
        %s417 = scalar_lea.vmem [#allocation7], %s416
        %p418 = pneg %p94
        %p419 = pneg %p91
        %s420 = sand.u32 %s31, 1
        %s421 = scalar_lea.sflag [#allocation11], %s420
        %s422 = sand.u32 %s109, 1
        %s423 = smul.addr %s422, 8
        %s424 = scalar_lea.vmem [#allocation10], %s423
        %p425 = pneg %p122
        %p426 = pneg %p119
        %p427 = pneg %p143
        %p428 = pneg %p140
        %p429 = pneg %p164
        %p430 = pneg %p161
        %p431 = pneg %p185
        %p432 = pneg %p182
        %p433 = pneg %p206
        %p434 = pneg %p203
        %p435 = pneg %p227
        %p436 = pneg %p224
        %p437 = pneg %p255
        %p438 = pneg %p252
        %s439 = sand.u32 %s242, 1
        %s440 = scalar_lea.sflag [#allocation9], %s439
        %s441 = sand.u32 %s242, 1
        %s442 = smul.addr %s441, 8
        %s443 = scalar_lea.vmem [#allocation18], %s442
        %p444 = scmp.eq.s32.totalorder %s38, 0
        // Predicated region
        $region77: #{tpu_custom_call.1} parent=51 // pred_check
          %p445 = pneg %p444
        $region78: #{tpu_custom_call.1} parent=51 // pred_check_branch
          %447 = sbr.rel (%p445) target = $region80
        $region79: #{tpu_custom_call.1} parent=51 // pred_region
          %v448 = vld [vmem:[%s381] sm:$0xff]
          %v449 = vld [vmem:[#allocation12] sm:$0xff]
          %v450 = vld [vmem:[#allocation12 + $0x8] sm:$0xff]
          %v451 = vld [vmem:[#allocation12 + $0x10] sm:$0xff]
          %v452 = vld [vmem:[#allocation12 + $0x18] sm:$0xff]
          %vm453 = vcmask 261120
          %v455 = vsel %vm453, %v448, 0
          %457 = vmatprep.subr.mxu0 0.0
          %458 = vmatpush1.msra.mxu0 0.0
          %459 = vmatprep.subr.mxu0 0.0
          %460 = vmatpush1.msra.mxu0 0.0
          %461 = vmatprep.subr.mxu0 0.0
          %462 = vmatpush1.msra.mxu0 0.0
          %463 = vmatprep.subr.mxu0 0.0
          %464 = vmatpush1.msra.mxu0 0.0
          %465 = vmatprep.subr.mxu0 0.0
          %466 = vmatpush1.msra.mxu0 0.0
          %467 = vmatprep.subr.mxu0 0.0
          %468 = vmatpush1.msra.mxu0 0.0
          %469 = vmatprep.subr.mxu0 0.0
          %470 = vmatpush1.msra.mxu0 0.0
          %471 = vmatprep.subr.mxu0 0.0
          %472 = vmatpush1.msra.mxu0 0.0
          %473 = vmatprep.subr.mxu0 0.0
          %474 = vmatpush1.msra.mxu0 0.0
          %475 = vmatprep.subr.mxu0 0.0
          %476 = vmatpush1.msra.mxu0 0.0
          %477 = vmatprep.subr.mxu0 0.0
          %478 = vmatpush1.msra.mxu0 0.0
          %479 = vmatprep.subr.mxu0 0.0
          %480 = vmatpush1.msra.mxu0 0.0
          %481 = vmatprep.subr.mxu0 0.0
          %482 = vmatpush1.msra.mxu0 %v452
          %483 = vmatprep.subr.mxu0 0.0
          %484 = vmatpush1.msra.mxu0 %v451
          %485 = vmatprep.subr.mxu0 0.0
          %486 = vmatpush1.msra.mxu0 %v450
          %487 = vmatprep.subr.mxu0 0.0
          %488 = vmatpush1.msra.mxu0 %v449
          %489 = vmatprep.subr.mxu0 0.0
          %490 = vmatpush2.msra.mxu0 0.0
          %491 = vmatprep.subr.mxu0 0.0
          %492 = vmatpush2.msra.mxu0 0.0
          %493 = vmatprep.subr.mxu0 0.0
          %494 = vmatpush2.msra.mxu0 0.0
          %495 = vmatprep.subr.mxu0 0.0
          %496 = vmatpush2.msra.mxu0 0.0
          %497 = vmatprep.subr.mxu0 0.0
          %498 = vmatpush2.msra.mxu0 0.0
          %499 = vmatprep.subr.mxu0 0.0
          %500 = vmatpush2.msra.mxu0 0.0
          %501 = vmatprep.subr.mxu0 0.0
          %502 = vmatpush2.msra.mxu0 0.0
          %503 = vmatprep.subr.mxu0 0.0
          %504 = vmatpush2.msra.mxu0 0.0
          %505 = vmatprep.subr.mxu0 0.0
          %506 = vmatpush2.msra.mxu0 0.0
          %507 = vmatprep.subr.mxu0 0.0
          %508 = vmatpush2.msra.mxu0 0.0
          %509 = vmatprep.subr.mxu0 0.0
          %510 = vmatpush2.msra.mxu0 0.0
          %511 = vmatprep.subr.mxu0 0.0
          %512 = vmatpush2.msra.mxu0 0.0
          %513 = vmatprep.subr.mxu0 0.0
          %514 = vmatpush2.msra.mxu0 0.0
          %515 = vmatprep.subr.mxu0 0.0
          %516 = vmatpush2.msra.mxu0 0.0
          %517 = vmatprep.subr.mxu0 0.0
          %518 = vmatpush2.msra.mxu0 0.0
          %519 = vmatprep.subr.mxu0 0.0
          %520 = vmatpush2.msra.mxu0 0.0
          %521 = vmatprep.mubr.f32.mxu0 0.0
          %522 = vmatmul.mubr.f32.gmra.mxu0 %v455
          %v523 = vpop.f32.mrf.mxu0
          %v524 = vadd.f32 0.0, %v523
          %v525 = vpop.f32.mrf.mxu0
          %526 = vdwg.mxu0
          %v527 = vmul.f32 %v524, 0.17677669
          %528 = vst.msk [vmem:[#allocation2] sm:$0xff] %vm453, %v527
          %vm529 = vcmask 7168
          %530 = vst.msk [vmem:[#allocation3] sm:$0xff] %vm529, -1e+30
          %531 = vst.msk [vmem:[#allocation3 + $0x8] sm:$0xff] %vm529, -1e+30
          %532 = vst.msk [vmem:[#allocation3 + $0x10] sm:$0xff] %vm529, -1e+30
          %533 = vst.msk [vmem:[#allocation3 + $0x18] sm:$0xff] %vm529, -1e+30
          %534 = vst.msk [vmem:[#allocation4] sm:$0xff] %vm529, 0.0
          %535 = vst.msk [vmem:[#allocation4 + $0x8] sm:$0xff] %vm529, 0.0
          %536 = vst.msk [vmem:[#allocation4 + $0x10] sm:$0xff] %vm529, 0.0
          %537 = vst.msk [vmem:[#allocation4 + $0x18] sm:$0xff] %vm529, 0.0
          %vm538 = vcmask 64512
          %539 = vst.msk [vmem:[#allocation5] sm:$0xff] %vm538, 0.0
          %540 = vst.msk [vmem:[#allocation5 + $0x8] sm:$0xff] %vm538, 0.0
          %541 = vst.msk [vmem:[#allocation5 + $0x10] sm:$0xff] %vm538, 0.0
          %542 = vst.msk [vmem:[#allocation5 + $0x18] sm:$0xff] %vm538, 0.0
        $region80: #{tpu_custom_call.1} parent=51 // pred_fallthru
          _
        %s543 = sadd.s32 %s37, 1
        %s544 = smul.u32 %s543, 8
        %s545 = ssub.s32 %s544, 1
        %s546 = smul.u32 %s38, 8
        %p547 = scmp.le.s32.totalorder %s546, %s545
        // Predicated region
        $region81: #{tpu_custom_call.1} parent=51 // pred_check
          %p548 = pneg %p547
        $region82: #{tpu_custom_call.1} parent=51 // pred_check_branch
          %550 = sbr.rel (%p548) target = $region84
        $region83: #{tpu_custom_call.1} parent=51 // pred_region
          %v551 = vld [vmem:[%s390] sm:$0xff]
          %v552 = vld [vmem:[#allocation13] sm:$0xff]
          %v553 = vld [vmem:[#allocation13 + $0x8] sm:$0xff]
          %v554 = vld [vmem:[#allocation13 + $0x10] sm:$0xff]
          %v555 = vld [vmem:[#allocation13 + $0x18] sm:$0xff]
          %vm556 = vcmask 261120
          %v558 = vsel %vm556, %v551, 0
          %560 = vmatprep.subr.mxu0 0.0
          %561 = vmatpush1.msra.mxu0 0.0
          %562 = vmatprep.subr.mxu0 0.0
          %563 = vmatpush1.msra.mxu0 0.0
          %564 = vmatprep.subr.mxu0 0.0
          %565 = vmatpush1.msra.mxu0 0.0
          %566 = vmatprep.subr.mxu0 0.0
          %567 = vmatpush1.msra.mxu0 0.0
          %568 = vmatprep.subr.mxu0 0.0
          %569 = vmatpush1.msra.mxu0 0.0
          %570 = vmatprep.subr.mxu0 0.0
          %571 = vmatpush1.msra.mxu0 0.0
          %572 = vmatprep.subr.mxu0 0.0
          %573 = vmatpush1.msra.mxu0 0.0
          %574 = vmatprep.subr.mxu0 0.0
          %575 = vmatpush1.msra.mxu0 0.0
          %576 = vmatprep.subr.mxu0 0.0
          %577 = vmatpush1.msra.mxu0 0.0
          %578 = vmatprep.subr.mxu0 0.0
          %579 = vmatpush1.msra.mxu0 0.0
          %580 = vmatprep.subr.mxu0 0.0
          %581 = vmatpush1.msra.mxu0 0.0
          %582 = vmatprep.subr.mxu0 0.0
          %583 = vmatpush1.msra.mxu0 0.0
          %584 = vmatprep.subr.mxu0 0.0
          %585 = vmatpush1.msra.mxu0 %v555
          %586 = vmatprep.subr.mxu0 0.0
          %587 = vmatpush1.msra.mxu0 %v554
          %588 = vmatprep.subr.mxu0 0.0
          %589 = vmatpush1.msra.mxu0 %v553
          %590 = vmatprep.subr.mxu0 0.0
          %591 = vmatpush1.msra.mxu0 %v552
          %592 = vmatprep.subr.mxu0 0.0
          %593 = vmatpush2.msra.mxu0 0.0
          %594 = vmatprep.subr.mxu0 0.0
          %595 = vmatpush2.msra.mxu0 0.0
          %596 = vmatprep.subr.mxu0 0.0
          %597 = vmatpush2.msra.mxu0 0.0
          %598 = vmatprep.subr.mxu0 0.0
          %599 = vmatpush2.msra.mxu0 0.0
          %600 = vmatprep.subr.mxu0 0.0
          %601 = vmatpush2.msra.mxu0 0.0
          %602 = vmatprep.subr.mxu0 0.0
          %603 = vmatpush2.msra.mxu0 0.0
          %604 = vmatprep.subr.mxu0 0.0
          %605 = vmatpush2.msra.mxu0 0.0
          %606 = vmatprep.subr.mxu0 0.0
          %607 = vmatpush2.msra.mxu0 0.0
          %608 = vmatprep.subr.mxu0 0.0
          %609 = vmatpush2.msra.mxu0 0.0
          %610 = vmatprep.subr.mxu0 0.0
          %611 = vmatpush2.msra.mxu0 0.0
          %612 = vmatprep.subr.mxu0 0.0
          %613 = vmatpush2.msra.mxu0 0.0
          %614 = vmatprep.subr.mxu0 0.0
          %615 = vmatpush2.msra.mxu0 0.0
          %616 = vmatprep.subr.mxu0 0.0
          %617 = vmatpush2.msra.mxu0 0.0
          %618 = vmatprep.subr.mxu0 0.0
          %619 = vmatpush2.msra.mxu0 0.0
          %620 = vmatprep.subr.mxu0 0.0
          %621 = vmatpush2.msra.mxu0 0.0
          %622 = vmatprep.subr.mxu0 0.0
          %623 = vmatpush2.msra.mxu0 0.0
          %624 = vmatprep.mubr.f32.mxu0 0.0
          %625 = vmatmul.mubr.f32.gmra.mxu0 %v558
          %v626 = vpop.f32.mrf.mxu0
          %v627 = vadd.f32 0.0, %v626
          %v628 = vpop.f32.mrf.mxu0
          %629 = vdwg.mxu0
          %v630 = vld [vmem:[#allocation15] sm:$0xff]
          %v631 = vld [vmem:[#allocation15 + $0x8] sm:$0xff]
          %v632 = vld [vmem:[#allocation15 + $0x10] sm:$0xff]
          %v633 = vld [vmem:[#allocation15 + $0x18] sm:$0xff]
          %634 = vmatprep.subr.mxu0 0.0
          %635 = vmatpush1.msra.mxu0 0.0
          %636 = vmatprep.subr.mxu0 0.0
          %637 = vmatpush1.msra.mxu0 0.0
          %638 = vmatprep.subr.mxu0 0.0
          %639 = vmatpush1.msra.mxu0 0.0
          %640 = vmatprep.subr.mxu0 0.0
          %641 = vmatpush1.msra.mxu0 0.0
          %642 = vmatprep.subr.mxu0 0.0
          %643 = vmatpush1.msra.mxu0 0.0
          %644 = vmatprep.subr.mxu0 0.0
          %645 = vmatpush1.msra.mxu0 0.0
          %646 = vmatprep.subr.mxu0 0.0
          %647 = vmatpush1.msra.mxu0 0.0
          %648 = vmatprep.subr.mxu0 0.0
          %649 = vmatpush1.msra.mxu0 0.0
          %650 = vmatprep.subr.mxu0 0.0
          %651 = vmatpush1.msra.mxu0 0.0
          %652 = vmatprep.subr.mxu0 0.0
          %653 = vmatpush1.msra.mxu0 0.0
          %654 = vmatprep.subr.mxu0 0.0
          %655 = vmatpush1.msra.mxu0 0.0
          %656 = vmatprep.subr.mxu0 0.0
          %657 = vmatpush1.msra.mxu0 0.0
          %658 = vmatprep.subr.mxu0 0.0
          %659 = vmatpush1.msra.mxu0 %v633
          %660 = vmatprep.subr.mxu0 0.0
          %661 = vmatpush1.msra.mxu0 %v632
          %662 = vmatprep.subr.mxu0 0.0
          %663 = vmatpush1.msra.mxu0 %v631
          %664 = vmatprep.subr.mxu0 0.0
          %665 = vmatpush1.msra.mxu0 %v630
          %666 = vmatprep.subr.mxu0 0.0
          %667 = vmatpush2.msra.mxu0 0.0
          %668 = vmatprep.subr.mxu0 0.0
          %669 = vmatpush2.msra.mxu0 0.0
          %670 = vmatprep.subr.mxu0 0.0
          %671 = vmatpush2.msra.mxu0 0.0
          %672 = vmatprep.subr.mxu0 0.0
          %673 = vmatpush2.msra.mxu0 0.0
          %674 = vmatprep.subr.mxu0 0.0
          %675 = vmatpush2.msra.mxu0 0.0
          %676 = vmatprep.subr.mxu0 0.0
          %677 = vmatpush2.msra.mxu0 0.0
          %678 = vmatprep.subr.mxu0 0.0
          %679 = vmatpush2.msra.mxu0 0.0
          %680 = vmatprep.subr.mxu0 0.0
          %681 = vmatpush2.msra.mxu0 0.0
          %682 = vmatprep.subr.mxu0 0.0
          %683 = vmatpush2.msra.mxu0 0.0
          %684 = vmatprep.subr.mxu0 0.0
          %685 = vmatpush2.msra.mxu0 0.0
          %686 = vmatprep.subr.mxu0 0.0
          %687 = vmatpush2.msra.mxu0 0.0
          %688 = vmatprep.subr.mxu0 0.0
          %689 = vmatpush2.msra.mxu0 0.0
          %690 = vmatprep.subr.mxu0 0.0
          %691 = vmatpush2.msra.mxu0 0.0
          %692 = vmatprep.subr.mxu0 0.0
          %693 = vmatpush2.msra.mxu0 0.0
          %694 = vmatprep.subr.mxu0 0.0
          %695 = vmatpush2.msra.mxu0 0.0
          %696 = vmatprep.subr.mxu0 0.0
          %697 = vmatpush2.msra.mxu0 0.0
          %698 = vmatprep.mubr.f32.mxu0 0.0
          %699 = vmatmul.mubr.f32.gmra.mxu0 %v558
          %v700 = vpop.f32.mrf.mxu0
          %v701 = vadd.f32 0.0, %v700
          %v702 = vpop.f32.mrf.mxu0
          %703 = vdwg.mxu0
          %v704 = vld [vmem:[#allocation2] sm:$0xff]
          %s705 = smul.u32 %s37, 8
          %v706 = vlaneseq
          %v707 = vshrl.u32 %v706, 7
          %v708 = vstv %s705
          %v709 = vadd.s32 %v708, %v707
          %v710 = vlaneseq
          %v711 = vand.u32 %v710, 127
          %v712 = vstv %s546
          %v713 = vadd.s32 %v712, %v711
          %vm714 = vcmp.le.s32.totalorder %v713, %v709
          %v715 = vsel %vm714, 0.0, -1e+30
          %vm716 = vcmask 64512
          %v718 = vsel %vm716, %v704, 0
          %v721 = vsel %vm716, %v627, 0
          %723 = vmatprep.subr.mxu0 0.0
          %724 = vmatpush1.xpose.msra.mxu0 0.0
          %725 = vmatprep.subr.mxu0 0.0
          %726 = vmatpush1.xpose.msra.mxu0 0.0
          %727 = vmatprep.subr.mxu0 0.0
          %728 = vmatpush1.xpose.msra.mxu0 0.0
          %729 = vmatprep.subr.mxu0 0.0
          %730 = vmatpush1.xpose.msra.mxu0 0.0
          %731 = vmatprep.subr.mxu0 0.0
          %732 = vmatpush1.xpose.msra.mxu0 0.0
          %733 = vmatprep.subr.mxu0 0.0
          %734 = vmatpush1.xpose.msra.mxu0 0.0
          %735 = vmatprep.subr.mxu0 0.0
          %736 = vmatpush1.xpose.msra.mxu0 0.0
          %737 = vmatprep.subr.mxu0 0.0
          %738 = vmatpush1.xpose.msra.mxu0 0.0
          %739 = vmatprep.subr.mxu0 0.0
          %740 = vmatpush1.xpose.msra.mxu0 0.0
          %741 = vmatprep.subr.mxu0 0.0
          %742 = vmatpush1.xpose.msra.mxu0 0.0
          %743 = vmatprep.subr.mxu0 0.0
          %744 = vmatpush1.xpose.msra.mxu0 0.0
          %745 = vmatprep.subr.mxu0 0.0
          %746 = vmatpush1.xpose.msra.mxu0 0.0
          %747 = vmatprep.subr.mxu0 0.0
          %748 = vmatpush1.xpose.msra.mxu0 0.0
          %749 = vmatprep.subr.mxu0 0.0
          %750 = vmatpush1.xpose.msra.mxu0 0.0
          %751 = vmatprep.subr.mxu0 0.0
          %752 = vmatpush1.xpose.msra.mxu0 0.0
          %753 = vmatprep.subr.mxu0 0.0
          %754 = vmatpush1.xpose.msra.mxu0 %v721
          %755 = vmatprep.subr.mxu0 0.0
          %756 = vmatpush2.xpose.msra.mxu0 0.0
          %757 = vmatprep.subr.mxu0 0.0
          %758 = vmatpush2.xpose.msra.mxu0 0.0
          %759 = vmatprep.subr.mxu0 0.0
          %760 = vmatpush2.xpose.msra.mxu0 0.0
          %761 = vmatprep.subr.mxu0 0.0
          %762 = vmatpush2.xpose.msra.mxu0 0.0
          %763 = vmatprep.subr.mxu0 0.0
          %764 = vmatpush2.xpose.msra.mxu0 0.0
          %765 = vmatprep.subr.mxu0 0.0
          %766 = vmatpush2.xpose.msra.mxu0 0.0
          %767 = vmatprep.subr.mxu0 0.0
          %768 = vmatpush2.xpose.msra.mxu0 0.0
          %769 = vmatprep.subr.mxu0 0.0
          %770 = vmatpush2.xpose.msra.mxu0 0.0
          %771 = vmatprep.subr.mxu0 0.0
          %772 = vmatpush2.xpose.msra.mxu0 0.0
          %773 = vmatprep.subr.mxu0 0.0
          %774 = vmatpush2.xpose.msra.mxu0 0.0
          %775 = vmatprep.subr.mxu0 0.0
          %776 = vmatpush2.xpose.msra.mxu0 0.0
          %777 = vmatprep.subr.mxu0 0.0
          %778 = vmatpush2.xpose.msra.mxu0 0.0
          %779 = vmatprep.subr.mxu0 0.0
          %780 = vmatpush2.xpose.msra.mxu0 0.0
          %781 = vmatprep.subr.mxu0 0.0
          %782 = vmatpush2.xpose.msra.mxu0 0.0
          %783 = vmatprep.subr.mxu0 0.0
          %784 = vmatpush2.xpose.msra.mxu0 0.0
          %785 = vmatprep.subr.mxu0 0.0
          %786 = vmatpush2.xpose.msra.mxu0 0.0
          %787 = vmatprep.mubr.f32.mxu0 0.0
          %788 = vmatmul.mubr.f32.gmra.mxu0 %v718
          %v789 = vpop.f32.mrf.mxu0
          %v790 = vadd.f32 %v715, %v789
          %v791 = vpop.f32.mrf.mxu0
          %792 = vdwg.mxu0
          %v793 = vld [vmem:[#allocation3] sm:$0xff]
          %v794 = vsel %vm716, %v790, -inf
          %795 = vmax.xlane.f32.xlu0 %v794
          %v796 = vpop.xlane.xlu0 %795
          %v797 = vmax.f32 %v793, %v796
          %v798 = vsub.f32 %v793, %v797
          %v799 = vmul.f32 %v798, 1.442695
          %v800 = vpow.pop %v799
          %802 = vset.pattern.permute.xlu0 0
          %803 = vperm.xlu0 %802, %v797
          %v804 = vpop.permute.xlu0 %803
          %v806 = vsub.f32 %v790, %v804
          %v807 = vmul.f32 %v806, 1.442695
          %v808 = vpow.pop %v807
          %v809 = vld [vmem:[#allocation4] sm:$0xff]
          %v810 = vmul.f32 %v800, %v809
          %v811 = vsel %vm716, %v808, 0.0
          %812 = vadd.xlane.f32.xlu0 %v811
          %v813 = vpop.xlane.xlu0 %812
          %v814 = vadd.f32 %v810, %v813
          %vm815 = vcmask 7168
          %816 = vst.msk [vmem:[#allocation4] sm:$0xff] %vm815, %v814
          %v817 = vld [vmem:[#allocation5] sm:$0xff]
          %819 = vset.pattern.permute.xlu0 0
          %820 = vperm.xlu0 %819, %v800
          %v821 = vpop.permute.xlu0 %820
          %v823 = vmul.f32 %v821, %v817
          %v825 = vsel %vm716, %v808, 0
          %827 = vmatprep.subr.mxu0 0.0
          %828 = vmatpush1.msra.mxu0 0.0
          %829 = vmatprep.subr.mxu0 0.0
          %830 = vmatpush1.msra.mxu0 0.0
          %831 = vmatprep.subr.mxu0 0.0
          %832 = vmatpush1.msra.mxu0 0.0
          %833 = vmatprep.subr.mxu0 0.0
          %834 = vmatpush1.msra.mxu0 0.0
          %835 = vmatprep.subr.mxu0 0.0
          %836 = vmatpush1.msra.mxu0 0.0
          %837 = vmatprep.subr.mxu0 0.0
          %838 = vmatpush1.msra.mxu0 0.0
          %839 = vmatprep.subr.mxu0 0.0
          %840 = vmatpush1.msra.mxu0 0.0
          %841 = vmatprep.subr.mxu0 0.0
          %842 = vmatpush1.msra.mxu0 0.0
          %843 = vmatprep.subr.mxu0 0.0
          %844 = vmatpush1.msra.mxu0 0.0
          %845 = vmatprep.subr.mxu0 0.0
          %846 = vmatpush1.msra.mxu0 0.0
          %847 = vmatprep.subr.mxu0 0.0
          %848 = vmatpush1.msra.mxu0 0.0
          %849 = vmatprep.subr.mxu0 0.0
          %850 = vmatpush1.msra.mxu0 0.0
          %851 = vmatprep.subr.mxu0 0.0
          %852 = vmatpush1.msra.mxu0 0.0
          %853 = vmatprep.subr.mxu0 0.0
          %854 = vmatpush1.msra.mxu0 0.0
          %855 = vmatprep.subr.mxu0 0.0
          %856 = vmatpush1.msra.mxu0 0.0
          %857 = vmatprep.subr.mxu0 0.0
          %858 = vmatpush1.msra.mxu0 %v701
          %859 = vmatprep.subr.mxu0 0.0
          %860 = vmatpush2.msra.mxu0 0.0
          %861 = vmatprep.subr.mxu0 0.0
          %862 = vmatpush2.msra.mxu0 0.0
          %863 = vmatprep.subr.mxu0 0.0
          %864 = vmatpush2.msra.mxu0 0.0
          %865 = vmatprep.subr.mxu0 0.0
          %866 = vmatpush2.msra.mxu0 0.0
          %867 = vmatprep.subr.mxu0 0.0
          %868 = vmatpush2.msra.mxu0 0.0
          %869 = vmatprep.subr.mxu0 0.0
          %870 = vmatpush2.msra.mxu0 0.0
          %871 = vmatprep.subr.mxu0 0.0
          %872 = vmatpush2.msra.mxu0 0.0
          %873 = vmatprep.subr.mxu0 0.0
          %874 = vmatpush2.msra.mxu0 0.0
          %875 = vmatprep.subr.mxu0 0.0
          %876 = vmatpush2.msra.mxu0 0.0
          %877 = vmatprep.subr.mxu0 0.0
          %878 = vmatpush2.msra.mxu0 0.0
          %879 = vmatprep.subr.mxu0 0.0
          %880 = vmatpush2.msra.mxu0 0.0
          %881 = vmatprep.subr.mxu0 0.0
          %882 = vmatpush2.msra.mxu0 0.0
          %883 = vmatprep.subr.mxu0 0.0
          %884 = vmatpush2.msra.mxu0 0.0
          %885 = vmatprep.subr.mxu0 0.0
          %886 = vmatpush2.msra.mxu0 0.0
          %887 = vmatprep.subr.mxu0 0.0
          %888 = vmatpush2.msra.mxu0 0.0
          %889 = vmatprep.subr.mxu0 0.0
          %890 = vmatpush2.msra.mxu0 0.0
          %891 = vmatprep.mubr.f32.mxu0 0.0
          %892 = vmatmul.mubr.f32.gmra.mxu0 %v825
          %v893 = vpop.f32.mrf.mxu0
          %v894 = vadd.f32 0.0, %v893
          %v895 = vpop.f32.mrf.mxu0
          %896 = vdwg.mxu0
          %v897 = vadd.f32 %v823, %v894
          %898 = vst.msk [vmem:[#allocation5] sm:$0xff] %vm716, %v897
          %899 = vst.msk [vmem:[#allocation3] sm:$0xff] %vm815, %v797
          %900 = vrot.lane.b32.xlu0 %v704, 120
          %v901 = vpop.permute.xlu0 %900
          %902 = vrot.lane.b32.xlu0 %v627, 120
          %v903 = vpop.permute.xlu0 %902
          %v904 = vsel %vm716, %v901, 0
          %v906 = vsel %vm716, %v903, 0
          %908 = vmatprep.subr.mxu0 0.0
          %909 = vmatpush1.xpose.msra.mxu0 0.0
          %910 = vmatprep.subr.mxu0 0.0
          %911 = vmatpush1.xpose.msra.mxu0 0.0
          %912 = vmatprep.subr.mxu0 0.0
          %913 = vmatpush1.xpose.msra.mxu0 0.0
          %914 = vmatprep.subr.mxu0 0.0
          %915 = vmatpush1.xpose.msra.mxu0 0.0
          %916 = vmatprep.subr.mxu0 0.0
          %917 = vmatpush1.xpose.msra.mxu0 0.0
          %918 = vmatprep.subr.mxu0 0.0
          %919 = vmatpush1.xpose.msra.mxu0 0.0
          %920 = vmatprep.subr.mxu0 0.0
          %921 = vmatpush1.xpose.msra.mxu0 0.0
          %922 = vmatprep.subr.mxu0 0.0
          %923 = vmatpush1.xpose.msra.mxu0 0.0
          %924 = vmatprep.subr.mxu0 0.0
          %925 = vmatpush1.xpose.msra.mxu0 0.0
          %926 = vmatprep.subr.mxu0 0.0
          %927 = vmatpush1.xpose.msra.mxu0 0.0
          %928 = vmatprep.subr.mxu0 0.0
          %929 = vmatpush1.xpose.msra.mxu0 0.0
          %930 = vmatprep.subr.mxu0 0.0
          %931 = vmatpush1.xpose.msra.mxu0 0.0
          %932 = vmatprep.subr.mxu0 0.0
          %933 = vmatpush1.xpose.msra.mxu0 0.0
          %934 = vmatprep.subr.mxu0 0.0
          %935 = vmatpush1.xpose.msra.mxu0 0.0
          %936 = vmatprep.subr.mxu0 0.0
          %937 = vmatpush1.xpose.msra.mxu0 0.0
          %938 = vmatprep.subr.mxu0 0.0
          %939 = vmatpush1.xpose.msra.mxu0 %v906
          %940 = vmatprep.subr.mxu0 0.0
          %941 = vmatpush2.xpose.msra.mxu0 0.0
          %942 = vmatprep.subr.mxu0 0.0
          %943 = vmatpush2.xpose.msra.mxu0 0.0
          %944 = vmatprep.subr.mxu0 0.0
          %945 = vmatpush2.xpose.msra.mxu0 0.0
          %946 = vmatprep.subr.mxu0 0.0
          %947 = vmatpush2.xpose.msra.mxu0 0.0
          %948 = vmatprep.subr.mxu0 0.0
          %949 = vmatpush2.xpose.msra.mxu0 0.0
          %950 = vmatprep.subr.mxu0 0.0
          %951 = vmatpush2.xpose.msra.mxu0 0.0
          %952 = vmatprep.subr.mxu0 0.0
          %953 = vmatpush2.xpose.msra.mxu0 0.0
          %954 = vmatprep.subr.mxu0 0.0
          %955 = vmatpush2.xpose.msra.mxu0 0.0
          %956 = vmatprep.subr.mxu0 0.0
          %957 = vmatpush2.xpose.msra.mxu0 0.0
          %958 = vmatprep.subr.mxu0 0.0
          %959 = vmatpush2.xpose.msra.mxu0 0.0
          %960 = vmatprep.subr.mxu0 0.0
          %961 = vmatpush2.xpose.msra.mxu0 0.0
          %962 = vmatprep.subr.mxu0 0.0
          %963 = vmatpush2.xpose.msra.mxu0 0.0
          %964 = vmatprep.subr.mxu0 0.0
          %965 = vmatpush2.xpose.msra.mxu0 0.0
          %966 = vmatprep.subr.mxu0 0.0
          %967 = vmatpush2.xpose.msra.mxu0 0.0
          %968 = vmatprep.subr.mxu0 0.0
          %969 = vmatpush2.xpose.msra.mxu0 0.0
          %970 = vmatprep.subr.mxu0 0.0
          %971 = vmatpush2.xpose.msra.mxu0 0.0
          %972 = vmatprep.mubr.f32.mxu0 0.0
          %973 = vmatmul.mubr.f32.gmra.mxu0 %v904
          %v974 = vpop.f32.mrf.mxu0
          %v975 = vadd.f32 %v715, %v974
          %v976 = vpop.f32.mrf.mxu0
          %977 = vdwg.mxu0
          %s978 = scalar_lea.vmem [#allocation3], 8
          %v979 = vld [vmem:[%s978] sm:$0xff]
          %v980 = vsel %vm716, %v975, -inf
          %981 = vmax.xlane.f32.xlu0 %v980
          %v982 = vpop.xlane.xlu0 %981
          %v983 = vmax.f32 %v979, %v982
          %v984 = vsub.f32 %v979, %v983
          %v985 = vmul.f32 %v984, 1.442695
          %v986 = vpow.pop %v985
          %988 = vset.pattern.permute.xlu0 0
          %989 = vperm.xlu0 %988, %v983
          %v990 = vpop.permute.xlu0 %989
          %v992 = vsub.f32 %v975, %v990
          %v993 = vmul.f32 %v992, 1.442695
          %v994 = vpow.pop %v993
          %s995 = scalar_lea.vmem [#allocation4], 8
          %v996 = vld [vmem:[%s995] sm:$0xff]
          %v997 = vmul.f32 %v986, %v996
          %v998 = vsel %vm716, %v994, 0.0
          %999 = vadd.xlane.f32.xlu0 %v998
          %v1000 = vpop.xlane.xlu0 %999
          %v1001 = vadd.f32 %v997, %v1000
          %1002 = vst.msk [vmem:[%s995] sm:$0xff] %vm815, %v1001
          %s1003 = scalar_lea.vmem [#allocation5], 8
          %v1004 = vld [vmem:[%s1003] sm:$0xff]
          %1006 = vset.pattern.permute.xlu0 0
          %1007 = vperm.xlu0 %1006, %v986
          %v1008 = vpop.permute.xlu0 %1007
          %v1010 = vmul.f32 %v1008, %v1004
          %1012 = vrot.lane.b32.xlu0 %v701, 120
          %v1013 = vpop.permute.xlu0 %1012
          %v1016 = vsel %vm716, %v994, 0
          %1018 = vmatprep.subr.mxu0 0.0
          %1019 = vmatpush1.msra.mxu0 0.0
          %1020 = vmatprep.subr.mxu0 0.0
          %1021 = vmatpush1.msra.mxu0 0.0
          %1022 = vmatprep.subr.mxu0 0.0
          %1023 = vmatpush1.msra.mxu0 0.0
          %1024 = vmatprep.subr.mxu0 0.0
          %1025 = vmatpush1.msra.mxu0 0.0
          %1026 = vmatprep.subr.mxu0 0.0
          %1027 = vmatpush1.msra.mxu0 0.0
          %1028 = vmatprep.subr.mxu0 0.0
          %1029 = vmatpush1.msra.mxu0 0.0
          %1030 = vmatprep.subr.mxu0 0.0
          %1031 = vmatpush1.msra.mxu0 0.0
          %1032 = vmatprep.subr.mxu0 0.0
          %1033 = vmatpush1.msra.mxu0 0.0
          %1034 = vmatprep.subr.mxu0 0.0
          %1035 = vmatpush1.msra.mxu0 0.0
          %1036 = vmatprep.subr.mxu0 0.0
          %1037 = vmatpush1.msra.mxu0 0.0
          %1038 = vmatprep.subr.mxu0 0.0
          %1039 = vmatpush1.msra.mxu0 0.0
          %1040 = vmatprep.subr.mxu0 0.0
          %1041 = vmatpush1.msra.mxu0 0.0
          %1042 = vmatprep.subr.mxu0 0.0
          %1043 = vmatpush1.msra.mxu0 0.0
          %1044 = vmatprep.subr.mxu0 0.0
          %1045 = vmatpush1.msra.mxu0 0.0
          %1046 = vmatprep.subr.mxu0 0.0
          %1047 = vmatpush1.msra.mxu0 0.0
          %1048 = vmatprep.subr.mxu0 0.0
          %1049 = vmatpush1.msra.mxu0 %v1013
          %1050 = vmatprep.subr.mxu0 0.0
          %1051 = vmatpush2.msra.mxu0 0.0
          %1052 = vmatprep.subr.mxu0 0.0
          %1053 = vmatpush2.msra.mxu0 0.0
          %1054 = vmatprep.subr.mxu0 0.0
          %1055 = vmatpush2.msra.mxu0 0.0
          %1056 = vmatprep.subr.mxu0 0.0
          %1057 = vmatpush2.msra.mxu0 0.0
          %1058 = vmatprep.subr.mxu0 0.0
          %1059 = vmatpush2.msra.mxu0 0.0
          %1060 = vmatprep.subr.mxu0 0.0
          %1061 = vmatpush2.msra.mxu0 0.0
          %1062 = vmatprep.subr.mxu0 0.0
          %1063 = vmatpush2.msra.mxu0 0.0
          %1064 = vmatprep.subr.mxu0 0.0
          %1065 = vmatpush2.msra.mxu0 0.0
          %1066 = vmatprep.subr.mxu0 0.0
          %1067 = vmatpush2.msra.mxu0 0.0
          %1068 = vmatprep.subr.mxu0 0.0
          %1069 = vmatpush2.msra.mxu0 0.0
          %1070 = vmatprep.subr.mxu0 0.0
          %1071 = vmatpush2.msra.mxu0 0.0
          %1072 = vmatprep.subr.mxu0 0.0
          %1073 = vmatpush2.msra.mxu0 0.0
          %1074 = vmatprep.subr.mxu0 0.0
          %1075 = vmatpush2.msra.mxu0 0.0
          %1076 = vmatprep.subr.mxu0 0.0
          %1077 = vmatpush2.msra.mxu0 0.0
          %1078 = vmatprep.subr.mxu0 0.0
          %1079 = vmatpush2.msra.mxu0 0.0
          %1080 = vmatprep.subr.mxu0 0.0
          %1081 = vmatpush2.msra.mxu0 0.0
          %1082 = vmatprep.mubr.f32.mxu0 0.0
          %1083 = vmatmul.mubr.f32.gmra.mxu0 %v1016
          %v1084 = vpop.f32.mrf.mxu0
          %v1085 = vadd.f32 0.0, %v1084
          %v1086 = vpop.f32.mrf.mxu0
          %1087 = vdwg.mxu0
          %v1088 = vadd.f32 %v1010, %v1085
          %1089 = vst.msk [vmem:[%s1003] sm:$0xff] %vm716, %v1088
          %1090 = vst.msk [vmem:[%s978] sm:$0xff] %vm815, %v983
          %1091 = vrot.lane.b32.xlu0 %v704, 112
          %v1092 = vpop.permute.xlu0 %1091
          %1093 = vrot.lane.b32.xlu0 %v627, 112
          %v1094 = vpop.permute.xlu0 %1093
          %v1095 = vsel %vm716, %v1092, 0
          %v1097 = vsel %vm716, %v1094, 0
          %1099 = vmatprep.subr.mxu0 0.0
          %1100 = vmatpush1.xpose.msra.mxu0 0.0
          %1101 = vmatprep.subr.mxu0 0.0
          %1102 = vmatpush1.xpose.msra.mxu0 0.0
          %1103 = vmatprep.subr.mxu0 0.0
          %1104 = vmatpush1.xpose.msra.mxu0 0.0
          %1105 = vmatprep.subr.mxu0 0.0
          %1106 = vmatpush1.xpose.msra.mxu0 0.0
          %1107 = vmatprep.subr.mxu0 0.0
          %1108 = vmatpush1.xpose.msra.mxu0 0.0
          %1109 = vmatprep.subr.mxu0 0.0
          %1110 = vmatpush1.xpose.msra.mxu0 0.0
          %1111 = vmatprep.subr.mxu0 0.0
          %1112 = vmatpush1.xpose.msra.mxu0 0.0
          %1113 = vmatprep.subr.mxu0 0.0
          %1114 = vmatpush1.xpose.msra.mxu0 0.0
          %1115 = vmatprep.subr.mxu0 0.0
          %1116 = vmatpush1.xpose.msra.mxu0 0.0
          %1117 = vmatprep.subr.mxu0 0.0
          %1118 = vmatpush1.xpose.msra.mxu0 0.0
          %1119 = vmatprep.subr.mxu0 0.0
          %1120 = vmatpush1.xpose.msra.mxu0 0.0
          %1121 = vmatprep.subr.mxu0 0.0
          %1122 = vmatpush1.xpose.msra.mxu0 0.0
          %1123 = vmatprep.subr.mxu0 0.0
          %1124 = vmatpush1.xpose.msra.mxu0 0.0
          %1125 = vmatprep.subr.mxu0 0.0
          %1126 = vmatpush1.xpose.msra.mxu0 0.0
          %1127 = vmatprep.subr.mxu0 0.0
          %1128 = vmatpush1.xpose.msra.mxu0 0.0
          %1129 = vmatprep.subr.mxu0 0.0
          %1130 = vmatpush1.xpose.msra.mxu0 %v1097
          %1131 = vmatprep.subr.mxu0 0.0
          %1132 = vmatpush2.xpose.msra.mxu0 0.0
          %1133 = vmatprep.subr.mxu0 0.0
          %1134 = vmatpush2.xpose.msra.mxu0 0.0
          %1135 = vmatprep.subr.mxu0 0.0
          %1136 = vmatpush2.xpose.msra.mxu0 0.0
          %1137 = vmatprep.subr.mxu0 0.0
          %1138 = vmatpush2.xpose.msra.mxu0 0.0
          %1139 = vmatprep.subr.mxu0 0.0
          %1140 = vmatpush2.xpose.msra.mxu0 0.0
          %1141 = vmatprep.subr.mxu0 0.0
          %1142 = vmatpush2.xpose.msra.mxu0 0.0
          %1143 = vmatprep.subr.mxu0 0.0
          %1144 = vmatpush2.xpose.msra.mxu0 0.0
          %1145 = vmatprep.subr.mxu0 0.0
          %1146 = vmatpush2.xpose.msra.mxu0 0.0
          %1147 = vmatprep.subr.mxu0 0.0
          %1148 = vmatpush2.xpose.msra.mxu0 0.0
          %1149 = vmatprep.subr.mxu0 0.0
          %1150 = vmatpush2.xpose.msra.mxu0 0.0
          %1151 = vmatprep.subr.mxu0 0.0
          %1152 = vmatpush2.xpose.msra.mxu0 0.0
          %1153 = vmatprep.subr.mxu0 0.0
          %1154 = vmatpush2.xpose.msra.mxu0 0.0
          %1155 = vmatprep.subr.mxu0 0.0
          %1156 = vmatpush2.xpose.msra.mxu0 0.0
          %1157 = vmatprep.subr.mxu0 0.0
          %1158 = vmatpush2.xpose.msra.mxu0 0.0
          %1159 = vmatprep.subr.mxu0 0.0
          %1160 = vmatpush2.xpose.msra.mxu0 0.0
          %1161 = vmatprep.subr.mxu0 0.0
          %1162 = vmatpush2.xpose.msra.mxu0 0.0
          %1163 = vmatprep.mubr.f32.mxu0 0.0
          %1164 = vmatmul.mubr.f32.gmra.mxu0 %v1095
          %v1165 = vpop.f32.mrf.mxu0
          %v1166 = vadd.f32 %v715, %v1165
          %v1167 = vpop.f32.mrf.mxu0
          %1168 = vdwg.mxu0
          %s1169 = scalar_lea.vmem [#allocation3], 16
          %v1170 = vld [vmem:[%s1169] sm:$0xff]
          %v1171 = vsel %vm716, %v1166, -inf
          %1172 = vmax.xlane.f32.xlu0 %v1171
          %v1173 = vpop.xlane.xlu0 %1172
          %v1174 = vmax.f32 %v1170, %v1173
          %v1175 = vsub.f32 %v1170, %v1174
          %v1176 = vmul.f32 %v1175, 1.442695
          %v1177 = vpow.pop %v1176
          %1179 = vset.pattern.permute.xlu0 0
          %1180 = vperm.xlu0 %1179, %v1174
          %v1181 = vpop.permute.xlu0 %1180
          %v1183 = vsub.f32 %v1166, %v1181
          %v1184 = vmul.f32 %v1183, 1.442695
          %v1185 = vpow.pop %v1184
          %s1186 = scalar_lea.vmem [#allocation4], 16
          %v1187 = vld [vmem:[%s1186] sm:$0xff]
          %v1188 = vmul.f32 %v1177, %v1187
          %v1189 = vsel %vm716, %v1185, 0.0
          %1190 = vadd.xlane.f32.xlu0 %v1189
          %v1191 = vpop.xlane.xlu0 %1190
          %v1192 = vadd.f32 %v1188, %v1191
          %1193 = vst.msk [vmem:[%s1186] sm:$0xff] %vm815, %v1192
          %s1194 = scalar_lea.vmem [#allocation5], 16
          %v1195 = vld [vmem:[%s1194] sm:$0xff]
          %1197 = vset.pattern.permute.xlu0 0
          %1198 = vperm.xlu0 %1197, %v1177
          %v1199 = vpop.permute.xlu0 %1198
          %v1201 = vmul.f32 %v1199, %v1195
          %1202 = vrot.lane.b32.xlu0 %v701, 112
          %v1203 = vpop.permute.xlu0 %1202
          %v1206 = vsel %vm716, %v1185, 0
          %1208 = vmatprep.subr.mxu0 0.0
          %1209 = vmatpush1.msra.mxu0 0.0
          %1210 = vmatprep.subr.mxu0 0.0
          %1211 = vmatpush1.msra.mxu0 0.0
          %1212 = vmatprep.subr.mxu0 0.0
          %1213 = vmatpush1.msra.mxu0 0.0
          %1214 = vmatprep.subr.mxu0 0.0
          %1215 = vmatpush1.msra.mxu0 0.0
          %1216 = vmatprep.subr.mxu0 0.0
          %1217 = vmatpush1.msra.mxu0 0.0
          %1218 = vmatprep.subr.mxu0 0.0
          %1219 = vmatpush1.msra.mxu0 0.0
          %1220 = vmatprep.subr.mxu0 0.0
          %1221 = vmatpush1.msra.mxu0 0.0
          %1222 = vmatprep.subr.mxu0 0.0
          %1223 = vmatpush1.msra.mxu0 0.0
          %1224 = vmatprep.subr.mxu0 0.0
          %1225 = vmatpush1.msra.mxu0 0.0
          %1226 = vmatprep.subr.mxu0 0.0
          %1227 = vmatpush1.msra.mxu0 0.0
          %1228 = vmatprep.subr.mxu0 0.0
          %1229 = vmatpush1.msra.mxu0 0.0
          %1230 = vmatprep.subr.mxu0 0.0
          %1231 = vmatpush1.msra.mxu0 0.0
          %1232 = vmatprep.subr.mxu0 0.0
          %1233 = vmatpush1.msra.mxu0 0.0
          %1234 = vmatprep.subr.mxu0 0.0
          %1235 = vmatpush1.msra.mxu0 0.0
          %1236 = vmatprep.subr.mxu0 0.0
          %1237 = vmatpush1.msra.mxu0 0.0
          %1238 = vmatprep.subr.mxu0 0.0
          %1239 = vmatpush1.msra.mxu0 %v1203
          %1240 = vmatprep.subr.mxu0 0.0
          %1241 = vmatpush2.msra.mxu0 0.0
          %1242 = vmatprep.subr.mxu0 0.0
          %1243 = vmatpush2.msra.mxu0 0.0
          %1244 = vmatprep.subr.mxu0 0.0
          %1245 = vmatpush2.msra.mxu0 0.0
          %1246 = vmatprep.subr.mxu0 0.0
          %1247 = vmatpush2.msra.mxu0 0.0
          %1248 = vmatprep.subr.mxu0 0.0
          %1249 = vmatpush2.msra.mxu0 0.0
          %1250 = vmatprep.subr.mxu0 0.0
          %1251 = vmatpush2.msra.mxu0 0.0
          %1252 = vmatprep.subr.mxu0 0.0
          %1253 = vmatpush2.msra.mxu0 0.0
          %1254 = vmatprep.subr.mxu0 0.0
          %1255 = vmatpush2.msra.mxu0 0.0
          %1256 = vmatprep.subr.mxu0 0.0
          %1257 = vmatpush2.msra.mxu0 0.0
          %1258 = vmatprep.subr.mxu0 0.0
          %1259 = vmatpush2.msra.mxu0 0.0
          %1260 = vmatprep.subr.mxu0 0.0
          %1261 = vmatpush2.msra.mxu0 0.0
          %1262 = vmatprep.subr.mxu0 0.0
          %1263 = vmatpush2.msra.mxu0 0.0
          %1264 = vmatprep.subr.mxu0 0.0
          %1265 = vmatpush2.msra.mxu0 0.0
          %1266 = vmatprep.subr.mxu0 0.0
          %1267 = vmatpush2.msra.mxu0 0.0
          %1268 = vmatprep.subr.mxu0 0.0
          %1269 = vmatpush2.msra.mxu0 0.0
          %1270 = vmatprep.subr.mxu0 0.0
          %1271 = vmatpush2.msra.mxu0 0.0
          %1272 = vmatprep.mubr.f32.mxu0 0.0
          %1273 = vmatmul.mubr.f32.gmra.mxu0 %v1206
          %v1274 = vpop.f32.mrf.mxu0
          %v1275 = vadd.f32 0.0, %v1274
          %v1276 = vpop.f32.mrf.mxu0
          %1277 = vdwg.mxu0
          %v1278 = vadd.f32 %v1201, %v1275
          %1279 = vst.msk [vmem:[%s1194] sm:$0xff] %vm716, %v1278
          %1280 = vst.msk [vmem:[%s1169] sm:$0xff] %vm815, %v1174
          %1281 = vrot.lane.b32.xlu0 %v704, 104
          %v1282 = vpop.permute.xlu0 %1281
          %1283 = vrot.lane.b32.xlu0 %v627, 104
          %v1284 = vpop.permute.xlu0 %1283
          %v1285 = vsel %vm716, %v1282, 0
          %v1287 = vsel %vm716, %v1284, 0
          %1289 = vmatprep.subr.mxu0 0.0
          %1290 = vmatpush1.xpose.msra.mxu0 0.0
          %1291 = vmatprep.subr.mxu0 0.0
          %1292 = vmatpush1.xpose.msra.mxu0 0.0
          %1293 = vmatprep.subr.mxu0 0.0
          %1294 = vmatpush1.xpose.msra.mxu0 0.0
          %1295 = vmatprep.subr.mxu0 0.0
          %1296 = vmatpush1.xpose.msra.mxu0 0.0
          %1297 = vmatprep.subr.mxu0 0.0
          %1298 = vmatpush1.xpose.msra.mxu0 0.0
          %1299 = vmatprep.subr.mxu0 0.0
          %1300 = vmatpush1.xpose.msra.mxu0 0.0
          %1301 = vmatprep.subr.mxu0 0.0
          %1302 = vmatpush1.xpose.msra.mxu0 0.0
          %1303 = vmatprep.subr.mxu0 0.0
          %1304 = vmatpush1.xpose.msra.mxu0 0.0
          %1305 = vmatprep.subr.mxu0 0.0
          %1306 = vmatpush1.xpose.msra.mxu0 0.0
          %1307 = vmatprep.subr.mxu0 0.0
          %1308 = vmatpush1.xpose.msra.mxu0 0.0
          %1309 = vmatprep.subr.mxu0 0.0
          %1310 = vmatpush1.xpose.msra.mxu0 0.0
          %1311 = vmatprep.subr.mxu0 0.0
          %1312 = vmatpush1.xpose.msra.mxu0 0.0
          %1313 = vmatprep.subr.mxu0 0.0
          %1314 = vmatpush1.xpose.msra.mxu0 0.0
          %1315 = vmatprep.subr.mxu0 0.0
          %1316 = vmatpush1.xpose.msra.mxu0 0.0
          %1317 = vmatprep.subr.mxu0 0.0
          %1318 = vmatpush1.xpose.msra.mxu0 0.0
          %1319 = vmatprep.subr.mxu0 0.0
          %1320 = vmatpush1.xpose.msra.mxu0 %v1287
          %1321 = vmatprep.subr.mxu0 0.0
          %1322 = vmatpush2.xpose.msra.mxu0 0.0
          %1323 = vmatprep.subr.mxu0 0.0
          %1324 = vmatpush2.xpose.msra.mxu0 0.0
          %1325 = vmatprep.subr.mxu0 0.0
          %1326 = vmatpush2.xpose.msra.mxu0 0.0
          %1327 = vmatprep.subr.mxu0 0.0
          %1328 = vmatpush2.xpose.msra.mxu0 0.0
          %1329 = vmatprep.subr.mxu0 0.0
          %1330 = vmatpush2.xpose.msra.mxu0 0.0
          %1331 = vmatprep.subr.mxu0 0.0
          %1332 = vmatpush2.xpose.msra.mxu0 0.0
          %1333 = vmatprep.subr.mxu0 0.0
          %1334 = vmatpush2.xpose.msra.mxu0 0.0
          %1335 = vmatprep.subr.mxu0 0.0
          %1336 = vmatpush2.xpose.msra.mxu0 0.0
          %1337 = vmatprep.subr.mxu0 0.0
          %1338 = vmatpush2.xpose.msra.mxu0 0.0
          %1339 = vmatprep.subr.mxu0 0.0
          %1340 = vmatpush2.xpose.msra.mxu0 0.0
          %1341 = vmatprep.subr.mxu0 0.0
          %1342 = vmatpush2.xpose.msra.mxu0 0.0
          %1343 = vmatprep.subr.mxu0 0.0
          %1344 = vmatpush2.xpose.msra.mxu0 0.0
          %1345 = vmatprep.subr.mxu0 0.0
          %1346 = vmatpush2.xpose.msra.mxu0 0.0
          %1347 = vmatprep.subr.mxu0 0.0
          %1348 = vmatpush2.xpose.msra.mxu0 0.0
          %1349 = vmatprep.subr.mxu0 0.0
          %1350 = vmatpush2.xpose.msra.mxu0 0.0
          %1351 = vmatprep.subr.mxu0 0.0
          %1352 = vmatpush2.xpose.msra.mxu0 0.0
          %1353 = vmatprep.mubr.f32.mxu0 0.0
          %1354 = vmatmul.mubr.f32.gmra.mxu0 %v1285
          %v1355 = vpop.f32.mrf.mxu0
          %v1356 = vadd.f32 %v715, %v1355
          %v1357 = vpop.f32.mrf.mxu0
          %1358 = vdwg.mxu0
          %s1359 = scalar_lea.vmem [#allocation3], 24
          %v1360 = vld [vmem:[%s1359] sm:$0xff]
          %v1361 = vsel %vm716, %v1356, -inf
          %1362 = vmax.xlane.f32.xlu0 %v1361
          %v1363 = vpop.xlane.xlu0 %1362
          %v1364 = vmax.f32 %v1360, %v1363
          %v1365 = vsub.f32 %v1360, %v1364
          %v1366 = vmul.f32 %v1365, 1.442695
          %v1367 = vpow.pop %v1366
          %1369 = vset.pattern.permute.xlu0 0
          %1370 = vperm.xlu0 %1369, %v1364
          %v1371 = vpop.permute.xlu0 %1370
          %v1373 = vsub.f32 %v1356, %v1371
          %v1374 = vmul.f32 %v1373, 1.442695
          %v1375 = vpow.pop %v1374
          %s1376 = scalar_lea.vmem [#allocation4], 24
          %v1377 = vld [vmem:[%s1376] sm:$0xff]
          %v1378 = vmul.f32 %v1367, %v1377
          %v1379 = vsel %vm716, %v1375, 0.0
          %1380 = vadd.xlane.f32.xlu0 %v1379
          %v1381 = vpop.xlane.xlu0 %1380
          %v1382 = vadd.f32 %v1378, %v1381
          %1383 = vst.msk [vmem:[%s1376] sm:$0xff] %vm815, %v1382
          %s1384 = scalar_lea.vmem [#allocation5], 24
          %v1385 = vld [vmem:[%s1384] sm:$0xff]
          %1387 = vset.pattern.permute.xlu0 0
          %1388 = vperm.xlu0 %1387, %v1367
          %v1389 = vpop.permute.xlu0 %1388
          %v1391 = vmul.f32 %v1389, %v1385
          %1392 = vrot.lane.b32.xlu0 %v701, 104
          %v1393 = vpop.permute.xlu0 %1392
          %v1396 = vsel %vm716, %v1375, 0
          %1398 = vmatprep.subr.mxu0 0.0
          %1399 = vmatpush1.msra.mxu0 0.0
          %1400 = vmatprep.subr.mxu0 0.0
          %1401 = vmatpush1.msra.mxu0 0.0
          %1402 = vmatprep.subr.mxu0 0.0
          %1403 = vmatpush1.msra.mxu0 0.0
          %1404 = vmatprep.subr.mxu0 0.0
          %1405 = vmatpush1.msra.mxu0 0.0
          %1406 = vmatprep.subr.mxu0 0.0
          %1407 = vmatpush1.msra.mxu0 0.0
          %1408 = vmatprep.subr.mxu0 0.0
          %1409 = vmatpush1.msra.mxu0 0.0
          %1410 = vmatprep.subr.mxu0 0.0
          %1411 = vmatpush1.msra.mxu0 0.0
          %1412 = vmatprep.subr.mxu0 0.0
          %1413 = vmatpush1.msra.mxu0 0.0
          %1414 = vmatprep.subr.mxu0 0.0
          %1415 = vmatpush1.msra.mxu0 0.0
          %1416 = vmatprep.subr.mxu0 0.0
          %1417 = vmatpush1.msra.mxu0 0.0
          %1418 = vmatprep.subr.mxu0 0.0
          %1419 = vmatpush1.msra.mxu0 0.0
          %1420 = vmatprep.subr.mxu0 0.0
          %1421 = vmatpush1.msra.mxu0 0.0
          %1422 = vmatprep.subr.mxu0 0.0
          %1423 = vmatpush1.msra.mxu0 0.0
          %1424 = vmatprep.subr.mxu0 0.0
          %1425 = vmatpush1.msra.mxu0 0.0
          %1426 = vmatprep.subr.mxu0 0.0
          %1427 = vmatpush1.msra.mxu0 0.0
          %1428 = vmatprep.subr.mxu0 0.0
          %1429 = vmatpush1.msra.mxu0 %v1393
          %1430 = vmatprep.subr.mxu0 0.0
          %1431 = vmatpush2.msra.mxu0 0.0
          %1432 = vmatprep.subr.mxu0 0.0
          %1433 = vmatpush2.msra.mxu0 0.0
          %1434 = vmatprep.subr.mxu0 0.0
          %1435 = vmatpush2.msra.mxu0 0.0
          %1436 = vmatprep.subr.mxu0 0.0
          %1437 = vmatpush2.msra.mxu0 0.0
          %1438 = vmatprep.subr.mxu0 0.0
          %1439 = vmatpush2.msra.mxu0 0.0
          %1440 = vmatprep.subr.mxu0 0.0
          %1441 = vmatpush2.msra.mxu0 0.0
          %1442 = vmatprep.subr.mxu0 0.0
          %1443 = vmatpush2.msra.mxu0 0.0
          %1444 = vmatprep.subr.mxu0 0.0
          %1445 = vmatpush2.msra.mxu0 0.0
          %1446 = vmatprep.subr.mxu0 0.0
          %1447 = vmatpush2.msra.mxu0 0.0
          %1448 = vmatprep.subr.mxu0 0.0
          %1449 = vmatpush2.msra.mxu0 0.0
          %1450 = vmatprep.subr.mxu0 0.0
          %1451 = vmatpush2.msra.mxu0 0.0
          %1452 = vmatprep.subr.mxu0 0.0
          %1453 = vmatpush2.msra.mxu0 0.0
          %1454 = vmatprep.subr.mxu0 0.0
          %1455 = vmatpush2.msra.mxu0 0.0
          %1456 = vmatprep.subr.mxu0 0.0
          %1457 = vmatpush2.msra.mxu0 0.0
          %1458 = vmatprep.subr.mxu0 0.0
          %1459 = vmatpush2.msra.mxu0 0.0
          %1460 = vmatprep.subr.mxu0 0.0
          %1461 = vmatpush2.msra.mxu0 0.0
          %1462 = vmatprep.mubr.f32.mxu0 0.0
          %1463 = vmatmul.mubr.f32.gmra.mxu0 %v1396
          %v1464 = vpop.f32.mrf.mxu0
          %v1465 = vadd.f32 0.0, %v1464
          %v1466 = vpop.f32.mrf.mxu0
          %1467 = vdwg.mxu0
          %v1468 = vadd.f32 %v1391, %v1465
          %1469 = vst.msk [vmem:[%s1384] sm:$0xff] %vm716, %v1468
          %1470 = vst.msk [vmem:[%s1359] sm:$0xff] %vm815, %v1364
        $region84: #{tpu_custom_call.1} parent=51 // pred_fallthru
          _
        // Predicated region
        $region85: #{tpu_custom_call.1} parent=51 // pred_check
          %p1471 = pneg %p444
        $region86: #{tpu_custom_call.1} parent=51 // pred_check_branch
          %1473 = sbr.rel (%p1471) target = $region88
        $region87: #{tpu_custom_call.1} parent=51 // pred_region
          %v1474 = vld [vmem:[#allocation4] sm:$0xff]
          %v1475 = vrcp.pop %v1474
          %v1476 = vld [vmem:[#allocation5] sm:$0xff]
          %1478 = vset.pattern.permute.xlu0 0
          %1479 = vperm.xlu0 %1478, %v1475
          %v1480 = vpop.permute.xlu0 %1479
          %v1482 = vmul.f32 %v1476, %v1480
          %v1483 = vld [vmem:[#allocation16] sm:$0xff]
          %s1484 = scalar_lea.vmem [#allocation4], 8
          %v1485 = vld [vmem:[%s1484] sm:$0xff]
          %v1486 = vrcp.pop %v1485
          %s1487 = scalar_lea.vmem [#allocation5], 8
          %v1488 = vld [vmem:[%s1487] sm:$0xff]
          %1490 = vset.pattern.permute.xlu0 0
          %1491 = vperm.xlu0 %1490, %v1486
          %v1492 = vpop.permute.xlu0 %1491
          %v1494 = vmul.f32 %v1488, %v1492
          %v1495 = vld [vmem:[#allocation16 + $0x8] sm:$0xff]
          %vm1496 = vcmask 64512
          %v1498 = vsel %vm1496, %v1494, 0
          %1500 = vmatprep.subr.mxu0 0.0
          %1501 = vmatpush1.msra.mxu0 0.0
          %1502 = vmatprep.subr.mxu0 0.0
          %1503 = vmatpush1.msra.mxu0 0.0
          %1504 = vmatprep.subr.mxu0 0.0
          %1505 = vmatpush1.msra.mxu0 0.0
          %1506 = vmatprep.subr.mxu0 0.0
          %1507 = vmatpush1.msra.mxu0 0.0
          %1508 = vmatprep.subr.mxu0 0.0
          %1509 = vmatpush1.msra.mxu0 0.0
          %1510 = vmatprep.subr.mxu0 0.0
          %1511 = vmatpush1.msra.mxu0 0.0
          %1512 = vmatprep.subr.mxu0 0.0
          %1513 = vmatpush1.msra.mxu0 0.0
          %1514 = vmatprep.subr.mxu0 0.0
          %1515 = vmatpush1.msra.mxu0 0.0
          %1516 = vmatprep.subr.mxu0 0.0
          %1517 = vmatpush1.msra.mxu0 0.0
          %1518 = vmatprep.subr.mxu0 0.0
          %1519 = vmatpush1.msra.mxu0 0.0
          %1520 = vmatprep.subr.mxu0 0.0
          %1521 = vmatpush1.msra.mxu0 0.0
          %1522 = vmatprep.subr.mxu0 0.0
          %1523 = vmatpush1.msra.mxu0 0.0
          %1524 = vmatprep.subr.mxu0 0.0
          %1525 = vmatpush1.msra.mxu0 0.0
          %1526 = vmatprep.subr.mxu0 0.0
          %1527 = vmatpush1.msra.mxu0 0.0
          %1528 = vmatprep.subr.mxu0 0.0
          %1529 = vmatpush1.msra.mxu0 0.0
          %1530 = vmatprep.subr.mxu0 0.0
          %1531 = vmatpush1.msra.mxu0 %v1495
          %1532 = vmatprep.subr.mxu0 0.0
          %1533 = vmatpush2.msra.mxu0 0.0
          %1534 = vmatprep.subr.mxu0 0.0
          %1535 = vmatpush2.msra.mxu0 0.0
          %1536 = vmatprep.subr.mxu0 0.0
          %1537 = vmatpush2.msra.mxu0 0.0
          %1538 = vmatprep.subr.mxu0 0.0
          %1539 = vmatpush2.msra.mxu0 0.0
          %1540 = vmatprep.subr.mxu0 0.0
          %1541 = vmatpush2.msra.mxu0 0.0
          %1542 = vmatprep.subr.mxu0 0.0
          %1543 = vmatpush2.msra.mxu0 0.0
          %1544 = vmatprep.subr.mxu0 0.0
          %1545 = vmatpush2.msra.mxu0 0.0
          %1546 = vmatprep.subr.mxu0 0.0
          %1547 = vmatpush2.msra.mxu0 0.0
          %1548 = vmatprep.subr.mxu0 0.0
          %1549 = vmatpush2.msra.mxu0 0.0
          %1550 = vmatprep.subr.mxu0 0.0
          %1551 = vmatpush2.msra.mxu0 0.0
          %1552 = vmatprep.subr.mxu0 0.0
          %1553 = vmatpush2.msra.mxu0 0.0
          %1554 = vmatprep.subr.mxu0 0.0
          %1555 = vmatpush2.msra.mxu0 0.0
          %1556 = vmatprep.subr.mxu0 0.0
          %1557 = vmatpush2.msra.mxu0 0.0
          %1558 = vmatprep.subr.mxu0 0.0
          %1559 = vmatpush2.msra.mxu0 0.0
          %1560 = vmatprep.subr.mxu0 0.0
          %1561 = vmatpush2.msra.mxu0 0.0
          %1562 = vmatprep.subr.mxu0 0.0
          %1563 = vmatpush2.msra.mxu0 0.0
          %1564 = vmatprep.mubr.f32.mxu0 0.0
          %1565 = vmatmul.mubr.f32.gmra.mxu0 %v1498
          %v1566 = vpop.f32.mrf.mxu0
          %v1567 = vadd.f32 0.0, %v1566
          %v1568 = vpop.f32.mrf.mxu0
          %1569 = vdwg.mxu0
          %v1571 = vsel %vm1496, %v1482, 0
          %1573 = vmatprep.subr.mxu0 0.0
          %1574 = vmatpush1.msra.mxu0 0.0
          %1575 = vmatprep.subr.mxu0 0.0
          %1576 = vmatpush1.msra.mxu0 0.0
          %1577 = vmatprep.subr.mxu0 0.0
          %1578 = vmatpush1.msra.mxu0 0.0
          %1579 = vmatprep.subr.mxu0 0.0
          %1580 = vmatpush1.msra.mxu0 0.0
          %1581 = vmatprep.subr.mxu0 0.0
          %1582 = vmatpush1.msra.mxu0 0.0
          %1583 = vmatprep.subr.mxu0 0.0
          %1584 = vmatpush1.msra.mxu0 0.0
          %1585 = vmatprep.subr.mxu0 0.0
          %1586 = vmatpush1.msra.mxu0 0.0
          %1587 = vmatprep.subr.mxu0 0.0
          %1588 = vmatpush1.msra.mxu0 0.0
          %1589 = vmatprep.subr.mxu0 0.0
          %1590 = vmatpush1.msra.mxu0 0.0
          %1591 = vmatprep.subr.mxu0 0.0
          %1592 = vmatpush1.msra.mxu0 0.0
          %1593 = vmatprep.subr.mxu0 0.0
          %1594 = vmatpush1.msra.mxu0 0.0
          %1595 = vmatprep.subr.mxu0 0.0
          %1596 = vmatpush1.msra.mxu0 0.0
          %1597 = vmatprep.subr.mxu0 0.0
          %1598 = vmatpush1.msra.mxu0 0.0
          %1599 = vmatprep.subr.mxu0 0.0
          %1600 = vmatpush1.msra.mxu0 0.0
          %1601 = vmatprep.subr.mxu0 0.0
          %1602 = vmatpush1.msra.mxu0 0.0
          %1603 = vmatprep.subr.mxu0 0.0
          %1604 = vmatpush1.msra.mxu0 %v1483
          %1605 = vmatprep.subr.mxu0 0.0
          %1606 = vmatpush2.msra.mxu0 0.0
          %1607 = vmatprep.subr.mxu0 0.0
          %1608 = vmatpush2.msra.mxu0 0.0
          %1609 = vmatprep.subr.mxu0 0.0
          %1610 = vmatpush2.msra.mxu0 0.0
          %1611 = vmatprep.subr.mxu0 0.0
          %1612 = vmatpush2.msra.mxu0 0.0
          %1613 = vmatprep.subr.mxu0 0.0
          %1614 = vmatpush2.msra.mxu0 0.0
          %1615 = vmatprep.subr.mxu0 0.0
          %1616 = vmatpush2.msra.mxu0 0.0
          %1617 = vmatprep.subr.mxu0 0.0
          %1618 = vmatpush2.msra.mxu0 0.0
          %1619 = vmatprep.subr.mxu0 0.0
          %1620 = vmatpush2.msra.mxu0 0.0
          %1621 = vmatprep.subr.mxu0 0.0
          %1622 = vmatpush2.msra.mxu0 0.0
          %1623 = vmatprep.subr.mxu0 0.0
          %1624 = vmatpush2.msra.mxu0 0.0
          %1625 = vmatprep.subr.mxu0 0.0
          %1626 = vmatpush2.msra.mxu0 0.0
          %1627 = vmatprep.subr.mxu0 0.0
          %1628 = vmatpush2.msra.mxu0 0.0
          %1629 = vmatprep.subr.mxu0 0.0
          %1630 = vmatpush2.msra.mxu0 0.0
          %1631 = vmatprep.subr.mxu0 0.0
          %1632 = vmatpush2.msra.mxu0 0.0
          %1633 = vmatprep.subr.mxu0 0.0
          %1634 = vmatpush2.msra.mxu0 0.0
          %1635 = vmatprep.subr.mxu0 0.0
          %1636 = vmatpush2.msra.mxu0 0.0
          %1637 = vmatprep.mubr.f32.mxu0 0.0
          %1638 = vmatmul.mubr.f32.gmra.mxu0 %v1571
          %v1639 = vpop.f32.mrf.mxu0
          %v1640 = vadd.f32 %v1567, %v1639
          %v1641 = vpop.f32.mrf.mxu0
          %1642 = vdwg.mxu0
          %s1643 = scalar_lea.vmem [#allocation4], 16
          %v1644 = vld [vmem:[%s1643] sm:$0xff]
          %v1645 = vrcp.pop %v1644
          %s1646 = scalar_lea.vmem [#allocation5], 16
          %v1647 = vld [vmem:[%s1646] sm:$0xff]
          %1649 = vset.pattern.permute.xlu0 0
          %1650 = vperm.xlu0 %1649, %v1645
          %v1651 = vpop.permute.xlu0 %1650
          %v1653 = vmul.f32 %v1647, %v1651
          %v1654 = vld [vmem:[#allocation16 + $0x10] sm:$0xff]
          %v1656 = vsel %vm1496, %v1653, 0
          %1658 = vmatprep.subr.mxu0 0.0
          %1659 = vmatpush1.msra.mxu0 0.0
          %1660 = vmatprep.subr.mxu0 0.0
          %1661 = vmatpush1.msra.mxu0 0.0
          %1662 = vmatprep.subr.mxu0 0.0
          %1663 = vmatpush1.msra.mxu0 0.0
          %1664 = vmatprep.subr.mxu0 0.0
          %1665 = vmatpush1.msra.mxu0 0.0
          %1666 = vmatprep.subr.mxu0 0.0
          %1667 = vmatpush1.msra.mxu0 0.0
          %1668 = vmatprep.subr.mxu0 0.0
          %1669 = vmatpush1.msra.mxu0 0.0
          %1670 = vmatprep.subr.mxu0 0.0
          %1671 = vmatpush1.msra.mxu0 0.0
          %1672 = vmatprep.subr.mxu0 0.0
          %1673 = vmatpush1.msra.mxu0 0.0
          %1674 = vmatprep.subr.mxu0 0.0
          %1675 = vmatpush1.msra.mxu0 0.0
          %1676 = vmatprep.subr.mxu0 0.0
          %1677 = vmatpush1.msra.mxu0 0.0
          %1678 = vmatprep.subr.mxu0 0.0
          %1679 = vmatpush1.msra.mxu0 0.0
          %1680 = vmatprep.subr.mxu0 0.0
          %1681 = vmatpush1.msra.mxu0 0.0
          %1682 = vmatprep.subr.mxu0 0.0
          %1683 = vmatpush1.msra.mxu0 0.0
          %1684 = vmatprep.subr.mxu0 0.0
          %1685 = vmatpush1.msra.mxu0 0.0
          %1686 = vmatprep.subr.mxu0 0.0
          %1687 = vmatpush1.msra.mxu0 0.0
          %1688 = vmatprep.subr.mxu0 0.0
          %1689 = vmatpush1.msra.mxu0 %v1654
          %1690 = vmatprep.subr.mxu0 0.0
          %1691 = vmatpush2.msra.mxu0 0.0
          %1692 = vmatprep.subr.mxu0 0.0
          %1693 = vmatpush2.msra.mxu0 0.0
          %1694 = vmatprep.subr.mxu0 0.0
          %1695 = vmatpush2.msra.mxu0 0.0
          %1696 = vmatprep.subr.mxu0 0.0
          %1697 = vmatpush2.msra.mxu0 0.0
          %1698 = vmatprep.subr.mxu0 0.0
          %1699 = vmatpush2.msra.mxu0 0.0
          %1700 = vmatprep.subr.mxu0 0.0
          %1701 = vmatpush2.msra.mxu0 0.0
          %1702 = vmatprep.subr.mxu0 0.0
          %1703 = vmatpush2.msra.mxu0 0.0
          %1704 = vmatprep.subr.mxu0 0.0
          %1705 = vmatpush2.msra.mxu0 0.0
          %1706 = vmatprep.subr.mxu0 0.0
          %1707 = vmatpush2.msra.mxu0 0.0
          %1708 = vmatprep.subr.mxu0 0.0
          %1709 = vmatpush2.msra.mxu0 0.0
          %1710 = vmatprep.subr.mxu0 0.0
          %1711 = vmatpush2.msra.mxu0 0.0
          %1712 = vmatprep.subr.mxu0 0.0
          %1713 = vmatpush2.msra.mxu0 0.0
          %1714 = vmatprep.subr.mxu0 0.0
          %1715 = vmatpush2.msra.mxu0 0.0
          %1716 = vmatprep.subr.mxu0 0.0
          %1717 = vmatpush2.msra.mxu0 0.0
          %1718 = vmatprep.subr.mxu0 0.0
          %1719 = vmatpush2.msra.mxu0 0.0
          %1720 = vmatprep.subr.mxu0 0.0
          %1721 = vmatpush2.msra.mxu0 0.0
          %1722 = vmatprep.mubr.f32.mxu0 0.0
          %1723 = vmatmul.mubr.f32.gmra.mxu0 %v1656
          %v1724 = vpop.f32.mrf.mxu0
          %v1725 = vadd.f32 0.0, %v1724
          %v1726 = vpop.f32.mrf.mxu0
          %1727 = vdwg.mxu0
          %v1728 = vadd.f32 %v1640, %v1725
          %s1729 = scalar_lea.vmem [#allocation4], 24
          %v1730 = vld [vmem:[%s1729] sm:$0xff]
          %v1731 = vrcp.pop %v1730
          %s1732 = scalar_lea.vmem [#allocation5], 24
          %v1733 = vld [vmem:[%s1732] sm:$0xff]
          %1735 = vset.pattern.permute.xlu0 0
          %1736 = vperm.xlu0 %1735, %v1731
          %v1737 = vpop.permute.xlu0 %1736
          %v1739 = vmul.f32 %v1733, %v1737
          %v1740 = vld [vmem:[#allocation16 + $0x18] sm:$0xff]
          %v1742 = vsel %vm1496, %v1739, 0
          %1744 = vmatprep.subr.mxu0 0.0
          %1745 = vmatpush1.msra.mxu0 0.0
          %1746 = vmatprep.subr.mxu0 0.0
          %1747 = vmatpush1.msra.mxu0 0.0
          %1748 = vmatprep.subr.mxu0 0.0
          %1749 = vmatpush1.msra.mxu0 0.0
          %1750 = vmatprep.subr.mxu0 0.0
          %1751 = vmatpush1.msra.mxu0 0.0
          %1752 = vmatprep.subr.mxu0 0.0
          %1753 = vmatpush1.msra.mxu0 0.0
          %1754 = vmatprep.subr.mxu0 0.0
          %1755 = vmatpush1.msra.mxu0 0.0
          %1756 = vmatprep.subr.mxu0 0.0
          %1757 = vmatpush1.msra.mxu0 0.0
          %1758 = vmatprep.subr.mxu0 0.0
          %1759 = vmatpush1.msra.mxu0 0.0
          %1760 = vmatprep.subr.mxu0 0.0
          %1761 = vmatpush1.msra.mxu0 0.0
          %1762 = vmatprep.subr.mxu0 0.0
          %1763 = vmatpush1.msra.mxu0 0.0
          %1764 = vmatprep.subr.mxu0 0.0
          %1765 = vmatpush1.msra.mxu0 0.0
          %1766 = vmatprep.subr.mxu0 0.0
          %1767 = vmatpush1.msra.mxu0 0.0
          %1768 = vmatprep.subr.mxu0 0.0
          %1769 = vmatpush1.msra.mxu0 0.0
          %1770 = vmatprep.subr.mxu0 0.0
          %1771 = vmatpush1.msra.mxu0 0.0
          %1772 = vmatprep.subr.mxu0 0.0
          %1773 = vmatpush1.msra.mxu0 0.0
          %1774 = vmatprep.subr.mxu0 0.0
          %1775 = vmatpush1.msra.mxu0 %v1740
          %1776 = vmatprep.subr.mxu0 0.0
          %1777 = vmatpush2.msra.mxu0 0.0
          %1778 = vmatprep.subr.mxu0 0.0
          %1779 = vmatpush2.msra.mxu0 0.0
          %1780 = vmatprep.subr.mxu0 0.0
          %1781 = vmatpush2.msra.mxu0 0.0
          %1782 = vmatprep.subr.mxu0 0.0
          %1783 = vmatpush2.msra.mxu0 0.0
          %1784 = vmatprep.subr.mxu0 0.0
          %1785 = vmatpush2.msra.mxu0 0.0
          %1786 = vmatprep.subr.mxu0 0.0
          %1787 = vmatpush2.msra.mxu0 0.0
          %1788 = vmatprep.subr.mxu0 0.0
          %1789 = vmatpush2.msra.mxu0 0.0
          %1790 = vmatprep.subr.mxu0 0.0
          %1791 = vmatpush2.msra.mxu0 0.0
          %1792 = vmatprep.subr.mxu0 0.0
          %1793 = vmatpush2.msra.mxu0 0.0
          %1794 = vmatprep.subr.mxu0 0.0
          %1795 = vmatpush2.msra.mxu0 0.0
          %1796 = vmatprep.subr.mxu0 0.0
          %1797 = vmatpush2.msra.mxu0 0.0
          %1798 = vmatprep.subr.mxu0 0.0
          %1799 = vmatpush2.msra.mxu0 0.0
          %1800 = vmatprep.subr.mxu0 0.0
          %1801 = vmatpush2.msra.mxu0 0.0
          %1802 = vmatprep.subr.mxu0 0.0
          %1803 = vmatpush2.msra.mxu0 0.0
          %1804 = vmatprep.subr.mxu0 0.0
          %1805 = vmatpush2.msra.mxu0 0.0
          %1806 = vmatprep.subr.mxu0 0.0
          %1807 = vmatpush2.msra.mxu0 0.0
          %1808 = vmatprep.mubr.f32.mxu0 0.0
          %1809 = vmatmul.mubr.f32.gmra.mxu0 %v1742
          %v1810 = vpop.f32.mrf.mxu0
          %v1811 = vadd.f32 0.0, %v1810
          %v1812 = vpop.f32.mrf.mxu0
          %1813 = vdwg.mxu0
          %v1814 = vadd.f32 %v1728, %v1811
          %v1815 = vld [vmem:[%s7] sm:$0x1]
          %v1817 = vlaneseq
          %v1818 = vshrl.u32 %v1817, 7
          %v1819 = vsub.s32 0, %v1818
          %v1820 = vrot.slane %v1815, %v1819
          %v1822 = vadd.f32 %v1814, %v1820
          %vm1823 = vcmask 261120
          %1824 = vst.msk [vmem:[%s443] sm:$0xff] %vm1823, %v1822
        $region88: #{tpu_custom_call.1} parent=51 // pred_fallthru
          _
        %s1825 = sand.u32 %s242, 1
        %s1826 = scalar_lea.sflag [#allocation9], %s1825
        %s1827 = sand.u32 %s242, 1
        %s1828 = smul.addr %s1827, 8
        %s1829 = scalar_lea.vmem [#allocation18], %s1828
        // Predicated region
        $region89: #{tpu_custom_call.1} parent=51 // pred_check
          %p1830 = pneg %p252
        $region90: #{tpu_custom_call.1} parent=51 // pred_check_branch
          %1832 = sbr.rel (%p1830) target = $region92
        $region91: #{tpu_custom_call.1} parent=51 // pred_region
          %s1834 = ssub.s32 128, 128
          %1835 = vsyncadd %s1826, %s1834
          %s1836 = sadd.s32 %s37, %s36
          %s1837 = smul.addr %s1836, 128
          %s1838 = scalar_lea.hbm %s8, %s1837
          %s1840 = sshll.u32 %s1829, 4
          %s1841 = int_to_ptr.vmem [resolvable:$true] %s1840
          %1843 = dma.vmem_to_hbm [thread:$0]  %s1841, 128, %s1838, %s1826
        $region92: #{tpu_custom_call.1} parent=51 // pred_fallthru
          _
      $region52: #{tpu_custom_call.1} parent=5 // pred_fallthru
        _
      %p1844 = scmp.le.s32.totalorder 2, %s26
      // Predicated region
      $region93: #{tpu_custom_call.1} parent=5 // pred_check
        %p1845 = pneg %p1844
      $region94: #{tpu_custom_call.1} parent=5 // pred_check_branch
        %1847 = sbr.rel (%p1845) target = $region96
      $region95: #{tpu_custom_call.1} parent=5 // pred_region
        %s1848 = ssub.s32 %s26, 2
        // Predicated region
        $region97: #{tpu_custom_call.1} parent=95 // pred_check
          %p1849 = pneg %p258
        $region98: #{tpu_custom_call.1} parent=95 // pred_check_branch
          %1851 = sbr.rel (%p1849) target = $region100
        $region99: #{tpu_custom_call.1} parent=95 // pred_region
          %s1852 = sand.u32 %s243, 1
          %s1853 = scalar_lea.sflag [#allocation9], %s1852
          %s1854 = sand.u32 %s243, 1
          %s1855 = smul.addr %s1854, 8
          %s1856 = scalar_lea.vmem [#allocation18], %s1855
          %1857 = dma.done %s1853, 128
        $region100: #{tpu_custom_call.1} parent=95 // pred_fallthru
          _
      $region96: #{tpu_custom_call.1} parent=5 // pred_fallthru
        _
    $region6: #{tpu_custom_call.1} parent=1 // loop_footer
      %s30 = sadd.s32 1, %s26
    $region7: #{tpu_custom_call.1} parent=1 // loop_footer_branch
      %25 = sbr.rel target = $region3
    $region8: #{tpu_custom_call.1} parent=1 // loop_exit
      _
    %1858 = vsyncpa [#allocation8], 1
    %s1859 = scalar_lea.sflag [#allocation8], 1
    %1860 = vsyncpa %s1859, 1
    %1861 = vsyncpa [#allocation11], 1
    %s1862 = scalar_lea.sflag [#allocation11], 1
    %1863 = vsyncpa %s1862, 1
    %1864 = vsyncpa [#allocation14], 1
    %1865 = vsyncpa [#allocation17], 1
    %1866 = vsyncpa [#allocation9], 1
    %s1867 = scalar_lea.sflag [#allocation9], 1
    %1868 = vsyncpa %s1867, 1

</llo_original>
